<compile_context>
chip_gen: v7x
topology: tpu7x:2x2x1
jax: 0.10.0
libtpu: 0.0.40
codegen_flags: <defaults>
</compile_context>

<pallas_src>
import functools
import math

import jax
import jax.numpy as jnp
from jax.experimental import pallas as pl
from jax.experimental.pallas import tpu as pltpu


def _cheb_graph_conv_kernel(gso_t_ref, w_ref, b_ref, x_ref, o_ref, *, Ks):
    # gso_t_ref : (N, N)             gso.T  (node contraction on the lane axis)
    # w_ref     : (Ks*c_in, c_out)   weight reshaped so row (k*c_in + i) = weight[k, i, :]
    # b_ref     : (1, c_out)
    # x_ref     : (1, c_in, S_t, N)  raw NCHW block (no wrapper transpose)
    # o_ref     : (1, S_t, N, c_out) output block in module layout
    _, c_in, s_t, n = x_ref.shape
    c_out = o_ref.shape[-1]

    gso_t = gso_t_ref[...]                                   # (N, N)
    w_all = w_ref[...]                                       # (Ks*c_in, c_out)

    # rows = (channel, time), lanes = node  ->  x0[c*S_t + t, m] = x[b, c, t0+t, m]
    x0 = x_ref[0].astype(jnp.float32).reshape(c_in * s_t, n)

    acc = jnp.zeros((s_t, n, c_out), jnp.float32)

    x_km2 = x0
    x_km1 = x0
    for k in range(Ks):
        if k == 0:
            xk = x0
        elif k == 1:
            # x_1[(c,t), h] = sum_m gso[h, m] * x_0[(c,t), m]
            xk = jnp.dot(x_km1, gso_t, preferred_element_type=jnp.float32)
        else:
            xk = 2.0 * jnp.dot(x_km1, gso_t,
                               preferred_element_type=jnp.float32) - x_km2

        # Channel contraction (K = c_in is tiny): VPU broadcast-FMA into the
        # output-layout accumulator instead of a second, K=c_in MXU pass.
        for i in range(c_in):
            slab = xk[i * s_t:(i + 1) * s_t, :]              # (S_t, N), lanes = node
            w_row = w_all[k * c_in + i:k * c_in + i + 1]     # (1, c_out)
            acc = acc + slab[:, :, None] * w_row             # -> (S_t, N, c_out)

        x_km2 = x_km1
        x_km1 = xk

    out = acc + b_ref[...]                                   # (1, c_out) bias broadcast
    o_ref[0] = out.astype(o_ref.dtype)


def _pick_time_block(T, c_in, c_out, N, itemsize, budget_bytes=4 << 20):
    """Largest time tile S_t dividing T with S_t % 8 == 0 (or S_t == T) under a VMEM budget."""
    per_t = 2 * (c_in * N + N * c_out) * itemsize            # double-buffered x/out per time step
    cands = [s for s in range(1, T + 1)
             if T % s == 0 and (s == T or s % 8 == 0)]
    fitting = [s for s in cands if s * per_t <= budget_bytes]
    return max(fitting) if fitting else min(cands)


def cheb_graph_conv(x, gso, weight, bias=None, *, time_block=None):
    """ChebGraphConv forward.

    x:(B,c_in,T,N) NCHW-style, gso:(N,N), weight:(Ks,c_in,c_out), bias:(c_out,) or None.
    Returns (B, T, N, c_out), matching the PyTorch module.
    """
    B, c_in, T, N = x.shape
    Ks, w_cin, c_out = weight.shape
    assert w_cin == c_in
    assert Ks >= 1, "Ks must be a positive integer"

    itemsize = jnp.dtype(x.dtype).itemsize
    s_t = _pick_time_block(T, c_in, c_out, N, itemsize) if time_block is None else time_block
    assert T % s_t == 0 and (s_t == T or s_t % 8 == 0)

    # Tiny one-time host-side prep (no per-element HBM round trip of x).
    gso_t = jnp.transpose(gso)                               # (N, N)
    w2 = weight.reshape(Ks * c_in, c_out)
    if bias is None:
        bias = jnp.zeros((c_out,), x.dtype)
    b2 = bias.reshape(1, c_out)

    grid = (B, T // s_t)
    flops = 2 * B * T * ((Ks - 1) * c_in * N * N + Ks * c_in * N * c_out)
    out_bytes = B * T * N * c_out * itemsize
    bytes_accessed = (x.size + gso.size + weight.size + c_out) * itemsize + out_bytes

    kernel = functools.partial(_cheb_graph_conv_kernel, Ks=Ks)
    out = pl.pallas_call(
        kernel,
        out_shape=jax.ShapeDtypeStruct((B, T, N, c_out), x.dtype),
        grid_spec=pltpu.PrefetchScalarGridSpec(
            num_scalar_prefetch=0,
            grid=grid,
            in_specs=[
                pl.BlockSpec((N, N), lambda b, t: (0, 0)),                 # gso^T (resident)
                pl.BlockSpec((Ks * c_in, c_out), lambda b, t: (0, 0)),     # weight (resident)
                pl.BlockSpec((1, c_out), lambda b, t: (0, 0)),             # bias (resident)
                pl.BlockSpec((1, c_in, s_t, N), lambda b, t: (b, 0, t, 0)),  # NCHW x block
            ],
            out_specs=pl.BlockSpec((1, s_t, N, c_out), lambda b, t: (b, t, 0, 0)),
        ),
        compiler_params=pltpu.CompilerParams(
            dimension_semantics=("parallel", "parallel"),
            vmem_limit_bytes=64 * 1024 * 1024,
        ),
        cost_estimate=pl.CostEstimate(
            flops=flops, transcendentals=0, bytes_accessed=bytes_accessed),
    )(gso_t, w2, b2, x)
    return out


def init_params(key, Ks, c_in, c_out):
    """Deterministic init mirroring the PyTorch module's reset_parameters()."""
    kw, kb = jax.random.split(key)
    fan_in = c_in * c_out  # torch fan_in for a (Ks, c_in, c_out) tensor
    bound = 1.0 / math.sqrt(fan_in)
    weight = jax.random.uniform(kw, (Ks, c_in, c_out), jnp.float32, -bound, bound)
    bias = jax.random.uniform(kb, (c_out,), jnp.float32, -bound, bound)
    return weight, bias


if __name__ == "__main__":
    key = jax.random.PRNGKey(0)
    k_x, k_g, k_p = jax.random.split(key, 3)

    B, C_IN, T, N, C_OUT, KS = 2, 4, 16, 16, 32, 3

    x = jax.random.normal(k_x, (B, C_IN, T, N), jnp.float32)      # NCHW-style input
    gso = jax.random.normal(k_g, (N, N), jnp.float32) / math.sqrt(N)
    weight, bias = init_params(k_p, KS, C_IN, C_OUT)

    out = cheb_graph_conv(x, gso, weight, bias)
    out = jax.block_until_ready(out)

    # Pure-JAX reference mirroring the torch forward exactly.
    x_p = jnp.transpose(x, (0, 2, 3, 1))
    x_list = [x_p]
    if KS > 1:
        x_list.append(jnp.einsum('hi,btij->bthj', gso, x_p))
    for k in range(2, KS):
        x_list.append(jnp.einsum('hi,btij->bthj', 2.0 * gso, x_list[k - 1]) - x_list[k - 2])
    stack = jnp.stack(x_list, axis=2)
    ref = jnp.einsum('btkhi,kij->bthj', stack, weight) + bias

    assert out.shape == (B, T, N, C_OUT)
    assert jnp.allclose(out, ref, atol=1e-4, rtol=1e-4), float(jnp.max(jnp.abs(out - ref)))

    print("KERNEL_OK")
</pallas_src>

<mosaic_0001>
module attributes {stable_mosaic.version = 11 : i64} {
  func.func @_cheb_graph_conv_kernel(%arg0: i32, %arg1: i32, %arg2: memref<16x16xf32, #tpu.memory_space<vmem>>, %arg3: memref<12x32xf32, #tpu.memory_space<vmem>>, %arg4: memref<1x32xf32, #tpu.memory_space<vmem>>, %arg5: memref<1x4x16x16xf32, #tpu.memory_space<vmem>>, %arg6: memref<1x16x16x32xf32, #tpu.memory_space<vmem>>) attributes {dimension_semantics = [#tpu.dimension_semantics<parallel>, #tpu.dimension_semantics<parallel>], iteration_bounds = array<i64: 2, 1>, scalar_prefetch = 0 : i64, scratch_operands = 0 : i64, tpu.core_type = #tpu.core_type<tc>, window_params = [{pipeline_mode = #tpu.pipeline_mode<synchronous>, transform_indices = @transform_0, window_bounds = array<i64: 16, 16>}, {pipeline_mode = #tpu.pipeline_mode<synchronous>, transform_indices = @transform_1, window_bounds = array<i64: 12, 32>}, {pipeline_mode = #tpu.pipeline_mode<synchronous>, transform_indices = @transform_2, window_bounds = array<i64: 1, 32>}, {transform_indices = @transform_3, window_bounds = array<i64: 1, 4, 16, 16>}, {transform_indices = @transform_4, window_bounds = array<i64: 1, 16, 16, 32>}]} {
    %c0 = arith.constant 0 : index
    %c0_0 = arith.constant 0 : index
    %0 = vector.load %arg2[%c0, %c0_0] : memref<16x16xf32, #tpu.memory_space<vmem>>, vector<16x16xf32>
    %c0_1 = arith.constant 0 : index
    %c0_2 = arith.constant 0 : index
    %1 = vector.load %arg3[%c0_1, %c0_2] : memref<12x32xf32, #tpu.memory_space<vmem>>, vector<12x32xf32>
    %c0_3 = arith.constant 0 : index
    %c0_4 = arith.constant 0 : index
    %c0_5 = arith.constant 0 : index
    %c0_6 = arith.constant 0 : index
    %2 = vector.load %arg5[%c0_3, %c0_4, %c0_5, %c0_6] : memref<1x4x16x16xf32, #tpu.memory_space<vmem>>, vector<1x4x16x16xf32>
    %3 = vector.shape_cast %2 : vector<1x4x16x16xf32> to vector<4x16x16xf32>
    %4 = vector.shape_cast %3 : vector<4x16x16xf32> to vector<64x16xf32>
    %cst = arith.constant 0.000000e+00 : f32
    %5 = vector.broadcast %cst : f32 to vector<16x16x32xf32>
    %6 = vector.extract_strided_slice %4 {offsets = [0, 0], sizes = [16, 16], strides = [1, 1]} : vector<64x16xf32> to vector<16x16xf32>
    %7 = vector.extract_strided_slice %1 {offsets = [0, 0], sizes = [1, 32], strides = [1, 1]} : vector<12x32xf32> to vector<1x32xf32>
    %8 = vector.shape_cast %6 : vector<16x16xf32> to vector<16x16x1xf32>
    %9 = vector.shape_cast %7 : vector<1x32xf32> to vector<1x1x32xf32>
    %10 = vector.broadcast %8 : vector<16x16x1xf32> to vector<16x16x32xf32>
    %11 = vector.broadcast %9 : vector<1x1x32xf32> to vector<16x16x32xf32>
    %12 = arith.mulf %10, %11 : vector<16x16x32xf32>
    %13 = arith.addf %5, %12 : vector<16x16x32xf32>
    %14 = vector.extract_strided_slice %4 {offsets = [16, 0], sizes = [16, 16], strides = [1, 1]} : vector<64x16xf32> to vector<16x16xf32>
    %15 = vector.extract_strided_slice %1 {offsets = [1, 0], sizes = [1, 32], strides = [1, 1]} : vector<12x32xf32> to vector<1x32xf32>
    %16 = vector.shape_cast %14 : vector<16x16xf32> to vector<16x16x1xf32>
    %17 = vector.shape_cast %15 : vector<1x32xf32> to vector<1x1x32xf32>
    %18 = vector.broadcast %16 : vector<16x16x1xf32> to vector<16x16x32xf32>
    %19 = vector.broadcast %17 : vector<1x1x32xf32> to vector<16x16x32xf32>
    %20 = arith.mulf %18, %19 : vector<16x16x32xf32>
    %21 = arith.addf %13, %20 : vector<16x16x32xf32>
    %22 = vector.extract_strided_slice %4 {offsets = [32, 0], sizes = [16, 16], strides = [1, 1]} : vector<64x16xf32> to vector<16x16xf32>
    %23 = vector.extract_strided_slice %1 {offsets = [2, 0], sizes = [1, 32], strides = [1, 1]} : vector<12x32xf32> to vector<1x32xf32>
    %24 = vector.shape_cast %22 : vector<16x16xf32> to vector<16x16x1xf32>
    %25 = vector.shape_cast %23 : vector<1x32xf32> to vector<1x1x32xf32>
    %26 = vector.broadcast %24 : vector<16x16x1xf32> to vector<16x16x32xf32>
    %27 = vector.broadcast %25 : vector<1x1x32xf32> to vector<16x16x32xf32>
    %28 = arith.mulf %26, %27 : vector<16x16x32xf32>
    %29 = arith.addf %21, %28 : vector<16x16x32xf32>
    %30 = vector.extract_strided_slice %4 {offsets = [48, 0], sizes = [16, 16], strides = [1, 1]} : vector<64x16xf32> to vector<16x16xf32>
    %31 = vector.extract_strided_slice %1 {offsets = [3, 0], sizes = [1, 32], strides = [1, 1]} : vector<12x32xf32> to vector<1x32xf32>
    %32 = vector.shape_cast %30 : vector<16x16xf32> to vector<16x16x1xf32>
    %33 = vector.shape_cast %31 : vector<1x32xf32> to vector<1x1x32xf32>
    %34 = vector.broadcast %32 : vector<16x16x1xf32> to vector<16x16x32xf32>
    %35 = vector.broadcast %33 : vector<1x1x32xf32> to vector<16x16x32xf32>
    %36 = arith.mulf %34, %35 : vector<16x16x32xf32>
    %37 = arith.addf %29, %36 : vector<16x16x32xf32>
    %cst_7 = arith.constant dense<0.000000e+00> : vector<64x16xf32>
    %38 = tpu.matmul %4, %0, %cst_7 {dimension_numbers = #tpu.dot_dimension_numbers<[1], [0], [0], [1], [0, 0, 1, 1], [], []>} : vector<64x16xf32>, vector<16x16xf32>, vector<64x16xf32> -> vector<64x16xf32>
    %39 = vector.extract_strided_slice %38 {offsets = [0, 0], sizes = [16, 16], strides = [1, 1]} : vector<64x16xf32> to vector<16x16xf32>
    %40 = vector.extract_strided_slice %1 {offsets = [4, 0], sizes = [1, 32], strides = [1, 1]} : vector<12x32xf32> to vector<1x32xf32>
    %41 = vector.shape_cast %39 : vector<16x16xf32> to vector<16x16x1xf32>
    %42 = vector.shape_cast %40 : vector<1x32xf32> to vector<1x1x32xf32>
    %43 = vector.broadcast %41 : vector<16x16x1xf32> to vector<16x16x32xf32>
    %44 = vector.broadcast %42 : vector<1x1x32xf32> to vector<16x16x32xf32>
    %45 = arith.mulf %43, %44 : vector<16x16x32xf32>
    %46 = arith.addf %37, %45 : vector<16x16x32xf32>
    %47 = vector.extract_strided_slice %38 {offsets = [16, 0], sizes = [16, 16], strides = [1, 1]} : vector<64x16xf32> to vector<16x16xf32>
    %48 = vector.extract_strided_slice %1 {offsets = [5, 0], sizes = [1, 32], strides = [1, 1]} : vector<12x32xf32> to vector<1x32xf32>
    %49 = vector.shape_cast %47 : vector<16x16xf32> to vector<16x16x1xf32>
    %50 = vector.shape_cast %48 : vector<1x32xf32> to vector<1x1x32xf32>
    %51 = vector.broadcast %49 : vector<16x16x1xf32> to vector<16x16x32xf32>
    %52 = vector.broadcast %50 : vector<1x1x32xf32> to vector<16x16x32xf32>
    %53 = arith.mulf %51, %52 : vector<16x16x32xf32>
    %54 = arith.addf %46, %53 : vector<16x16x32xf32>
    %55 = vector.extract_strided_slice %38 {offsets = [32, 0], sizes = [16, 16], strides = [1, 1]} : vector<64x16xf32> to vector<16x16xf32>
    %56 = vector.extract_strided_slice %1 {offsets = [6, 0], sizes = [1, 32], strides = [1, 1]} : vector<12x32xf32> to vector<1x32xf32>
    %57 = vector.shape_cast %55 : vector<16x16xf32> to vector<16x16x1xf32>
    %58 = vector.shape_cast %56 : vector<1x32xf32> to vector<1x1x32xf32>
    %59 = vector.broadcast %57 : vector<16x16x1xf32> to vector<16x16x32xf32>
    %60 = vector.broadcast %58 : vector<1x1x32xf32> to vector<16x16x32xf32>
    %61 = arith.mulf %59, %60 : vector<16x16x32xf32>
    %62 = arith.addf %54, %61 : vector<16x16x32xf32>
    %63 = vector.extract_strided_slice %38 {offsets = [48, 0], sizes = [16, 16], strides = [1, 1]} : vector<64x16xf32> to vector<16x16xf32>
    %64 = vector.extract_strided_slice %1 {offsets = [7, 0], sizes = [1, 32], strides = [1, 1]} : vector<12x32xf32> to vector<1x32xf32>
    %65 = vector.shape_cast %63 : vector<16x16xf32> to vector<16x16x1xf32>
    %66 = vector.shape_cast %64 : vector<1x32xf32> to vector<1x1x32xf32>
    %67 = vector.broadcast %65 : vector<16x16x1xf32> to vector<16x16x32xf32>
    %68 = vector.broadcast %66 : vector<1x1x32xf32> to vector<16x16x32xf32>
    %69 = arith.mulf %67, %68 : vector<16x16x32xf32>
    %70 = arith.addf %62, %69 : vector<16x16x32xf32>
    %cst_8 = arith.constant dense<0.000000e+00> : vector<64x16xf32>
    %71 = tpu.matmul %38, %0, %cst_8 {dimension_numbers = #tpu.dot_dimension_numbers<[1], [0], [0], [1], [0, 0, 1, 1], [], []>} : vector<64x16xf32>, vector<16x16xf32>, vector<64x16xf32> -> vector<64x16xf32>
    %cst_9 = arith.constant 2.000000e+00 : f32
    %72 = vector.broadcast %cst_9 : f32 to vector<64x16xf32>
    %73 = arith.mulf %72, %71 : vector<64x16xf32>
    %74 = arith.subf %73, %4 : vector<64x16xf32>
    %75 = vector.extract_strided_slice %74 {offsets = [0, 0], sizes = [16, 16], strides = [1, 1]} : vector<64x16xf32> to vector<16x16xf32>
    %76 = vector.extract_strided_slice %1 {offsets = [8, 0], sizes = [1, 32], strides = [1, 1]} : vector<12x32xf32> to vector<1x32xf32>
    %77 = vector.shape_cast %75 : vector<16x16xf32> to vector<16x16x1xf32>
    %78 = vector.shape_cast %76 : vector<1x32xf32> to vector<1x1x32xf32>
    %79 = vector.broadcast %77 : vector<16x16x1xf32> to vector<16x16x32xf32>
    %80 = vector.broadcast %78 : vector<1x1x32xf32> to vector<16x16x32xf32>
    %81 = arith.mulf %79, %80 : vector<16x16x32xf32>
    %82 = arith.addf %70, %81 : vector<16x16x32xf32>
    %83 = vector.extract_strided_slice %74 {offsets = [16, 0], sizes = [16, 16], strides = [1, 1]} : vector<64x16xf32> to vector<16x16xf32>
    %84 = vector.extract_strided_slice %1 {offsets = [9, 0], sizes = [1, 32], strides = [1, 1]} : vector<12x32xf32> to vector<1x32xf32>
    %85 = vector.shape_cast %83 : vector<16x16xf32> to vector<16x16x1xf32>
    %86 = vector.shape_cast %84 : vector<1x32xf32> to vector<1x1x32xf32>
    %87 = vector.broadcast %85 : vector<16x16x1xf32> to vector<16x16x32xf32>
    %88 = vector.broadcast %86 : vector<1x1x32xf32> to vector<16x16x32xf32>
    %89 = arith.mulf %87, %88 : vector<16x16x32xf32>
    %90 = arith.addf %82, %89 : vector<16x16x32xf32>
    %91 = vector.extract_strided_slice %74 {offsets = [32, 0], sizes = [16, 16], strides = [1, 1]} : vector<64x16xf32> to vector<16x16xf32>
    %92 = vector.extract_strided_slice %1 {offsets = [10, 0], sizes = [1, 32], strides = [1, 1]} : vector<12x32xf32> to vector<1x32xf32>
    %93 = vector.shape_cast %91 : vector<16x16xf32> to vector<16x16x1xf32>
    %94 = vector.shape_cast %92 : vector<1x32xf32> to vector<1x1x32xf32>
    %95 = vector.broadcast %93 : vector<16x16x1xf32> to vector<16x16x32xf32>
    %96 = vector.broadcast %94 : vector<1x1x32xf32> to vector<16x16x32xf32>
    %97 = arith.mulf %95, %96 : vector<16x16x32xf32>
    %98 = arith.addf %90, %97 : vector<16x16x32xf32>
    %99 = vector.extract_strided_slice %74 {offsets = [48, 0], sizes = [16, 16], strides = [1, 1]} : vector<64x16xf32> to vector<16x16xf32>
    %100 = vector.extract_strided_slice %1 {offsets = [11, 0], sizes = [1, 32], strides = [1, 1]} : vector<12x32xf32> to vector<1x32xf32>
    %101 = vector.shape_cast %99 : vector<16x16xf32> to vector<16x16x1xf32>
    %102 = vector.shape_cast %100 : vector<1x32xf32> to vector<1x1x32xf32>
    %103 = vector.broadcast %101 : vector<16x16x1xf32> to vector<16x16x32xf32>
    %104 = vector.broadcast %102 : vector<1x1x32xf32> to vector<16x16x32xf32>
    %105 = arith.mulf %103, %104 : vector<16x16x32xf32>
    %106 = arith.addf %98, %105 : vector<16x16x32xf32>
    %c0_10 = arith.constant 0 : index
    %c0_11 = arith.constant 0 : index
    %107 = vector.load %arg4[%c0_10, %c0_11] : memref<1x32xf32, #tpu.memory_space<vmem>>, vector<1x32xf32>
    %108 = vector.shape_cast %107 : vector<1x32xf32> to vector<1x1x32xf32>
    %109 = vector.broadcast %108 : vector<1x1x32xf32> to vector<16x16x32xf32>
    %110 = arith.addf %106, %109 : vector<16x16x32xf32>
    %c0_12 = arith.constant 0 : index
    %c0_13 = arith.constant 0 : index
    %c0_14 = arith.constant 0 : index
    %c0_15 = arith.constant 0 : index
    %111 = vector.load %arg6[%c0_12, %c0_13, %c0_14, %c0_15] : memref<1x16x16x32xf32, #tpu.memory_space<vmem>>, vector<1x16x16x32xf32>
    %112 = vector.shape_cast %111 : vector<1x16x16x32xf32> to vector<16x16x32xf32>
    %113 = vector.shape_cast %110 : vector<16x16x32xf32> to vector<1x16x16x32xf32>
    tpu.vector_store %arg6[%c0_12, %c0_13, %c0_14, %c0_15], %113 {strides = array<i32>} : memref<1x16x16x32xf32, #tpu.memory_space<vmem>>, vector<1x16x16x32xf32>,
    return
  }
  func.func @transform_0(%arg0: i32, %arg1: i32) -> (i32, i32) {
    %c0_i32 = arith.constant 0 : i32
    %c0_i32_0 = arith.constant 0 : i32
    %c0_i32_1 = arith.constant 0 : i32
    return %c0_i32, %c0_i32_0 : i32, i32
  }
  func.func @transform_1(%arg0: i32, %arg1: i32) -> (i32, i32) {
    %c0_i32 = arith.constant 0 : i32
    %c0_i32_0 = arith.constant 0 : i32
    %c0_i32_1 = arith.constant 0 : i32
    return %c0_i32, %c0_i32_0 : i32, i32
  }
  func.func @transform_2(%arg0: i32, %arg1: i32) -> (i32, i32) {
    %c0_i32 = arith.constant 0 : i32
    %c0_i32_0 = arith.constant 0 : i32
    %c0_i32_1 = arith.constant 0 : i32
    return %c0_i32, %c0_i32_0 : i32, i32
  }
  func.func @transform_3(%arg0: i32, %arg1: i32) -> (i32, i32, i32, i32) {
    %c0_i32 = arith.constant 0 : i32
    %c0_i32_0 = arith.constant 0 : i32
    %c0_i32_1 = arith.constant 0 : i32
    return %arg0, %c0_i32, %arg1, %c0_i32_0 : i32, i32, i32, i32
  }
  func.func @transform_4(%arg0: i32, %arg1: i32) -> (i32, i32, i32, i32) {
    %c0_i32 = arith.constant 0 : i32
    %c0_i32_0 = arith.constant 0 : i32
    %c0_i32_1 = arith.constant 0 : i32
    return %arg0, %arg1, %c0_i32, %c0_i32_0 : i32, i32, i32, i32
  }
}

</mosaic_0001>

<llo_original>
// kernel: tpu_custom_call.1
$region0: #{tpu_custom_call.1}
  #allocation0 [shape = 'u32[]', space=smem, size = 0x4, offset = 0x4, fixed_abs, tag = 'smem constant byte address 0x4 - core index']
  #allocation1 [shape = 'u32[144,128]{1,0:T(1,128)}', space=vmem, size = 0x12000, scoped, tag = 'internal scratch']
  %s0 = inlined_call_operand.hbm [shape: f32[16,16], index: 0, kind: input, shape index: {}]
  %s1 = inlined_call_operand.hbm [shape: f32[12,32], index: 1, kind: input, shape index: {}]
  %s2 = inlined_call_operand.hbm [shape: f32[1,32], index: 2, kind: input, shape index: {}]
  %s3 = inlined_call_operand.hbm [shape: f32[2,4,16,16], index: 3, kind: input, shape index: {}]
  %s4 = inlined_call_operand.hbm [shape: f32[2,16,16,32], index: 4, kind: output, shape index: {}]
  %s5 = sld [smem:[#allocation0]]
  $region65: #{tpu_custom_call.1} parent=0
    _
  %s7 = ssub.s32 1, %s5
  %s8 = scalar_select 0, %s7, %s5
  $region1: #{tpu_custom_call.1} parent=0
    #allocation2 [shape = 'u8[8192]{0}', space=vmem, size = 0x2000, scoped, tag = 'input window, operand 0, single buffered']
    #allocation3 [shape = 's32[2]{0}', space=sflag, size = 0x8, scoped, tag = 'scoped memory for tpu_custom_call.1']
    #allocation4 [shape = 's32[2]{0}', space=sflag, size = 0x8, scoped, tag = 'scoped memory for tpu_custom_call.1']
    #allocation5 [shape = 'u8[8192]{0}', space=vmem, size = 0x2000, scoped, tag = 'input window, operand 1, single buffered']
    #allocation6 [shape = 's32[1]{0}', space=sflag, size = 0x4, scoped, tag = 'scoped memory for tpu_custom_call.1']
    #allocation7 [shape = 'u8[512]{0}', space=vmem, size = 0x400, scoped, tag = 'input window, operand 2, single buffered']
    #allocation8 [shape = 'u8[65536]{0}', space=vmem, size = 0x10000, scoped, tag = 'input window, operand 3']
    #allocation9 [shape = 's32[2]{0}', space=sflag, size = 0x8, scoped, tag = 'scoped memory for tpu_custom_call.1']
    #allocation10 [shape = 'u8[262144]{0}', space=vmem, size = 0x40000, scoped, tag = 'output window, operand 0']
    %9 = vsyncpa [#allocation3], 0
    %10 = vsyncpa [#allocation6], 0
    %11 = vsyncpa [#allocation9], 0
    %s12 = scalar_lea.sflag [#allocation9], 1
    %13 = vsyncpa %s12, 0
    %14 = vsyncpa [#allocation4], 0
    %s15 = scalar_lea.sflag [#allocation4], 1
    %16 = vsyncpa %s15, 0
    loop: start=0, step=1, limit=4
    $region2: #{tpu_custom_call.1} parent=1 // loop_pre_header
      _
    $region3: #{tpu_custom_call.1} parent=1 // loop_header
      %s18 = sphi 0, %s22
      %p19 = scmp.ge.s32.totalorder %s18, 4
      %s25 = sphi 0, %s37
      %s26 = sphi 0, %s33
      %s27 = sphi 0, %s25
      %s28 = sphi 0, %s26
      %s29 = sphi 0, %s27
      %s30 = sphi 0, %s28
      %s38 = sphi 0, %s38
      %s40 = sphi 0, %s38
      %s41 = sphi 0, %s40
      %s55 = sphi 0, %s41
      %s59 = sphi 0, %s59
      %s61 = sphi 0, %s59
      %s62 = sphi 0, %s61
      %s76 = sphi 0, %s62
      %s80 = sphi 0, %s80
      %s82 = sphi 0, %s80
      %s83 = sphi 0, %s82
      %s97 = sphi 0, %s83
      %s105 = sphi 0, %s107
      %s108 = sphi 0, %s105
      %s109 = sphi 0, %s108
      %s125 = sphi 0, %s109
      %s133 = sphi 0, %s135
      %s136 = sphi 0, %s133
      %s137 = sphi 0, %s136
      %s153 = sphi 0, %s137
    $region4: #{tpu_custom_call.1} parent=1 // loop_header_branch
      %21 = sbr.rel (%p19) target = $region8
    $region5: #{tpu_custom_call.1} parent=1 // loop_body
      %s23 = ssub.s32 %s18, 1
      %s24 = ssub.s32 %s18, 2
      %s31 = sadd.s32 1, %s26
      %p32 = scmp.ge.s32.totalorder %s31, 1
      %s33 = scalar_select %p32, 0, %s31
      %s34 = sadd.s32 1, %s25
      %s35 = scalar_select %p32, %s34, %s25
      %p36 = scmp.ge.s32.totalorder %s35, 2
      %s37 = scalar_select %p36, 0, %s35
      %s39 = sadd.s32 %s38, 1
      %p42 = scmp.eq.s32.totalorder %s18, 1
      %p43 = scmp.ne.s32.totalorder %s38, %s40
      %p44 = scmp.eq.s32.totalorder %s18, 0
      %p45 = por %p43, %p44
      %p46 = scmp.ne.s32.totalorder %s38, %s40
      %p47 = scmp.eq.s32.totalorder %s23, 1
      %p48 = por %p46, %p47
      %p49 = scmp.ne.s32.totalorder %s40, %s41
      %p50 = scmp.eq.s32.totalorder %s23, 0
      %p51 = por %p49, %p50
      %p52 = scmp.ne.s32.totalorder %s40, %s41
      %p53 = scmp.eq.s32.totalorder %s24, 1
      %p54 = por %p52, %p53
      %p56 = scmp.ne.s32.totalorder %s41, %s55
      %p57 = scmp.eq.s32.totalorder %s24, 0
      %p58 = por %p56, %p57
      %s60 = sadd.s32 %s59, 1
      %p63 = scmp.eq.s32.totalorder %s18, 1
      %p64 = scmp.ne.s32.totalorder %s59, %s61
      %p65 = scmp.eq.s32.totalorder %s18, 0
      %p66 = por %p64, %p65
      %p67 = scmp.ne.s32.totalorder %s59, %s61
      %p68 = scmp.eq.s32.totalorder %s23, 1
      %p69 = por %p67, %p68
      %p70 = scmp.ne.s32.totalorder %s61, %s62
      %p71 = scmp.eq.s32.totalorder %s23, 0
      %p72 = por %p70, %p71
      %p73 = scmp.ne.s32.totalorder %s61, %s62
      %p74 = scmp.eq.s32.totalorder %s24, 1
      %p75 = por %p73, %p74
      %p77 = scmp.ne.s32.totalorder %s62, %s76
      %p78 = scmp.eq.s32.totalorder %s24, 0
      %p79 = por %p77, %p78
      %s81 = sadd.s32 %s80, 1
      %p84 = scmp.eq.s32.totalorder %s18, 1
      %p85 = scmp.ne.s32.totalorder %s80, %s82
      %p86 = scmp.eq.s32.totalorder %s18, 0
      %p87 = por %p85, %p86
      %p88 = scmp.ne.s32.totalorder %s80, %s82
      %p89 = scmp.eq.s32.totalorder %s23, 1
      %p90 = por %p88, %p89
      %p91 = scmp.ne.s32.totalorder %s82, %s83
      %p92 = scmp.eq.s32.totalorder %s23, 0
      %p93 = por %p91, %p92
      %p94 = scmp.ne.s32.totalorder %s82, %s83
      %p95 = scmp.eq.s32.totalorder %s24, 1
      %p96 = por %p94, %p95
      %p98 = scmp.ne.s32.totalorder %s83, %s97
      %p99 = scmp.eq.s32.totalorder %s24, 0
      %p100 = por %p98, %p99
      %s101 = ssub.s32 %s25, %s37
      %s102 = ssub.s32 %s26, %s33
      %s103 = sor.u32 %s101, %s102
      %p104 = scmp.eq.s32.totalorder %s103, 0
      %s106 = sadd.s32 %s105, 1
      %s107 = scalar_select %p104, %s105, %s106
      %p110 = pneg %p104
      %p111 = scmp.eq.s32.totalorder %s18, 1
      %p112 = por %p110, %p111
      %p113 = scmp.ne.s32.totalorder %s105, %s108
      %p114 = scmp.eq.s32.totalorder %s18, 0
      %p115 = por %p113, %p114
      %p116 = scmp.ne.s32.totalorder %s105, %s108
      %p117 = scmp.eq.s32.totalorder %s23, 1
      %p118 = por %p116, %p117
      %p119 = scmp.ne.s32.totalorder %s108, %s109
      %p120 = scmp.eq.s32.totalorder %s23, 0
      %p121 = por %p119, %p120
      %p122 = scmp.ne.s32.totalorder %s108, %s109
      %p123 = scmp.eq.s32.totalorder %s24, 1
      %p124 = por %p122, %p123
      %p126 = scmp.ne.s32.totalorder %s109, %s125
      %p127 = scmp.eq.s32.totalorder %s24, 0
      %p128 = por %p126, %p127
      %s129 = ssub.s32 %s25, %s37
      %s130 = ssub.s32 %s26, %s33
      %s131 = sor.u32 %s129, %s130
      %p132 = scmp.eq.s32.totalorder %s131, 0
      %s134 = sadd.s32 %s133, 1
      %s135 = scalar_select %p132, %s133, %s134
      %p138 = pneg %p132
      %p139 = scmp.eq.s32.totalorder %s18, 1
      %p140 = por %p138, %p139
      %p141 = scmp.ne.s32.totalorder %s133, %s136
      %p142 = scmp.eq.s32.totalorder %s18, 0
      %p143 = por %p141, %p142
      %p144 = scmp.ne.s32.totalorder %s133, %s136
      %p145 = scmp.eq.s32.totalorder %s23, 1
      %p146 = por %p144, %p145
      %p147 = scmp.ne.s32.totalorder %s136, %s137
      %p148 = scmp.eq.s32.totalorder %s23, 0
      %p149 = por %p147, %p148
      %p150 = scmp.ne.s32.totalorder %s136, %s137
      %p151 = scmp.eq.s32.totalorder %s24, 1
      %p152 = por %p150, %p151
      %p154 = scmp.ne.s32.totalorder %s137, %s153
      %p155 = scmp.eq.s32.totalorder %s24, 0
      %p156 = por %p154, %p155
      %p157 = scmp.le.s32.totalorder 1, %s18
      %p158 = scmp.lt.s32.totalorder %s18, 3
      %p159 = pnand %p157, %p158
      %p160 = pneg %p159
      // Predicated region
      $region9: #{tpu_custom_call.1} parent=5 // pred_check
        _
      $region10: #{tpu_custom_call.1} parent=5 // pred_check_branch
        %162 = sbr.rel (%p159) target = $region12
      $region11: #{tpu_custom_call.1} parent=5 // pred_region
        %s163 = ssub.s32 %s18, 1
        // Predicated region
        $region13: #{tpu_custom_call.1} parent=11 // pred_check
          %p164 = pneg %p51
        $region14: #{tpu_custom_call.1} parent=11 // pred_check_branch
          %166 = sbr.rel (%p164) target = $region16
        $region15: #{tpu_custom_call.1} parent=11 // pred_region
          %s168 = ssub.s32 256, 256
          %169 = vsyncadd [#allocation3], %s168
          %s170 = sshll.u32 [#allocation2], 4
          %s171 = int_to_ptr.vmem [resolvable:$true] %s170
          %176 = dma.hbm_to_vmem [thread:$0]  %s0, 256, %s171, [#allocation3], 128, 128, 8
        $region16: #{tpu_custom_call.1} parent=11 // pred_fallthru
          _
        // Predicated region
        $region17: #{tpu_custom_call.1} parent=11 // pred_check
          %p177 = pneg %p72
        $region18: #{tpu_custom_call.1} parent=11 // pred_check_branch
          %179 = sbr.rel (%p177) target = $region20
        $region19: #{tpu_custom_call.1} parent=11 // pred_region
          %s181 = ssub.s32 256, 256
          %182 = vsyncadd [#allocation6], %s181
          %s183 = sshll.u32 [#allocation5], 4
          %s184 = int_to_ptr.vmem [resolvable:$true] %s183
          %189 = dma.hbm_to_vmem [thread:$0]  %s1, 256, %s184, [#allocation6], 128, 128, 8
        $region20: #{tpu_custom_call.1} parent=11 // pred_fallthru
          _
        // Predicated region
        $region21: #{tpu_custom_call.1} parent=11 // pred_check
          %p190 = pneg %p93
        $region22: #{tpu_custom_call.1} parent=11 // pred_check_branch
          %192 = sbr.rel (%p190) target = $region24
        $region23: #{tpu_custom_call.1} parent=11 // pred_region
          %s194 = ssub.s32 16, 16
          %195 = vsyncadd [#allocation6], %s194
          %s197 = sshll.u32 [#allocation7], 4
          %s198 = int_to_ptr.vmem [resolvable:$true] %s197
          %200 = dma.hbm_to_vmem [thread:$0]  %s2, 16, %s198, [#allocation6]
        $region24: #{tpu_custom_call.1} parent=11 // pred_fallthru
          _
      $region12: #{tpu_custom_call.1} parent=5 // pred_fallthru
        _
      %p201 = scmp.lt.s32.totalorder %s18, 2
      // Predicated region
      $region25: #{tpu_custom_call.1} parent=5 // pred_check
        %p202 = pneg %p201
      $region26: #{tpu_custom_call.1} parent=5 // pred_check_branch
        %204 = sbr.rel (%p202) target = $region28
      $region27: #{tpu_custom_call.1} parent=5 // pred_region
        // Predicated region
        $region29: #{tpu_custom_call.1} parent=27 // pred_check
          %p205 = pneg %p115
        $region30: #{tpu_custom_call.1} parent=27 // pred_check_branch
          %207 = sbr.rel (%p205) target = $region32
        $region31: #{tpu_custom_call.1} parent=27 // pred_region
          %s208 = sand.u32 %s105, 1
          %s209 = scalar_lea.sflag [#allocation9], %s208
          %s210 = sand.u32 %s105, 1
          %s211 = smul.addr %s210, 64
          %s212 = scalar_lea.vmem [#allocation8], %s211
          %s213 = smul.u32 2, %s26
          %s215 = ssub.s32 1024, 1024
          %216 = vsyncadd %s209, %s215
          %s217 = smul.addr %s25, 8
          %s218 = sadd.s32 %s213, %s217
          %s219 = smul.addr %s218, 128
          %s220 = scalar_lea.hbm %s3, %s219
          %s221 = sshll.u32 %s212, 4
          %s222 = int_to_ptr.vmem [resolvable:$true] %s221
          %227 = dma.hbm_to_vmem [thread:$0]  %s220, 1024, %s222, %s209, 128, 128, 8
        $region32: #{tpu_custom_call.1} parent=27 // pred_fallthru
          _
      $region28: #{tpu_custom_call.1} parent=5 // pred_fallthru
        _
      %p228 = scmp.le.s32.totalorder 1, %s18
      %p229 = scmp.lt.s32.totalorder %s18, 3
      %p230 = pnand %p228, %p229
      %p231 = pneg %p230
      // Predicated region
      $region33: #{tpu_custom_call.1} parent=5 // pred_check
        _
      $region34: #{tpu_custom_call.1} parent=5 // pred_check_branch
        %233 = sbr.rel (%p230) target = $region36
      $region35: #{tpu_custom_call.1} parent=5 // pred_region
        %s234 = ssub.s32 %s18, 1
        // Predicated region
        $region37: #{tpu_custom_call.1} parent=35 // pred_check
          %p235 = pneg %p51
        $region38: #{tpu_custom_call.1} parent=35 // pred_check_branch
          %237 = sbr.rel (%p235) target = $region40
        $region39: #{tpu_custom_call.1} parent=35 // pred_region
          %238 = dma.done [#allocation3], 256
        $region40: #{tpu_custom_call.1} parent=35 // pred_fallthru
          _
        // Predicated region
        $region41: #{tpu_custom_call.1} parent=35 // pred_check
          %p239 = pneg %p72
        $region42: #{tpu_custom_call.1} parent=35 // pred_check_branch
          %241 = sbr.rel (%p239) target = $region44
        $region43: #{tpu_custom_call.1} parent=35 // pred_region
          %242 = dma.done [#allocation6], 256
        $region44: #{tpu_custom_call.1} parent=35 // pred_fallthru
          _
        // Predicated region
        $region45: #{tpu_custom_call.1} parent=35 // pred_check
          %p243 = pneg %p93
        $region46: #{tpu_custom_call.1} parent=35 // pred_check_branch
          %245 = sbr.rel (%p243) target = $region48
        $region47: #{tpu_custom_call.1} parent=35 // pred_region
          %246 = dma.done [#allocation6], 16
        $region48: #{tpu_custom_call.1} parent=35 // pred_fallthru
          _
        %s247 = sand.u32 %s108, 1
        %s248 = scalar_lea.sflag [#allocation9], %s247
        %s249 = sand.u32 %s108, 1
        %s250 = smul.addr %s249, 64
        %s251 = scalar_lea.vmem [#allocation8], %s250
        // Predicated region
        $region49: #{tpu_custom_call.1} parent=35 // pred_check
          %p252 = pneg %p121
        $region50: #{tpu_custom_call.1} parent=35 // pred_check_branch
          %254 = sbr.rel (%p252) target = $region52
        $region51: #{tpu_custom_call.1} parent=35 // pred_region
          %255 = dma.done %s248, 1024
        $region52: #{tpu_custom_call.1} parent=35 // pred_fallthru
          _
        %p256 = pneg %p51
        %p257 = pneg %p48
        %p258 = pneg %p72
        %p259 = pneg %p69
        %p260 = pneg %p93
        %p261 = pneg %p90
        %s262 = sand.u32 %s108, 1
        %s263 = scalar_lea.sflag [#allocation9], %s262
        %s264 = sand.u32 %s108, 1
        %s265 = smul.addr %s264, 64
        %s266 = scalar_lea.vmem [#allocation8], %s265
        %p267 = pneg %p121
        %p268 = pneg %p118
        %p269 = pneg %p149
        %p270 = pneg %p146
        %s271 = sand.u32 %s136, 1
        %s272 = scalar_lea.sflag [#allocation4], %s271
        %s273 = sand.u32 %s136, 1
        %s274 = smul.addr %s273, 256
        %s275 = scalar_lea.vmem [#allocation10], %s274
        %s276 = smul.u32 2, %s28
        %s277 = smul.u32 16, %s28
        %v278 = vld [vmem:[#allocation2] sm:$0xff]
        %v279 = vld [vmem:[#allocation2 + $0x8] sm:$0xff]
        %v280 = vld [vmem:[#allocation5] sm:$0xff]
        %v281 = vld [vmem:[#allocation5 + $0x8] sm:$0xf]
        %v282 = vld [vmem:[%s251] sm:$0xff]
        %v283 = vld [vmem:[%s251 + $0x8] sm:$0xff]
        %v284 = vld [vmem:[%s251 + $0x10] sm:$0xff]
        %v285 = vld [vmem:[%s251 + $0x18] sm:$0xff]
        %v286 = vld [vmem:[%s251 + $0x20] sm:$0xff]
        %v287 = vld [vmem:[%s251 + $0x28] sm:$0xff]
        %v288 = vld [vmem:[%s251 + $0x30] sm:$0xff]
        %v289 = vld [vmem:[%s251 + $0x38] sm:$0xff]
        %v290 = vlaneseq
        %v291 = vshrl.u32 %v290, 7
        %v292 = vsub.s32 0, %v291
        %v293 = vrot.slane %v282, %v292
        %295 = vbcast.lane.b32.xlu0 %v293, 256
        %v296 = vpop.permute.xlu0 %295
        %s298 = sor.u32 256, 8
        %299 = vbcast.lane.b32.xlu0 %v293, %s298
        %v300 = vpop.permute.xlu0 %299
        %v301 = vlaneseq
        %v302 = vshrl.u32 %v301, 7
        %v303 = vsub.s32 1, %v302
        %v304 = vrot.slane %v282, %v303
        %306 = vbcast.lane.b32.xlu0 %v304, 256
        %v307 = vpop.permute.xlu0 %306
        %s309 = sor.u32 256, 8
        %310 = vbcast.lane.b32.xlu0 %v304, %s309
        %v311 = vpop.permute.xlu0 %310
        %v312 = vlaneseq
        %v313 = vshrl.u32 %v312, 7
        %v314 = vsub.s32 2, %v313
        %v315 = vrot.slane %v282, %v314
        %317 = vbcast.lane.b32.xlu0 %v315, 256
        %v318 = vpop.permute.xlu0 %317
        %s320 = sor.u32 256, 8
        %321 = vbcast.lane.b32.xlu0 %v315, %s320
        %v322 = vpop.permute.xlu0 %321
        %v323 = vlaneseq
        %v324 = vshrl.u32 %v323, 7
        %v325 = vsub.s32 3, %v324
        %v326 = vrot.slane %v282, %v325
        %328 = vbcast.lane.b32.xlu0 %v326, 256
        %v329 = vpop.permute.xlu0 %328
        %s331 = sor.u32 256, 8
        %332 = vbcast.lane.b32.xlu0 %v326, %s331
        %v333 = vpop.permute.xlu0 %332
        %v334 = vlaneseq
        %v335 = vshrl.u32 %v334, 7
        %v336 = vsub.s32 4, %v335
        %v337 = vrot.slane %v282, %v336
        %339 = vbcast.lane.b32.xlu0 %v337, 256
        %v340 = vpop.permute.xlu0 %339
        %s342 = sor.u32 256, 8
        %343 = vbcast.lane.b32.xlu0 %v337, %s342
        %v344 = vpop.permute.xlu0 %343
        %v345 = vlaneseq
        %v346 = vshrl.u32 %v345, 7
        %v347 = vsub.s32 5, %v346
        %v348 = vrot.slane %v282, %v347
        %350 = vbcast.lane.b32.xlu0 %v348, 256
        %v351 = vpop.permute.xlu0 %350
        %s353 = sor.u32 256, 8
        %354 = vbcast.lane.b32.xlu0 %v348, %s353
        %v355 = vpop.permute.xlu0 %354
        %v356 = vlaneseq
        %v357 = vshrl.u32 %v356, 7
        %v358 = vsub.s32 6, %v357
        %v359 = vrot.slane %v282, %v358
        %361 = vbcast.lane.b32.xlu0 %v359, 256
        %v362 = vpop.permute.xlu0 %361
        %s364 = sor.u32 256, 8
        %365 = vbcast.lane.b32.xlu0 %v359, %s364
        %v366 = vpop.permute.xlu0 %365
        %v367 = vlaneseq
        %v368 = vshrl.u32 %v367, 7
        %v369 = vsub.s32 7, %v368
        %v370 = vrot.slane %v282, %v369
        %372 = vbcast.lane.b32.xlu0 %v370, 256
        %v373 = vpop.permute.xlu0 %372
        %s375 = sor.u32 256, 8
        %376 = vbcast.lane.b32.xlu0 %v370, %s375
        %v377 = vpop.permute.xlu0 %376
        %v378 = vlaneseq
        %v379 = vshrl.u32 %v378, 7
        %v380 = vsub.s32 0, %v379
        %v381 = vrot.slane %v283, %v380
        %383 = vbcast.lane.b32.xlu0 %v381, 256
        %v384 = vpop.permute.xlu0 %383
        %s386 = sor.u32 256, 8
        %387 = vbcast.lane.b32.xlu0 %v381, %s386
        %v388 = vpop.permute.xlu0 %387
        %v389 = vlaneseq
        %v390 = vshrl.u32 %v389, 7
        %v391 = vsub.s32 1, %v390
        %v392 = vrot.slane %v283, %v391
        %394 = vbcast.lane.b32.xlu0 %v392, 256
        %v395 = vpop.permute.xlu0 %394
        %s397 = sor.u32 256, 8
        %398 = vbcast.lane.b32.xlu0 %v392, %s397
        %v399 = vpop.permute.xlu0 %398
        %v400 = vlaneseq
        %v401 = vshrl.u32 %v400, 7
        %v402 = vsub.s32 2, %v401
        %v403 = vrot.slane %v283, %v402
        %405 = vbcast.lane.b32.xlu0 %v403, 256
        %v406 = vpop.permute.xlu0 %405
        %s408 = sor.u32 256, 8
        %409 = vbcast.lane.b32.xlu0 %v403, %s408
        %v410 = vpop.permute.xlu0 %409
        %v411 = vlaneseq
        %v412 = vshrl.u32 %v411, 7
        %v413 = vsub.s32 3, %v412
        %v414 = vrot.slane %v283, %v413
        %416 = vbcast.lane.b32.xlu0 %v414, 256
        %v417 = vpop.permute.xlu0 %416
        %s419 = sor.u32 256, 8
        %420 = vbcast.lane.b32.xlu0 %v414, %s419
        %v421 = vpop.permute.xlu0 %420
        %v422 = vlaneseq
        %v423 = vshrl.u32 %v422, 7
        %v424 = vsub.s32 4, %v423
        %v425 = vrot.slane %v283, %v424
        %427 = vbcast.lane.b32.xlu0 %v425, 256
        %v428 = vpop.permute.xlu0 %427
        %s430 = sor.u32 256, 8
        %431 = vbcast.lane.b32.xlu0 %v425, %s430
        %v432 = vpop.permute.xlu0 %431
        %v433 = vlaneseq
        %v434 = vshrl.u32 %v433, 7
        %v435 = vsub.s32 5, %v434
        %v436 = vrot.slane %v283, %v435
        %438 = vbcast.lane.b32.xlu0 %v436, 256
        %v439 = vpop.permute.xlu0 %438
        %s441 = sor.u32 256, 8
        %442 = vbcast.lane.b32.xlu0 %v436, %s441
        %v443 = vpop.permute.xlu0 %442
        %v444 = vlaneseq
        %v445 = vshrl.u32 %v444, 7
        %v446 = vsub.s32 6, %v445
        %v447 = vrot.slane %v283, %v446
        %449 = vbcast.lane.b32.xlu0 %v447, 256
        %v450 = vpop.permute.xlu0 %449
        %s452 = sor.u32 256, 8
        %453 = vbcast.lane.b32.xlu0 %v447, %s452
        %v454 = vpop.permute.xlu0 %453
        %v455 = vlaneseq
        %v456 = vshrl.u32 %v455, 7
        %v457 = vsub.s32 7, %v456
        %v458 = vrot.slane %v283, %v457
        %460 = vbcast.lane.b32.xlu0 %v458, 256
        %v461 = vpop.permute.xlu0 %460
        %s463 = sor.u32 256, 8
        %464 = vbcast.lane.b32.xlu0 %v458, %s463
        %v465 = vpop.permute.xlu0 %464
        %v466 = vlaneseq
        %v467 = vshrl.u32 %v466, 7
        %v468 = vsub.s32 0, %v467
        %v469 = vrot.slane %v280, %v468
        %v470 = vmul.f32 %v296, %v469
        %v471 = vmul.f32 %v300, %v469
        %v472 = vmul.f32 %v307, %v469
        %v473 = vmul.f32 %v311, %v469
        %v474 = vmul.f32 %v318, %v469
        %v475 = vmul.f32 %v322, %v469
        %v476 = vmul.f32 %v329, %v469
        %v477 = vmul.f32 %v333, %v469
        %v478 = vmul.f32 %v340, %v469
        %v479 = vmul.f32 %v344, %v469
        %v480 = vmul.f32 %v351, %v469
        %v481 = vmul.f32 %v355, %v469
        %v482 = vmul.f32 %v362, %v469
        %v483 = vmul.f32 %v366, %v469
        %v484 = vmul.f32 %v373, %v469
        %v485 = vmul.f32 %v377, %v469
        %v486 = vmul.f32 %v384, %v469
        %v487 = vmul.f32 %v388, %v469
        %v488 = vmul.f32 %v395, %v469
        %v489 = vmul.f32 %v399, %v469
        %v490 = vmul.f32 %v406, %v469
        %v491 = vmul.f32 %v410, %v469
        %v492 = vmul.f32 %v417, %v469
        %v493 = vmul.f32 %v421, %v469
        %v494 = vmul.f32 %v428, %v469
        %v495 = vmul.f32 %v432, %v469
        %v496 = vmul.f32 %v439, %v469
        %v497 = vmul.f32 %v443, %v469
        %v498 = vmul.f32 %v450, %v469
        %v499 = vmul.f32 %v454, %v469
        %v500 = vmul.f32 %v461, %v469
        %v501 = vmul.f32 %v465, %v469
        %v502 = vadd.f32 %v470, 0.0
        %v503 = vadd.f32 %v471, 0.0
        %v504 = vadd.f32 %v472, 0.0
        %v505 = vadd.f32 %v473, 0.0
        %v506 = vadd.f32 %v474, 0.0
        %v507 = vadd.f32 %v475, 0.0
        %v508 = vadd.f32 %v476, 0.0
        %v509 = vadd.f32 %v477, 0.0
        %v510 = vadd.f32 %v478, 0.0
        %v511 = vadd.f32 %v479, 0.0
        %v512 = vadd.f32 %v480, 0.0
        %v513 = vadd.f32 %v481, 0.0
        %v514 = vadd.f32 %v482, 0.0
        %v515 = vadd.f32 %v483, 0.0
        %v516 = vadd.f32 %v484, 0.0
        %v517 = vadd.f32 %v485, 0.0
        %v518 = vadd.f32 %v486, 0.0
        %v519 = vadd.f32 %v487, 0.0
        %v520 = vadd.f32 %v488, 0.0
        %v521 = vadd.f32 %v489, 0.0
        %v522 = vadd.f32 %v490, 0.0
        %v523 = vadd.f32 %v491, 0.0
        %v524 = vadd.f32 %v492, 0.0
        %v525 = vadd.f32 %v493, 0.0
        %v526 = vadd.f32 %v494, 0.0
        %v527 = vadd.f32 %v495, 0.0
        %v528 = vadd.f32 %v496, 0.0
        %v529 = vadd.f32 %v497, 0.0
        %v530 = vadd.f32 %v498, 0.0
        %v531 = vadd.f32 %v499, 0.0
        %v532 = vadd.f32 %v500, 0.0
        %v533 = vadd.f32 %v501, 0.0
        %v534 = vlaneseq
        %v535 = vshrl.u32 %v534, 7
        %v536 = vsub.s32 0, %v535
        %v537 = vrot.slane %v284, %v536
        %539 = vbcast.lane.b32.xlu0 %v537, 256
        %v540 = vpop.permute.xlu0 %539
        %s542 = sor.u32 256, 8
        %543 = vbcast.lane.b32.xlu0 %v537, %s542
        %v544 = vpop.permute.xlu0 %543
        %v545 = vlaneseq
        %v546 = vshrl.u32 %v545, 7
        %v547 = vsub.s32 1, %v546
        %v548 = vrot.slane %v284, %v547
        %550 = vbcast.lane.b32.xlu0 %v548, 256
        %v551 = vpop.permute.xlu0 %550
        %s553 = sor.u32 256, 8
        %554 = vbcast.lane.b32.xlu0 %v548, %s553
        %v555 = vpop.permute.xlu0 %554
        %v556 = vlaneseq
        %v557 = vshrl.u32 %v556, 7
        %v558 = vsub.s32 2, %v557
        %v559 = vrot.slane %v284, %v558
        %561 = vbcast.lane.b32.xlu0 %v559, 256
        %v562 = vpop.permute.xlu0 %561
        %s564 = sor.u32 256, 8
        %565 = vbcast.lane.b32.xlu0 %v559, %s564
        %v566 = vpop.permute.xlu0 %565
        %v567 = vlaneseq
        %v568 = vshrl.u32 %v567, 7
        %v569 = vsub.s32 3, %v568
        %v570 = vrot.slane %v284, %v569
        %572 = vbcast.lane.b32.xlu0 %v570, 256
        %v573 = vpop.permute.xlu0 %572
        %s575 = sor.u32 256, 8
        %576 = vbcast.lane.b32.xlu0 %v570, %s575
        %v577 = vpop.permute.xlu0 %576
        %v578 = vlaneseq
        %v579 = vshrl.u32 %v578, 7
        %v580 = vsub.s32 4, %v579
        %v581 = vrot.slane %v284, %v580
        %583 = vbcast.lane.b32.xlu0 %v581, 256
        %v584 = vpop.permute.xlu0 %583
        %s586 = sor.u32 256, 8
        %587 = vbcast.lane.b32.xlu0 %v581, %s586
        %v588 = vpop.permute.xlu0 %587
        %v589 = vlaneseq
        %v590 = vshrl.u32 %v589, 7
        %v591 = vsub.s32 5, %v590
        %v592 = vrot.slane %v284, %v591
        %594 = vbcast.lane.b32.xlu0 %v592, 256
        %v595 = vpop.permute.xlu0 %594
        %s597 = sor.u32 256, 8
        %598 = vbcast.lane.b32.xlu0 %v592, %s597
        %v599 = vpop.permute.xlu0 %598
        %v600 = vlaneseq
        %v601 = vshrl.u32 %v600, 7
        %v602 = vsub.s32 6, %v601
        %v603 = vrot.slane %v284, %v602
        %605 = vbcast.lane.b32.xlu0 %v603, 256
        %v606 = vpop.permute.xlu0 %605
        %s608 = sor.u32 256, 8
        %609 = vbcast.lane.b32.xlu0 %v603, %s608
        %v610 = vpop.permute.xlu0 %609
        %v611 = vlaneseq
        %v612 = vshrl.u32 %v611, 7
        %v613 = vsub.s32 7, %v612
        %v614 = vrot.slane %v284, %v613
        %616 = vbcast.lane.b32.xlu0 %v614, 256
        %v617 = vpop.permute.xlu0 %616
        %s619 = sor.u32 256, 8
        %620 = vbcast.lane.b32.xlu0 %v614, %s619
        %v621 = vpop.permute.xlu0 %620
        %v622 = vlaneseq
        %v623 = vshrl.u32 %v622, 7
        %v624 = vsub.s32 0, %v623
        %v625 = vrot.slane %v285, %v624
        %627 = vbcast.lane.b32.xlu0 %v625, 256
        %v628 = vpop.permute.xlu0 %627
        %s630 = sor.u32 256, 8
        %631 = vbcast.lane.b32.xlu0 %v625, %s630
        %v632 = vpop.permute.xlu0 %631
        %v633 = vlaneseq
        %v634 = vshrl.u32 %v633, 7
        %v635 = vsub.s32 1, %v634
        %v636 = vrot.slane %v285, %v635
        %638 = vbcast.lane.b32.xlu0 %v636, 256
        %v639 = vpop.permute.xlu0 %638
        %s641 = sor.u32 256, 8
        %642 = vbcast.lane.b32.xlu0 %v636, %s641
        %v643 = vpop.permute.xlu0 %642
        %v644 = vlaneseq
        %v645 = vshrl.u32 %v644, 7
        %v646 = vsub.s32 2, %v645
        %v647 = vrot.slane %v285, %v646
        %649 = vbcast.lane.b32.xlu0 %v647, 256
        %v650 = vpop.permute.xlu0 %649
        %s652 = sor.u32 256, 8
        %653 = vbcast.lane.b32.xlu0 %v647, %s652
        %v654 = vpop.permute.xlu0 %653
        %v655 = vlaneseq
        %v656 = vshrl.u32 %v655, 7
        %v657 = vsub.s32 3, %v656
        %v658 = vrot.slane %v285, %v657
        %660 = vbcast.lane.b32.xlu0 %v658, 256
        %v661 = vpop.permute.xlu0 %660
        %s663 = sor.u32 256, 8
        %664 = vbcast.lane.b32.xlu0 %v658, %s663
        %v665 = vpop.permute.xlu0 %664
        %v666 = vlaneseq
        %v667 = vshrl.u32 %v666, 7
        %v668 = vsub.s32 4, %v667
        %v669 = vrot.slane %v285, %v668
        %671 = vbcast.lane.b32.xlu0 %v669, 256
        %v672 = vpop.permute.xlu0 %671
        %s674 = sor.u32 256, 8
        %675 = vbcast.lane.b32.xlu0 %v669, %s674
        %v676 = vpop.permute.xlu0 %675
        %v677 = vlaneseq
        %v678 = vshrl.u32 %v677, 7
        %v679 = vsub.s32 5, %v678
        %v680 = vrot.slane %v285, %v679
        %682 = vbcast.lane.b32.xlu0 %v680, 256
        %v683 = vpop.permute.xlu0 %682
        %s685 = sor.u32 256, 8
        %686 = vbcast.lane.b32.xlu0 %v680, %s685
        %v687 = vpop.permute.xlu0 %686
        %v688 = vlaneseq
        %v689 = vshrl.u32 %v688, 7
        %v690 = vsub.s32 6, %v689
        %v691 = vrot.slane %v285, %v690
        %693 = vbcast.lane.b32.xlu0 %v691, 256
        %v694 = vpop.permute.xlu0 %693
        %s696 = sor.u32 256, 8
        %697 = vbcast.lane.b32.xlu0 %v691, %s696
        %v698 = vpop.permute.xlu0 %697
        %v699 = vlaneseq
        %v700 = vshrl.u32 %v699, 7
        %v701 = vsub.s32 7, %v700
        %v702 = vrot.slane %v285, %v701
        %704 = vbcast.lane.b32.xlu0 %v702, 256
        %v705 = vpop.permute.xlu0 %704
        %s707 = sor.u32 256, 8
        %708 = vbcast.lane.b32.xlu0 %v702, %s707
        %v709 = vpop.permute.xlu0 %708
        %v710 = vlaneseq
        %v711 = vshrl.u32 %v710, 7
        %v712 = vsub.s32 1, %v711
        %v713 = vrot.slane %v280, %v712
        %v714 = vmul.f32 %v540, %v713
        %v715 = vmul.f32 %v544, %v713
        %v716 = vmul.f32 %v551, %v713
        %v717 = vmul.f32 %v555, %v713
        %v718 = vmul.f32 %v562, %v713
        %v719 = vmul.f32 %v566, %v713
        %v720 = vmul.f32 %v573, %v713
        %v721 = vmul.f32 %v577, %v713
        %v722 = vmul.f32 %v584, %v713
        %v723 = vmul.f32 %v588, %v713
        %v724 = vmul.f32 %v595, %v713
        %v725 = vmul.f32 %v599, %v713
        %v726 = vmul.f32 %v606, %v713
        %v727 = vmul.f32 %v610, %v713
        %v728 = vmul.f32 %v617, %v713
        %v729 = vmul.f32 %v621, %v713
        %v730 = vmul.f32 %v628, %v713
        %v731 = vmul.f32 %v632, %v713
        %v732 = vmul.f32 %v639, %v713
        %v733 = vmul.f32 %v643, %v713
        %v734 = vmul.f32 %v650, %v713
        %v735 = vmul.f32 %v654, %v713
        %v736 = vmul.f32 %v661, %v713
        %v737 = vmul.f32 %v665, %v713
        %v738 = vmul.f32 %v672, %v713
        %v739 = vmul.f32 %v676, %v713
        %v740 = vmul.f32 %v683, %v713
        %v741 = vmul.f32 %v687, %v713
        %v742 = vmul.f32 %v694, %v713
        %v743 = vmul.f32 %v698, %v713
        %v744 = vmul.f32 %v705, %v713
        %v745 = vmul.f32 %v709, %v713
        %v746 = vadd.f32 %v502, %v714
        %v747 = vadd.f32 %v503, %v715
        %v748 = vadd.f32 %v504, %v716
        %v749 = vadd.f32 %v505, %v717
        %v750 = vadd.f32 %v506, %v718
        %v751 = vadd.f32 %v507, %v719
        %v752 = vadd.f32 %v508, %v720
        %v753 = vadd.f32 %v509, %v721
        %v754 = vadd.f32 %v510, %v722
        %v755 = vadd.f32 %v511, %v723
        %v756 = vadd.f32 %v512, %v724
        %v757 = vadd.f32 %v513, %v725
        %v758 = vadd.f32 %v514, %v726
        %v759 = vadd.f32 %v515, %v727
        %v760 = vadd.f32 %v516, %v728
        %v761 = vadd.f32 %v517, %v729
        %v762 = vadd.f32 %v518, %v730
        %v763 = vadd.f32 %v519, %v731
        %v764 = vadd.f32 %v520, %v732
        %v765 = vadd.f32 %v521, %v733
        %v766 = vadd.f32 %v522, %v734
        %v767 = vadd.f32 %v523, %v735
        %v768 = vadd.f32 %v524, %v736
        %v769 = vadd.f32 %v525, %v737
        %v770 = vadd.f32 %v526, %v738
        %v771 = vadd.f32 %v527, %v739
        %v772 = vadd.f32 %v528, %v740
        %v773 = vadd.f32 %v529, %v741
        %v774 = vadd.f32 %v530, %v742
        %v775 = vadd.f32 %v531, %v743
        %v776 = vadd.f32 %v532, %v744
        %v777 = vadd.f32 %v533, %v745
        %v778 = vlaneseq
        %v779 = vshrl.u32 %v778, 7
        %v780 = vsub.s32 0, %v779
        %v781 = vrot.slane %v286, %v780
        %783 = vbcast.lane.b32.xlu0 %v781, 256
        %v784 = vpop.permute.xlu0 %783
        %s786 = sor.u32 256, 8
        %787 = vbcast.lane.b32.xlu0 %v781, %s786
        %v788 = vpop.permute.xlu0 %787
        %v789 = vlaneseq
        %v790 = vshrl.u32 %v789, 7
        %v791 = vsub.s32 1, %v790
        %v792 = vrot.slane %v286, %v791
        %794 = vbcast.lane.b32.xlu0 %v792, 256
        %v795 = vpop.permute.xlu0 %794
        %s797 = sor.u32 256, 8
        %798 = vbcast.lane.b32.xlu0 %v792, %s797
        %v799 = vpop.permute.xlu0 %798
        %v800 = vlaneseq
        %v801 = vshrl.u32 %v800, 7
        %v802 = vsub.s32 2, %v801
        %v803 = vrot.slane %v286, %v802
        %805 = vbcast.lane.b32.xlu0 %v803, 256
        %v806 = vpop.permute.xlu0 %805
        %s808 = sor.u32 256, 8
        %809 = vbcast.lane.b32.xlu0 %v803, %s808
        %v810 = vpop.permute.xlu0 %809
        %v811 = vlaneseq
        %v812 = vshrl.u32 %v811, 7
        %v813 = vsub.s32 3, %v812
        %v814 = vrot.slane %v286, %v813
        %816 = vbcast.lane.b32.xlu0 %v814, 256
        %v817 = vpop.permute.xlu0 %816
        %s819 = sor.u32 256, 8
        %820 = vbcast.lane.b32.xlu0 %v814, %s819
        %v821 = vpop.permute.xlu0 %820
        %v822 = vlaneseq
        %v823 = vshrl.u32 %v822, 7
        %v824 = vsub.s32 4, %v823
        %v825 = vrot.slane %v286, %v824
        %827 = vbcast.lane.b32.xlu0 %v825, 256
        %v828 = vpop.permute.xlu0 %827
        %s830 = sor.u32 256, 8
        %831 = vbcast.lane.b32.xlu0 %v825, %s830
        %v832 = vpop.permute.xlu0 %831
        %v833 = vlaneseq
        %v834 = vshrl.u32 %v833, 7
        %v835 = vsub.s32 5, %v834
        %v836 = vrot.slane %v286, %v835
        %838 = vbcast.lane.b32.xlu0 %v836, 256
        %v839 = vpop.permute.xlu0 %838
        %s841 = sor.u32 256, 8
        %842 = vbcast.lane.b32.xlu0 %v836, %s841
        %v843 = vpop.permute.xlu0 %842
        %v844 = vlaneseq
        %v845 = vshrl.u32 %v844, 7
        %v846 = vsub.s32 6, %v845
        %v847 = vrot.slane %v286, %v846
        %849 = vbcast.lane.b32.xlu0 %v847, 256
        %v850 = vpop.permute.xlu0 %849
        %s852 = sor.u32 256, 8
        %853 = vbcast.lane.b32.xlu0 %v847, %s852
        %v854 = vpop.permute.xlu0 %853
        %v855 = vlaneseq
        %v856 = vshrl.u32 %v855, 7
        %v857 = vsub.s32 7, %v856
        %v858 = vrot.slane %v286, %v857
        %860 = vbcast.lane.b32.xlu0 %v858, 256
        %v861 = vpop.permute.xlu0 %860
        %s863 = sor.u32 256, 8
        %864 = vbcast.lane.b32.xlu0 %v858, %s863
        %v865 = vpop.permute.xlu0 %864
        %v866 = vlaneseq
        %v867 = vshrl.u32 %v866, 7
        %v868 = vsub.s32 0, %v867
        %v869 = vrot.slane %v287, %v868
        %871 = vbcast.lane.b32.xlu0 %v869, 256
        %v872 = vpop.permute.xlu0 %871
        %s874 = sor.u32 256, 8
        %875 = vbcast.lane.b32.xlu0 %v869, %s874
        %v876 = vpop.permute.xlu0 %875
        %v877 = vlaneseq
        %v878 = vshrl.u32 %v877, 7
        %v879 = vsub.s32 1, %v878
        %v880 = vrot.slane %v287, %v879
        %882 = vbcast.lane.b32.xlu0 %v880, 256
        %v883 = vpop.permute.xlu0 %882
        %s885 = sor.u32 256, 8
        %886 = vbcast.lane.b32.xlu0 %v880, %s885
        %v887 = vpop.permute.xlu0 %886
        %v888 = vlaneseq
        %v889 = vshrl.u32 %v888, 7
        %v890 = vsub.s32 2, %v889
        %v891 = vrot.slane %v287, %v890
        %893 = vbcast.lane.b32.xlu0 %v891, 256
        %v894 = vpop.permute.xlu0 %893
        %s896 = sor.u32 256, 8
        %897 = vbcast.lane.b32.xlu0 %v891, %s896
        %v898 = vpop.permute.xlu0 %897
        %v899 = vlaneseq
        %v900 = vshrl.u32 %v899, 7
        %v901 = vsub.s32 3, %v900
        %v902 = vrot.slane %v287, %v901
        %904 = vbcast.lane.b32.xlu0 %v902, 256
        %v905 = vpop.permute.xlu0 %904
        %s907 = sor.u32 256, 8
        %908 = vbcast.lane.b32.xlu0 %v902, %s907
        %v909 = vpop.permute.xlu0 %908
        %v910 = vlaneseq
        %v911 = vshrl.u32 %v910, 7
        %v912 = vsub.s32 4, %v911
        %v913 = vrot.slane %v287, %v912
        %915 = vbcast.lane.b32.xlu0 %v913, 256
        %v916 = vpop.permute.xlu0 %915
        %s918 = sor.u32 256, 8
        %919 = vbcast.lane.b32.xlu0 %v913, %s918
        %v920 = vpop.permute.xlu0 %919
        %v921 = vlaneseq
        %v922 = vshrl.u32 %v921, 7
        %v923 = vsub.s32 5, %v922
        %v924 = vrot.slane %v287, %v923
        %926 = vbcast.lane.b32.xlu0 %v924, 256
        %v927 = vpop.permute.xlu0 %926
        %s929 = sor.u32 256, 8
        %930 = vbcast.lane.b32.xlu0 %v924, %s929
        %v931 = vpop.permute.xlu0 %930
        %v932 = vlaneseq
        %v933 = vshrl.u32 %v932, 7
        %v934 = vsub.s32 6, %v933
        %v935 = vrot.slane %v287, %v934
        %937 = vbcast.lane.b32.xlu0 %v935, 256
        %v938 = vpop.permute.xlu0 %937
        %s940 = sor.u32 256, 8
        %941 = vbcast.lane.b32.xlu0 %v935, %s940
        %v942 = vpop.permute.xlu0 %941
        %v943 = vlaneseq
        %v944 = vshrl.u32 %v943, 7
        %v945 = vsub.s32 7, %v944
        %v946 = vrot.slane %v287, %v945
        %948 = vbcast.lane.b32.xlu0 %v946, 256
        %v949 = vpop.permute.xlu0 %948
        %s951 = sor.u32 256, 8
        %952 = vbcast.lane.b32.xlu0 %v946, %s951
        %v953 = vpop.permute.xlu0 %952
        %v954 = vlaneseq
        %v955 = vshrl.u32 %v954, 7
        %v956 = vsub.s32 2, %v955
        %v957 = vrot.slane %v280, %v956
        %v958 = vmul.f32 %v784, %v957
        %v959 = vmul.f32 %v788, %v957
        %v960 = vmul.f32 %v795, %v957
        %v961 = vmul.f32 %v799, %v957
        %v962 = vmul.f32 %v806, %v957
        %v963 = vmul.f32 %v810, %v957
        %v964 = vmul.f32 %v817, %v957
        %v965 = vmul.f32 %v821, %v957
        %v966 = vmul.f32 %v828, %v957
        %v967 = vmul.f32 %v832, %v957
        %v968 = vmul.f32 %v839, %v957
        %v969 = vmul.f32 %v843, %v957
        %v970 = vmul.f32 %v850, %v957
        %v971 = vmul.f32 %v854, %v957
        %v972 = vmul.f32 %v861, %v957
        %v973 = vmul.f32 %v865, %v957
        %v974 = vmul.f32 %v872, %v957
        %v975 = vmul.f32 %v876, %v957
        %v976 = vmul.f32 %v883, %v957
        %v977 = vmul.f32 %v887, %v957
        %v978 = vmul.f32 %v894, %v957
        %v979 = vmul.f32 %v898, %v957
        %v980 = vmul.f32 %v905, %v957
        %v981 = vmul.f32 %v909, %v957
        %v982 = vmul.f32 %v916, %v957
        %v983 = vmul.f32 %v920, %v957
        %v984 = vmul.f32 %v927, %v957
        %v985 = vmul.f32 %v931, %v957
        %v986 = vmul.f32 %v938, %v957
        %v987 = vmul.f32 %v942, %v957
        %v988 = vmul.f32 %v949, %v957
        %v989 = vmul.f32 %v953, %v957
        %v990 = vadd.f32 %v746, %v958
        %v991 = vadd.f32 %v747, %v959
        %v992 = vadd.f32 %v748, %v960
        %v993 = vadd.f32 %v749, %v961
        %v994 = vadd.f32 %v750, %v962
        %v995 = vadd.f32 %v751, %v963
        %v996 = vadd.f32 %v752, %v964
        %v997 = vadd.f32 %v753, %v965
        %v998 = vadd.f32 %v754, %v966
        %v999 = vadd.f32 %v755, %v967
        %v1000 = vadd.f32 %v756, %v968
        %v1001 = vadd.f32 %v757, %v969
        %v1002 = vadd.f32 %v758, %v970
        %v1003 = vadd.f32 %v759, %v971
        %v1004 = vadd.f32 %v760, %v972
        %v1005 = vadd.f32 %v761, %v973
        %v1006 = vadd.f32 %v762, %v974
        %v1007 = vadd.f32 %v763, %v975
        %v1008 = vadd.f32 %v764, %v976
        %v1009 = vadd.f32 %v765, %v977
        %v1010 = vadd.f32 %v766, %v978
        %v1011 = vadd.f32 %v767, %v979
        %v1012 = vadd.f32 %v768, %v980
        %v1013 = vadd.f32 %v769, %v981
        %v1014 = vadd.f32 %v770, %v982
        %v1015 = vadd.f32 %v771, %v983
        %v1016 = vadd.f32 %v772, %v984
        %v1017 = vadd.f32 %v773, %v985
        %v1018 = vadd.f32 %v774, %v986
        %v1019 = vadd.f32 %v775, %v987
        %v1020 = vadd.f32 %v776, %v988
        %v1021 = vadd.f32 %v777, %v989
        %v1022 = vlaneseq
        %v1023 = vshrl.u32 %v1022, 7
        %v1024 = vsub.s32 0, %v1023
        %v1025 = vrot.slane %v288, %v1024
        %1027 = vbcast.lane.b32.xlu0 %v1025, 256
        %v1028 = vpop.permute.xlu0 %1027
        %s1030 = sor.u32 256, 8
        %1031 = vbcast.lane.b32.xlu0 %v1025, %s1030
        %v1032 = vpop.permute.xlu0 %1031
        %v1033 = vlaneseq
        %v1034 = vshrl.u32 %v1033, 7
        %v1035 = vsub.s32 1, %v1034
        %v1036 = vrot.slane %v288, %v1035
        %1038 = vbcast.lane.b32.xlu0 %v1036, 256
        %v1039 = vpop.permute.xlu0 %1038
        %s1041 = sor.u32 256, 8
        %1042 = vbcast.lane.b32.xlu0 %v1036, %s1041
        %v1043 = vpop.permute.xlu0 %1042
        %v1044 = vlaneseq
        %v1045 = vshrl.u32 %v1044, 7
        %v1046 = vsub.s32 2, %v1045
        %v1047 = vrot.slane %v288, %v1046
        %1049 = vbcast.lane.b32.xlu0 %v1047, 256
        %v1050 = vpop.permute.xlu0 %1049
        %s1052 = sor.u32 256, 8
        %1053 = vbcast.lane.b32.xlu0 %v1047, %s1052
        %v1054 = vpop.permute.xlu0 %1053
        %v1055 = vlaneseq
        %v1056 = vshrl.u32 %v1055, 7
        %v1057 = vsub.s32 3, %v1056
        %v1058 = vrot.slane %v288, %v1057
        %1060 = vbcast.lane.b32.xlu0 %v1058, 256
        %v1061 = vpop.permute.xlu0 %1060
        %s1063 = sor.u32 256, 8
        %1064 = vbcast.lane.b32.xlu0 %v1058, %s1063
        %v1065 = vpop.permute.xlu0 %1064
        %v1066 = vlaneseq
        %v1067 = vshrl.u32 %v1066, 7
        %v1068 = vsub.s32 4, %v1067
        %v1069 = vrot.slane %v288, %v1068
        %1071 = vbcast.lane.b32.xlu0 %v1069, 256
        %v1072 = vpop.permute.xlu0 %1071
        %s1074 = sor.u32 256, 8
        %1075 = vbcast.lane.b32.xlu0 %v1069, %s1074
        %v1076 = vpop.permute.xlu0 %1075
        %v1077 = vlaneseq
        %v1078 = vshrl.u32 %v1077, 7
        %v1079 = vsub.s32 5, %v1078
        %v1080 = vrot.slane %v288, %v1079
        %1082 = vbcast.lane.b32.xlu0 %v1080, 256
        %v1083 = vpop.permute.xlu0 %1082
        %s1085 = sor.u32 256, 8
        %1086 = vbcast.lane.b32.xlu0 %v1080, %s1085
        %v1087 = vpop.permute.xlu0 %1086
        %v1088 = vlaneseq
        %v1089 = vshrl.u32 %v1088, 7
        %v1090 = vsub.s32 6, %v1089
        %v1091 = vrot.slane %v288, %v1090
        %1093 = vbcast.lane.b32.xlu0 %v1091, 256
        %v1094 = vpop.permute.xlu0 %1093
        %s1096 = sor.u32 256, 8
        %1097 = vbcast.lane.b32.xlu0 %v1091, %s1096
        %v1098 = vpop.permute.xlu0 %1097
        %v1099 = vlaneseq
        %v1100 = vshrl.u32 %v1099, 7
        %v1101 = vsub.s32 7, %v1100
        %v1102 = vrot.slane %v288, %v1101
        %1104 = vbcast.lane.b32.xlu0 %v1102, 256
        %v1105 = vpop.permute.xlu0 %1104
        %s1107 = sor.u32 256, 8
        %1108 = vbcast.lane.b32.xlu0 %v1102, %s1107
        %v1109 = vpop.permute.xlu0 %1108
        %v1110 = vlaneseq
        %v1111 = vshrl.u32 %v1110, 7
        %v1112 = vsub.s32 0, %v1111
        %v1113 = vrot.slane %v289, %v1112
        %1115 = vbcast.lane.b32.xlu0 %v1113, 256
        %v1116 = vpop.permute.xlu0 %1115
        %s1118 = sor.u32 256, 8
        %1119 = vbcast.lane.b32.xlu0 %v1113, %s1118
        %v1120 = vpop.permute.xlu0 %1119
        %v1121 = vlaneseq
        %v1122 = vshrl.u32 %v1121, 7
        %v1123 = vsub.s32 1, %v1122
        %v1124 = vrot.slane %v289, %v1123
        %1126 = vbcast.lane.b32.xlu0 %v1124, 256
        %v1127 = vpop.permute.xlu0 %1126
        %s1129 = sor.u32 256, 8
        %1130 = vbcast.lane.b32.xlu0 %v1124, %s1129
        %v1131 = vpop.permute.xlu0 %1130
        %v1132 = vlaneseq
        %v1133 = vshrl.u32 %v1132, 7
        %v1134 = vsub.s32 2, %v1133
        %v1135 = vrot.slane %v289, %v1134
        %1137 = vbcast.lane.b32.xlu0 %v1135, 256
        %v1138 = vpop.permute.xlu0 %1137
        %s1140 = sor.u32 256, 8
        %1141 = vbcast.lane.b32.xlu0 %v1135, %s1140
        %v1142 = vpop.permute.xlu0 %1141
        %v1143 = vlaneseq
        %v1144 = vshrl.u32 %v1143, 7
        %v1145 = vsub.s32 3, %v1144
        %v1146 = vrot.slane %v289, %v1145
        %1148 = vbcast.lane.b32.xlu0 %v1146, 256
        %v1149 = vpop.permute.xlu0 %1148
        %s1151 = sor.u32 256, 8
        %1152 = vbcast.lane.b32.xlu0 %v1146, %s1151
        %v1153 = vpop.permute.xlu0 %1152
        %v1154 = vlaneseq
        %v1155 = vshrl.u32 %v1154, 7
        %v1156 = vsub.s32 4, %v1155
        %v1157 = vrot.slane %v289, %v1156
        %1159 = vbcast.lane.b32.xlu0 %v1157, 256
        %v1160 = vpop.permute.xlu0 %1159
        %s1162 = sor.u32 256, 8
        %1163 = vbcast.lane.b32.xlu0 %v1157, %s1162
        %v1164 = vpop.permute.xlu0 %1163
        %v1165 = vlaneseq
        %v1166 = vshrl.u32 %v1165, 7
        %v1167 = vsub.s32 5, %v1166
        %v1168 = vrot.slane %v289, %v1167
        %1170 = vbcast.lane.b32.xlu0 %v1168, 256
        %v1171 = vpop.permute.xlu0 %1170
        %s1173 = sor.u32 256, 8
        %1174 = vbcast.lane.b32.xlu0 %v1168, %s1173
        %v1175 = vpop.permute.xlu0 %1174
        %v1176 = vlaneseq
        %v1177 = vshrl.u32 %v1176, 7
        %v1178 = vsub.s32 6, %v1177
        %v1179 = vrot.slane %v289, %v1178
        %1181 = vbcast.lane.b32.xlu0 %v1179, 256
        %v1182 = vpop.permute.xlu0 %1181
        %s1184 = sor.u32 256, 8
        %1185 = vbcast.lane.b32.xlu0 %v1179, %s1184
        %v1186 = vpop.permute.xlu0 %1185
        %v1187 = vlaneseq
        %v1188 = vshrl.u32 %v1187, 7
        %v1189 = vsub.s32 7, %v1188
        %v1190 = vrot.slane %v289, %v1189
        %1192 = vbcast.lane.b32.xlu0 %v1190, 256
        %v1193 = vpop.permute.xlu0 %1192
        %s1195 = sor.u32 256, 8
        %1196 = vbcast.lane.b32.xlu0 %v1190, %s1195
        %v1197 = vpop.permute.xlu0 %1196
        %v1198 = vlaneseq
        %v1199 = vshrl.u32 %v1198, 7
        %v1200 = vsub.s32 3, %v1199
        %v1201 = vrot.slane %v280, %v1200
        %v1202 = vmul.f32 %v1028, %v1201
        %v1203 = vmul.f32 %v1032, %v1201
        %v1204 = vmul.f32 %v1039, %v1201
        %v1205 = vmul.f32 %v1043, %v1201
        %v1206 = vmul.f32 %v1050, %v1201
        %v1207 = vmul.f32 %v1054, %v1201
        %v1208 = vmul.f32 %v1061, %v1201
        %v1209 = vmul.f32 %v1065, %v1201
        %v1210 = vmul.f32 %v1072, %v1201
        %v1211 = vmul.f32 %v1076, %v1201
        %v1212 = vmul.f32 %v1083, %v1201
        %v1213 = vmul.f32 %v1087, %v1201
        %v1214 = vmul.f32 %v1094, %v1201
        %v1215 = vmul.f32 %v1098, %v1201
        %v1216 = vmul.f32 %v1105, %v1201
        %v1217 = vmul.f32 %v1109, %v1201
        %v1218 = vmul.f32 %v1116, %v1201
        %v1219 = vmul.f32 %v1120, %v1201
        %v1220 = vmul.f32 %v1127, %v1201
        %v1221 = vmul.f32 %v1131, %v1201
        %v1222 = vmul.f32 %v1138, %v1201
        %v1223 = vmul.f32 %v1142, %v1201
        %v1224 = vmul.f32 %v1149, %v1201
        %v1225 = vmul.f32 %v1153, %v1201
        %v1226 = vmul.f32 %v1160, %v1201
        %v1227 = vmul.f32 %v1164, %v1201
        %v1228 = vmul.f32 %v1171, %v1201
        %v1229 = vmul.f32 %v1175, %v1201
        %v1230 = vmul.f32 %v1182, %v1201
        %v1231 = vmul.f32 %v1186, %v1201
        %v1232 = vmul.f32 %v1193, %v1201
        %v1233 = vmul.f32 %v1197, %v1201
        %v1234 = vadd.f32 %v990, %v1202
        %v1235 = vadd.f32 %v991, %v1203
        %v1236 = vadd.f32 %v992, %v1204
        %v1237 = vadd.f32 %v993, %v1205
        %v1238 = vadd.f32 %v994, %v1206
        %v1239 = vadd.f32 %v995, %v1207
        %v1240 = vadd.f32 %v996, %v1208
        %v1241 = vadd.f32 %v997, %v1209
        %v1242 = vadd.f32 %v998, %v1210
        %v1243 = vadd.f32 %v999, %v1211
        %v1244 = vadd.f32 %v1000, %v1212
        %v1245 = vadd.f32 %v1001, %v1213
        %v1246 = vadd.f32 %v1002, %v1214
        %v1247 = vadd.f32 %v1003, %v1215
        %v1248 = vadd.f32 %v1004, %v1216
        %v1249 = vadd.f32 %v1005, %v1217
        %v1250 = vadd.f32 %v1006, %v1218
        %v1251 = vadd.f32 %v1007, %v1219
        %v1252 = vadd.f32 %v1008, %v1220
        %v1253 = vadd.f32 %v1009, %v1221
        %v1254 = vadd.f32 %v1010, %v1222
        %v1255 = vadd.f32 %v1011, %v1223
        %v1256 = vadd.f32 %v1012, %v1224
        %v1257 = vadd.f32 %v1013, %v1225
        %v1258 = vadd.f32 %v1014, %v1226
        %v1259 = vadd.f32 %v1015, %v1227
        %v1260 = vadd.f32 %v1016, %v1228
        %v1261 = vadd.f32 %v1017, %v1229
        %v1262 = vadd.f32 %v1018, %v1230
        %v1263 = vadd.f32 %v1019, %v1231
        %v1264 = vadd.f32 %v1020, %v1232
        %v1265 = vadd.f32 %v1021, %v1233
        %vm1266 = vcmask 130048
        %v1268 = vsel %vm1266, %v282, 0
        %v1271 = vsel %vm1266, %v283, 0
        %v1274 = vsel %vm1266, %v284, 0
        %v1277 = vsel %vm1266, %v285, 0
        %v1280 = vsel %vm1266, %v286, 0
        %v1283 = vsel %vm1266, %v287, 0
        %v1286 = vsel %vm1266, %v288, 0
        %v1289 = vsel %vm1266, %v289, 0
        %1291 = vmatprep.subr.mxu0 0.0
        %1292 = vmatpush1.msra.mxu0 %v278
        %1293 = vmatprep.subr.mxu0 0.0
        %1294 = vmatpush1.msra.mxu0 %v279
        %1295 = vmatprep.subr.mxu0 0.0
        %1296 = vmatpush1.msra.mxu0 0.0
        %1297 = vmatprep.subr.mxu0 0.0
        %1298 = vmatpush1.msra.mxu0 0.0
        %1299 = vmatprep.subr.mxu0 0.0
        %1300 = vmatpush1.msra.mxu0 0.0
        %1301 = vmatprep.subr.mxu0 0.0
        %1302 = vmatpush1.msra.mxu0 0.0
        %1303 = vmatprep.subr.mxu0 0.0
        %1304 = vmatpush1.msra.mxu0 0.0
        %1305 = vmatprep.subr.mxu0 0.0
        %1306 = vmatpush1.msra.mxu0 0.0
        %1307 = vmatprep.subr.mxu0 0.0
        %1308 = vmatpush1.msra.mxu0 0.0
        %1309 = vmatprep.subr.mxu0 0.0
        %1310 = vmatpush1.msra.mxu0 0.0
        %1311 = vmatprep.subr.mxu0 0.0
        %1312 = vmatpush1.msra.mxu0 0.0
        %1313 = vmatprep.subr.mxu0 0.0
        %1314 = vmatpush1.msra.mxu0 0.0
        %1315 = vmatprep.subr.mxu0 0.0
        %1316 = vmatpush1.msra.mxu0 0.0
        %1317 = vmatprep.subr.mxu0 0.0
        %1318 = vmatpush1.msra.mxu0 0.0
        %1319 = vmatprep.subr.mxu0 0.0
        %1320 = vmatpush1.msra.mxu0 0.0
        %1321 = vmatprep.subr.mxu0 0.0
        %1322 = vmatpush1.msra.mxu0 0.0
        %1323 = vmatprep.subr.mxu0 0.0
        %1324 = vmatpush1.msra.mxu0 0.0
        %1325 = vmatprep.subr.mxu0 0.0
        %1326 = vmatpush1.msra.mxu0 0.0
        %1327 = vmatprep.subr.mxu0 0.0
        %1328 = vmatpush1.msra.mxu0 0.0
        %1329 = vmatprep.subr.mxu0 0.0
        %1330 = vmatpush1.msra.mxu0 0.0
        %1331 = vmatprep.subr.mxu0 0.0
        %1332 = vmatpush1.msra.mxu0 0.0
        %1333 = vmatprep.subr.mxu0 0.0
        %1334 = vmatpush1.msra.mxu0 0.0
        %1335 = vmatprep.subr.mxu0 0.0
        %1336 = vmatpush1.msra.mxu0 0.0
        %1337 = vmatprep.subr.mxu0 0.0
        %1338 = vmatpush1.msra.mxu0 0.0
        %1339 = vmatprep.subr.mxu0 0.0
        %1340 = vmatpush1.msra.mxu0 0.0
        %1341 = vmatprep.subr.mxu0 0.0
        %1342 = vmatpush1.msra.mxu0 0.0
        %1343 = vmatprep.subr.mxu0 0.0
        %1344 = vmatpush1.msra.mxu0 0.0
        %1345 = vmatprep.subr.mxu0 0.0
        %1346 = vmatpush1.msra.mxu0 0.0
        %1347 = vmatprep.subr.mxu0 0.0
        %1348 = vmatpush1.msra.mxu0 0.0
        %1349 = vmatprep.subr.mxu0 0.0
        %1350 = vmatpush1.msra.mxu0 0.0
        %1351 = vmatprep.subr.mxu0 0.0
        %1352 = vmatpush1.msra.mxu0 0.0
        %1353 = vmatprep.subr.mxu0 0.0
        %1354 = vmatpush1.msra.mxu0 0.0
        %1355 = vmatprep.mubr.f32.mxu0 0.0
        %1356 = vmatmul.mubr.f32.gmra.mrb[0].mxu0 %v1268
        %v1357 = vpop.f32.mrb[0].mxu0
        %v1358 = vadd.f32 0.0, %v1357
        %v1359 = vpop.f32.mrb[0].mxu0
        %1360 = vmatprep.mubr.f32.mxu0 0.0
        %1361 = vmatmul.mubr.f32.gmra.mrb[0].mxu0 %v1271
        %v1362 = vpop.f32.mrb[0].mxu0
        %v1363 = vadd.f32 0.0, %v1362
        %v1364 = vpop.f32.mrb[0].mxu0
        %1365 = vmatprep.mubr.f32.mxu0 0.0
        %1366 = vmatmul.mubr.f32.gmra.mrb[0].mxu0 %v1274
        %v1367 = vpop.f32.mrb[0].mxu0
        %v1368 = vadd.f32 0.0, %v1367
        %v1369 = vpop.f32.mrb[0].mxu0
        %1370 = vmatprep.mubr.f32.mxu0 0.0
        %1371 = vmatmul.mubr.f32.gmra.mrb[0].mxu0 %v1277
        %v1372 = vpop.f32.mrb[0].mxu0
        %v1373 = vadd.f32 0.0, %v1372
        %v1374 = vpop.f32.mrb[0].mxu0
        %1375 = vmatprep.mubr.f32.mxu0 0.0
        %1376 = vmatmul.mubr.f32.gmra.mrb[0].mxu0 %v1280
        %v1377 = vpop.f32.mrb[0].mxu0
        %v1378 = vadd.f32 0.0, %v1377
        %v1379 = vpop.f32.mrb[0].mxu0
        %1380 = vmatprep.mubr.f32.mxu0 0.0
        %1381 = vmatmul.mubr.f32.gmra.mrb[0].mxu0 %v1283
        %v1382 = vpop.f32.mrb[0].mxu0
        %v1383 = vadd.f32 0.0, %v1382
        %v1384 = vpop.f32.mrb[0].mxu0
        %1385 = vmatprep.mubr.f32.mxu0 0.0
        %1386 = vmatmul.mubr.f32.gmra.mrb[0].mxu0 %v1286
        %v1387 = vpop.f32.mrb[0].mxu0
        %v1388 = vadd.f32 0.0, %v1387
        %v1389 = vpop.f32.mrb[0].mxu0
        %1390 = vmatprep.mubr.f32.mxu0 0.0
        %1391 = vmatmul.mubr.f32.gmra.mrb[0].mxu0 %v1289
        %v1392 = vpop.f32.mrb[0].mxu0
        %v1393 = vadd.f32 0.0, %v1392
        %v1394 = vpop.f32.mrb[0].mxu0
        %1395 = vdwg.mxu0
        %v1396 = vlaneseq
        %v1397 = vshrl.u32 %v1396, 7
        %v1398 = vsub.s32 0, %v1397
        %v1399 = vrot.slane %v1358, %v1398
        %1401 = vbcast.lane.b32.xlu0 %v1399, 256
        %v1402 = vpop.permute.xlu0 %1401
        %s1404 = sor.u32 256, 8
        %1405 = vbcast.lane.b32.xlu0 %v1399, %s1404
        %v1406 = vpop.permute.xlu0 %1405
        %v1407 = vlaneseq
        %v1408 = vshrl.u32 %v1407, 7
        %v1409 = vsub.s32 1, %v1408
        %v1410 = vrot.slane %v1358, %v1409
        %1412 = vbcast.lane.b32.xlu0 %v1410, 256
        %v1413 = vpop.permute.xlu0 %1412
        %s1415 = sor.u32 256, 8
        %1416 = vbcast.lane.b32.xlu0 %v1410, %s1415
        %v1417 = vpop.permute.xlu0 %1416
        %v1418 = vlaneseq
        %v1419 = vshrl.u32 %v1418, 7
        %v1420 = vsub.s32 2, %v1419
        %v1421 = vrot.slane %v1358, %v1420
        %1423 = vbcast.lane.b32.xlu0 %v1421, 256
        %v1424 = vpop.permute.xlu0 %1423
        %s1426 = sor.u32 256, 8
        %1427 = vbcast.lane.b32.xlu0 %v1421, %s1426
        %v1428 = vpop.permute.xlu0 %1427
        %v1429 = vlaneseq
        %v1430 = vshrl.u32 %v1429, 7
        %v1431 = vsub.s32 3, %v1430
        %v1432 = vrot.slane %v1358, %v1431
        %1434 = vbcast.lane.b32.xlu0 %v1432, 256
        %v1435 = vpop.permute.xlu0 %1434
        %s1437 = sor.u32 256, 8
        %1438 = vbcast.lane.b32.xlu0 %v1432, %s1437
        %v1439 = vpop.permute.xlu0 %1438
        %v1440 = vlaneseq
        %v1441 = vshrl.u32 %v1440, 7
        %v1442 = vsub.s32 4, %v1441
        %v1443 = vrot.slane %v1358, %v1442
        %1445 = vbcast.lane.b32.xlu0 %v1443, 256
        %v1446 = vpop.permute.xlu0 %1445
        %s1448 = sor.u32 256, 8
        %1449 = vbcast.lane.b32.xlu0 %v1443, %s1448
        %v1450 = vpop.permute.xlu0 %1449
        %v1451 = vlaneseq
        %v1452 = vshrl.u32 %v1451, 7
        %v1453 = vsub.s32 5, %v1452
        %v1454 = vrot.slane %v1358, %v1453
        %1456 = vbcast.lane.b32.xlu0 %v1454, 256
        %v1457 = vpop.permute.xlu0 %1456
        %s1459 = sor.u32 256, 8
        %1460 = vbcast.lane.b32.xlu0 %v1454, %s1459
        %v1461 = vpop.permute.xlu0 %1460
        %v1462 = vlaneseq
        %v1463 = vshrl.u32 %v1462, 7
        %v1464 = vsub.s32 6, %v1463
        %v1465 = vrot.slane %v1358, %v1464
        %1467 = vbcast.lane.b32.xlu0 %v1465, 256
        %v1468 = vpop.permute.xlu0 %1467
        %s1470 = sor.u32 256, 8
        %1471 = vbcast.lane.b32.xlu0 %v1465, %s1470
        %v1472 = vpop.permute.xlu0 %1471
        %v1473 = vlaneseq
        %v1474 = vshrl.u32 %v1473, 7
        %v1475 = vsub.s32 7, %v1474
        %v1476 = vrot.slane %v1358, %v1475
        %1478 = vbcast.lane.b32.xlu0 %v1476, 256
        %v1479 = vpop.permute.xlu0 %1478
        %s1481 = sor.u32 256, 8
        %1482 = vbcast.lane.b32.xlu0 %v1476, %s1481
        %v1483 = vpop.permute.xlu0 %1482
        %v1484 = vlaneseq
        %v1485 = vshrl.u32 %v1484, 7
        %v1486 = vsub.s32 0, %v1485
        %v1487 = vrot.slane %v1363, %v1486
        %1489 = vbcast.lane.b32.xlu0 %v1487, 256
        %v1490 = vpop.permute.xlu0 %1489
        %s1492 = sor.u32 256, 8
        %1493 = vbcast.lane.b32.xlu0 %v1487, %s1492
        %v1494 = vpop.permute.xlu0 %1493
        %v1495 = vlaneseq
        %v1496 = vshrl.u32 %v1495, 7
        %v1497 = vsub.s32 1, %v1496
        %v1498 = vrot.slane %v1363, %v1497
        %1500 = vbcast.lane.b32.xlu0 %v1498, 256
        %v1501 = vpop.permute.xlu0 %1500
        %s1503 = sor.u32 256, 8
        %1504 = vbcast.lane.b32.xlu0 %v1498, %s1503
        %v1505 = vpop.permute.xlu0 %1504
        %v1506 = vlaneseq
        %v1507 = vshrl.u32 %v1506, 7
        %v1508 = vsub.s32 2, %v1507
        %v1509 = vrot.slane %v1363, %v1508
        %1511 = vbcast.lane.b32.xlu0 %v1509, 256
        %v1512 = vpop.permute.xlu0 %1511
        %s1514 = sor.u32 256, 8
        %1515 = vbcast.lane.b32.xlu0 %v1509, %s1514
        %v1516 = vpop.permute.xlu0 %1515
        %v1517 = vlaneseq
        %v1518 = vshrl.u32 %v1517, 7
        %v1519 = vsub.s32 3, %v1518
        %v1520 = vrot.slane %v1363, %v1519
        %1522 = vbcast.lane.b32.xlu0 %v1520, 256
        %v1523 = vpop.permute.xlu0 %1522
        %s1525 = sor.u32 256, 8
        %1526 = vbcast.lane.b32.xlu0 %v1520, %s1525
        %v1527 = vpop.permute.xlu0 %1526
        %v1528 = vlaneseq
        %v1529 = vshrl.u32 %v1528, 7
        %v1530 = vsub.s32 4, %v1529
        %v1531 = vrot.slane %v1363, %v1530
        %1533 = vbcast.lane.b32.xlu0 %v1531, 256
        %v1534 = vpop.permute.xlu0 %1533
        %s1536 = sor.u32 256, 8
        %1537 = vbcast.lane.b32.xlu0 %v1531, %s1536
        %v1538 = vpop.permute.xlu0 %1537
        %v1539 = vlaneseq
        %v1540 = vshrl.u32 %v1539, 7
        %v1541 = vsub.s32 5, %v1540
        %v1542 = vrot.slane %v1363, %v1541
        %1544 = vbcast.lane.b32.xlu0 %v1542, 256
        %v1545 = vpop.permute.xlu0 %1544
        %s1547 = sor.u32 256, 8
        %1548 = vbcast.lane.b32.xlu0 %v1542, %s1547
        %v1549 = vpop.permute.xlu0 %1548
        %v1550 = vlaneseq
        %v1551 = vshrl.u32 %v1550, 7
        %v1552 = vsub.s32 6, %v1551
        %v1553 = vrot.slane %v1363, %v1552
        %1555 = vbcast.lane.b32.xlu0 %v1553, 256
        %v1556 = vpop.permute.xlu0 %1555
        %s1558 = sor.u32 256, 8
        %1559 = vbcast.lane.b32.xlu0 %v1553, %s1558
        %v1560 = vpop.permute.xlu0 %1559
        %v1561 = vlaneseq
        %v1562 = vshrl.u32 %v1561, 7
        %v1563 = vsub.s32 7, %v1562
        %v1564 = vrot.slane %v1363, %v1563
        %1566 = vbcast.lane.b32.xlu0 %v1564, 256
        %v1567 = vpop.permute.xlu0 %1566
        %s1569 = sor.u32 256, 8
        %1570 = vbcast.lane.b32.xlu0 %v1564, %s1569
        %v1571 = vpop.permute.xlu0 %1570
        %v1572 = vlaneseq
        %v1573 = vshrl.u32 %v1572, 7
        %v1574 = vsub.s32 4, %v1573
        %v1575 = vrot.slane %v280, %v1574
        %v1576 = vmul.f32 %v1402, %v1575
        %v1577 = vmul.f32 %v1406, %v1575
        %v1578 = vmul.f32 %v1413, %v1575
        %v1579 = vmul.f32 %v1417, %v1575
        %v1580 = vmul.f32 %v1424, %v1575
        %v1581 = vmul.f32 %v1428, %v1575
        %v1582 = vmul.f32 %v1435, %v1575
        %v1583 = vmul.f32 %v1439, %v1575
        %v1584 = vmul.f32 %v1446, %v1575
        %v1585 = vmul.f32 %v1450, %v1575
        %v1586 = vmul.f32 %v1457, %v1575
        %v1587 = vmul.f32 %v1461, %v1575
        %v1588 = vmul.f32 %v1468, %v1575
        %v1589 = vmul.f32 %v1472, %v1575
        %v1590 = vmul.f32 %v1479, %v1575
        %v1591 = vmul.f32 %v1483, %v1575
        %v1592 = vmul.f32 %v1490, %v1575
        %v1593 = vmul.f32 %v1494, %v1575
        %v1594 = vmul.f32 %v1501, %v1575
        %v1595 = vmul.f32 %v1505, %v1575
        %v1596 = vmul.f32 %v1512, %v1575
        %v1597 = vmul.f32 %v1516, %v1575
        %v1598 = vmul.f32 %v1523, %v1575
        %v1599 = vmul.f32 %v1527, %v1575
        %v1600 = vmul.f32 %v1534, %v1575
        %v1601 = vmul.f32 %v1538, %v1575
        %v1602 = vmul.f32 %v1545, %v1575
        %v1603 = vmul.f32 %v1549, %v1575
        %v1604 = vmul.f32 %v1556, %v1575
        %v1605 = vmul.f32 %v1560, %v1575
        %v1606 = vmul.f32 %v1567, %v1575
        %v1607 = vmul.f32 %v1571, %v1575
        %v1608 = vadd.f32 %v1234, %v1576
        %v1609 = vadd.f32 %v1235, %v1577
        %v1610 = vadd.f32 %v1236, %v1578
        %v1611 = vadd.f32 %v1237, %v1579
        %v1612 = vadd.f32 %v1238, %v1580
        %v1613 = vadd.f32 %v1239, %v1581
        %v1614 = vadd.f32 %v1240, %v1582
        %v1615 = vadd.f32 %v1241, %v1583
        %v1616 = vadd.f32 %v1242, %v1584
        %v1617 = vadd.f32 %v1243, %v1585
        %v1618 = vadd.f32 %v1244, %v1586
        %v1619 = vadd.f32 %v1245, %v1587
        %v1620 = vadd.f32 %v1246, %v1588
        %v1621 = vadd.f32 %v1247, %v1589
        %v1622 = vadd.f32 %v1248, %v1590
        %v1623 = vadd.f32 %v1249, %v1591
        %v1624 = vadd.f32 %v1250, %v1592
        %v1625 = vadd.f32 %v1251, %v1593
        %v1626 = vadd.f32 %v1252, %v1594
        %v1627 = vadd.f32 %v1253, %v1595
        %v1628 = vadd.f32 %v1254, %v1596
        %v1629 = vadd.f32 %v1255, %v1597
        %v1630 = vadd.f32 %v1256, %v1598
        %v1631 = vadd.f32 %v1257, %v1599
        %v1632 = vadd.f32 %v1258, %v1600
        %v1633 = vadd.f32 %v1259, %v1601
        %v1634 = vadd.f32 %v1260, %v1602
        %v1635 = vadd.f32 %v1261, %v1603
        %v1636 = vadd.f32 %v1262, %v1604
        %v1637 = vadd.f32 %v1263, %v1605
        %v1638 = vadd.f32 %v1264, %v1606
        %v1639 = vadd.f32 %v1265, %v1607
        %v1640 = vlaneseq
        %v1641 = vshrl.u32 %v1640, 7
        %v1642 = vsub.s32 0, %v1641
        %v1643 = vrot.slane %v1368, %v1642
        %1645 = vbcast.lane.b32.xlu0 %v1643, 256
        %v1646 = vpop.permute.xlu0 %1645
        %s1648 = sor.u32 256, 8
        %1649 = vbcast.lane.b32.xlu0 %v1643, %s1648
        %v1650 = vpop.permute.xlu0 %1649
        %v1651 = vlaneseq
        %v1652 = vshrl.u32 %v1651, 7
        %v1653 = vsub.s32 1, %v1652
        %v1654 = vrot.slane %v1368, %v1653
        %1656 = vbcast.lane.b32.xlu0 %v1654, 256
        %v1657 = vpop.permute.xlu0 %1656
        %s1659 = sor.u32 256, 8
        %1660 = vbcast.lane.b32.xlu0 %v1654, %s1659
        %v1661 = vpop.permute.xlu0 %1660
        %v1662 = vlaneseq
        %v1663 = vshrl.u32 %v1662, 7
        %v1664 = vsub.s32 2, %v1663
        %v1665 = vrot.slane %v1368, %v1664
        %1667 = vbcast.lane.b32.xlu0 %v1665, 256
        %v1668 = vpop.permute.xlu0 %1667
        %s1670 = sor.u32 256, 8
        %1671 = vbcast.lane.b32.xlu0 %v1665, %s1670
        %v1672 = vpop.permute.xlu0 %1671
        %v1673 = vlaneseq
        %v1674 = vshrl.u32 %v1673, 7
        %v1675 = vsub.s32 3, %v1674
        %v1676 = vrot.slane %v1368, %v1675
        %1678 = vbcast.lane.b32.xlu0 %v1676, 256
        %v1679 = vpop.permute.xlu0 %1678
        %s1681 = sor.u32 256, 8
        %1682 = vbcast.lane.b32.xlu0 %v1676, %s1681
        %v1683 = vpop.permute.xlu0 %1682
        %v1684 = vlaneseq
        %v1685 = vshrl.u32 %v1684, 7
        %v1686 = vsub.s32 4, %v1685
        %v1687 = vrot.slane %v1368, %v1686
        %1689 = vbcast.lane.b32.xlu0 %v1687, 256
        %v1690 = vpop.permute.xlu0 %1689
        %s1692 = sor.u32 256, 8
        %1693 = vbcast.lane.b32.xlu0 %v1687, %s1692
        %v1694 = vpop.permute.xlu0 %1693
        %v1695 = vlaneseq
        %v1696 = vshrl.u32 %v1695, 7
        %v1697 = vsub.s32 5, %v1696
        %v1698 = vrot.slane %v1368, %v1697
        %1700 = vbcast.lane.b32.xlu0 %v1698, 256
        %v1701 = vpop.permute.xlu0 %1700
        %s1703 = sor.u32 256, 8
        %1704 = vbcast.lane.b32.xlu0 %v1698, %s1703
        %v1705 = vpop.permute.xlu0 %1704
        %v1706 = vlaneseq
        %v1707 = vshrl.u32 %v1706, 7
        %v1708 = vsub.s32 6, %v1707
        %v1709 = vrot.slane %v1368, %v1708
        %1711 = vbcast.lane.b32.xlu0 %v1709, 256
        %v1712 = vpop.permute.xlu0 %1711
        %s1714 = sor.u32 256, 8
        %1715 = vbcast.lane.b32.xlu0 %v1709, %s1714
        %v1716 = vpop.permute.xlu0 %1715
        %v1717 = vlaneseq
        %v1718 = vshrl.u32 %v1717, 7
        %v1719 = vsub.s32 7, %v1718
        %v1720 = vrot.slane %v1368, %v1719
        %1722 = vbcast.lane.b32.xlu0 %v1720, 256
        %v1723 = vpop.permute.xlu0 %1722
        %s1725 = sor.u32 256, 8
        %1726 = vbcast.lane.b32.xlu0 %v1720, %s1725
        %v1727 = vpop.permute.xlu0 %1726
        %v1728 = vlaneseq
        %v1729 = vshrl.u32 %v1728, 7
        %v1730 = vsub.s32 0, %v1729
        %v1731 = vrot.slane %v1373, %v1730
        %1733 = vbcast.lane.b32.xlu0 %v1731, 256
        %v1734 = vpop.permute.xlu0 %1733
        %s1736 = sor.u32 256, 8
        %1737 = vbcast.lane.b32.xlu0 %v1731, %s1736
        %v1738 = vpop.permute.xlu0 %1737
        %v1739 = vlaneseq
        %v1740 = vshrl.u32 %v1739, 7
        %v1741 = vsub.s32 1, %v1740
        %v1742 = vrot.slane %v1373, %v1741
        %1744 = vbcast.lane.b32.xlu0 %v1742, 256
        %v1745 = vpop.permute.xlu0 %1744
        %s1747 = sor.u32 256, 8
        %1748 = vbcast.lane.b32.xlu0 %v1742, %s1747
        %v1749 = vpop.permute.xlu0 %1748
        %v1750 = vlaneseq
        %v1751 = vshrl.u32 %v1750, 7
        %v1752 = vsub.s32 2, %v1751
        %v1753 = vrot.slane %v1373, %v1752
        %1755 = vbcast.lane.b32.xlu0 %v1753, 256
        %v1756 = vpop.permute.xlu0 %1755
        %s1758 = sor.u32 256, 8
        %1759 = vbcast.lane.b32.xlu0 %v1753, %s1758
        %v1760 = vpop.permute.xlu0 %1759
        %v1761 = vlaneseq
        %v1762 = vshrl.u32 %v1761, 7
        %v1763 = vsub.s32 3, %v1762
        %v1764 = vrot.slane %v1373, %v1763
        %1766 = vbcast.lane.b32.xlu0 %v1764, 256
        %v1767 = vpop.permute.xlu0 %1766
        %s1769 = sor.u32 256, 8
        %1770 = vbcast.lane.b32.xlu0 %v1764, %s1769
        %v1771 = vpop.permute.xlu0 %1770
        %v1772 = vlaneseq
        %v1773 = vshrl.u32 %v1772, 7
        %v1774 = vsub.s32 4, %v1773
        %v1775 = vrot.slane %v1373, %v1774
        %1777 = vbcast.lane.b32.xlu0 %v1775, 256
        %v1778 = vpop.permute.xlu0 %1777
        %s1780 = sor.u32 256, 8
        %1781 = vbcast.lane.b32.xlu0 %v1775, %s1780
        %v1782 = vpop.permute.xlu0 %1781
        %v1783 = vlaneseq
        %v1784 = vshrl.u32 %v1783, 7
        %v1785 = vsub.s32 5, %v1784
        %v1786 = vrot.slane %v1373, %v1785
        %1788 = vbcast.lane.b32.xlu0 %v1786, 256
        %v1789 = vpop.permute.xlu0 %1788
        %s1791 = sor.u32 256, 8
        %1792 = vbcast.lane.b32.xlu0 %v1786, %s1791
        %v1793 = vpop.permute.xlu0 %1792
        %v1794 = vlaneseq
        %v1795 = vshrl.u32 %v1794, 7
        %v1796 = vsub.s32 6, %v1795
        %v1797 = vrot.slane %v1373, %v1796
        %1799 = vbcast.lane.b32.xlu0 %v1797, 256
        %v1800 = vpop.permute.xlu0 %1799
        %s1802 = sor.u32 256, 8
        %1803 = vbcast.lane.b32.xlu0 %v1797, %s1802
        %v1804 = vpop.permute.xlu0 %1803
        %v1805 = vlaneseq
        %v1806 = vshrl.u32 %v1805, 7
        %v1807 = vsub.s32 7, %v1806
        %v1808 = vrot.slane %v1373, %v1807
        %1810 = vbcast.lane.b32.xlu0 %v1808, 256
        %v1811 = vpop.permute.xlu0 %1810
        %s1813 = sor.u32 256, 8
        %1814 = vbcast.lane.b32.xlu0 %v1808, %s1813
        %v1815 = vpop.permute.xlu0 %1814
        %v1816 = vlaneseq
        %v1817 = vshrl.u32 %v1816, 7
        %v1818 = vsub.s32 5, %v1817
        %v1819 = vrot.slane %v280, %v1818
        %v1820 = vmul.f32 %v1646, %v1819
        %v1821 = vmul.f32 %v1650, %v1819
        %v1822 = vmul.f32 %v1657, %v1819
        %v1823 = vmul.f32 %v1661, %v1819
        %v1824 = vmul.f32 %v1668, %v1819
        %v1825 = vmul.f32 %v1672, %v1819
        %v1826 = vmul.f32 %v1679, %v1819
        %v1827 = vmul.f32 %v1683, %v1819
        %v1828 = vmul.f32 %v1690, %v1819
        %v1829 = vmul.f32 %v1694, %v1819
        %v1830 = vmul.f32 %v1701, %v1819
        %v1831 = vmul.f32 %v1705, %v1819
        %v1832 = vmul.f32 %v1712, %v1819
        %v1833 = vmul.f32 %v1716, %v1819
        %v1834 = vmul.f32 %v1723, %v1819
        %v1835 = vmul.f32 %v1727, %v1819
        %v1836 = vmul.f32 %v1734, %v1819
        %v1837 = vmul.f32 %v1738, %v1819
        %v1838 = vmul.f32 %v1745, %v1819
        %v1839 = vmul.f32 %v1749, %v1819
        %v1840 = vmul.f32 %v1756, %v1819
        %v1841 = vmul.f32 %v1760, %v1819
        %v1842 = vmul.f32 %v1767, %v1819
        %v1843 = vmul.f32 %v1771, %v1819
        %v1844 = vmul.f32 %v1778, %v1819
        %v1845 = vmul.f32 %v1782, %v1819
        %v1846 = vmul.f32 %v1789, %v1819
        %v1847 = vmul.f32 %v1793, %v1819
        %v1848 = vmul.f32 %v1800, %v1819
        %v1849 = vmul.f32 %v1804, %v1819
        %v1850 = vmul.f32 %v1811, %v1819
        %v1851 = vmul.f32 %v1815, %v1819
        %v1852 = vadd.f32 %v1608, %v1820
        %v1853 = vadd.f32 %v1609, %v1821
        %v1854 = vadd.f32 %v1610, %v1822
        %v1855 = vadd.f32 %v1611, %v1823
        %v1856 = vadd.f32 %v1612, %v1824
        %v1857 = vadd.f32 %v1613, %v1825
        %v1858 = vadd.f32 %v1614, %v1826
        %v1859 = vadd.f32 %v1615, %v1827
        %v1860 = vadd.f32 %v1616, %v1828
        %v1861 = vadd.f32 %v1617, %v1829
        %v1862 = vadd.f32 %v1618, %v1830
        %v1863 = vadd.f32 %v1619, %v1831
        %v1864 = vadd.f32 %v1620, %v1832
        %v1865 = vadd.f32 %v1621, %v1833
        %v1866 = vadd.f32 %v1622, %v1834
        %v1867 = vadd.f32 %v1623, %v1835
        %v1868 = vadd.f32 %v1624, %v1836
        %v1869 = vadd.f32 %v1625, %v1837
        %v1870 = vadd.f32 %v1626, %v1838
        %v1871 = vadd.f32 %v1627, %v1839
        %v1872 = vadd.f32 %v1628, %v1840
        %v1873 = vadd.f32 %v1629, %v1841
        %v1874 = vadd.f32 %v1630, %v1842
        %v1875 = vadd.f32 %v1631, %v1843
        %v1876 = vadd.f32 %v1632, %v1844
        %v1877 = vadd.f32 %v1633, %v1845
        %v1878 = vadd.f32 %v1634, %v1846
        %v1879 = vadd.f32 %v1635, %v1847
        %v1880 = vadd.f32 %v1636, %v1848
        %v1881 = vadd.f32 %v1637, %v1849
        %v1882 = vadd.f32 %v1638, %v1850
        %v1883 = vadd.f32 %v1639, %v1851
        %v1884 = vlaneseq
        %v1885 = vshrl.u32 %v1884, 7
        %v1886 = vsub.s32 0, %v1885
        %v1887 = vrot.slane %v1378, %v1886
        %1889 = vbcast.lane.b32.xlu0 %v1887, 256
        %v1890 = vpop.permute.xlu0 %1889
        %s1892 = sor.u32 256, 8
        %1893 = vbcast.lane.b32.xlu0 %v1887, %s1892
        %v1894 = vpop.permute.xlu0 %1893
        %v1895 = vlaneseq
        %v1896 = vshrl.u32 %v1895, 7
        %v1897 = vsub.s32 1, %v1896
        %v1898 = vrot.slane %v1378, %v1897
        %1900 = vbcast.lane.b32.xlu0 %v1898, 256
        %v1901 = vpop.permute.xlu0 %1900
        %s1903 = sor.u32 256, 8
        %1904 = vbcast.lane.b32.xlu0 %v1898, %s1903
        %v1905 = vpop.permute.xlu0 %1904
        %v1906 = vlaneseq
        %v1907 = vshrl.u32 %v1906, 7
        %v1908 = vsub.s32 2, %v1907
        %v1909 = vrot.slane %v1378, %v1908
        %1911 = vbcast.lane.b32.xlu0 %v1909, 256
        %v1912 = vpop.permute.xlu0 %1911
        %s1914 = sor.u32 256, 8
        %1915 = vbcast.lane.b32.xlu0 %v1909, %s1914
        %v1916 = vpop.permute.xlu0 %1915
        %v1917 = vlaneseq
        %v1918 = vshrl.u32 %v1917, 7
        %v1919 = vsub.s32 3, %v1918
        %v1920 = vrot.slane %v1378, %v1919
        %1922 = vbcast.lane.b32.xlu0 %v1920, 256
        %v1923 = vpop.permute.xlu0 %1922
        %s1925 = sor.u32 256, 8
        %1926 = vbcast.lane.b32.xlu0 %v1920, %s1925
        %v1927 = vpop.permute.xlu0 %1926
        %v1928 = vlaneseq
        %v1929 = vshrl.u32 %v1928, 7
        %v1930 = vsub.s32 4, %v1929
        %v1931 = vrot.slane %v1378, %v1930
        %1933 = vbcast.lane.b32.xlu0 %v1931, 256
        %v1934 = vpop.permute.xlu0 %1933
        %s1936 = sor.u32 256, 8
        %1937 = vbcast.lane.b32.xlu0 %v1931, %s1936
        %v1938 = vpop.permute.xlu0 %1937
        %v1939 = vlaneseq
        %v1940 = vshrl.u32 %v1939, 7
        %v1941 = vsub.s32 5, %v1940
        %v1942 = vrot.slane %v1378, %v1941
        %1944 = vbcast.lane.b32.xlu0 %v1942, 256
        %v1945 = vpop.permute.xlu0 %1944
        %s1947 = sor.u32 256, 8
        %1948 = vbcast.lane.b32.xlu0 %v1942, %s1947
        %v1949 = vpop.permute.xlu0 %1948
        %v1950 = vlaneseq
        %v1951 = vshrl.u32 %v1950, 7
        %v1952 = vsub.s32 6, %v1951
        %v1953 = vrot.slane %v1378, %v1952
        %1955 = vbcast.lane.b32.xlu0 %v1953, 256
        %v1956 = vpop.permute.xlu0 %1955
        %s1958 = sor.u32 256, 8
        %1959 = vbcast.lane.b32.xlu0 %v1953, %s1958
        %v1960 = vpop.permute.xlu0 %1959
        %v1961 = vlaneseq
        %v1962 = vshrl.u32 %v1961, 7
        %v1963 = vsub.s32 7, %v1962
        %v1964 = vrot.slane %v1378, %v1963
        %1966 = vbcast.lane.b32.xlu0 %v1964, 256
        %v1967 = vpop.permute.xlu0 %1966
        %s1969 = sor.u32 256, 8
        %1970 = vbcast.lane.b32.xlu0 %v1964, %s1969
        %v1971 = vpop.permute.xlu0 %1970
        %v1972 = vlaneseq
        %v1973 = vshrl.u32 %v1972, 7
        %v1974 = vsub.s32 0, %v1973
        %v1975 = vrot.slane %v1383, %v1974
        %1977 = vbcast.lane.b32.xlu0 %v1975, 256
        %v1978 = vpop.permute.xlu0 %1977
        %s1980 = sor.u32 256, 8
        %1981 = vbcast.lane.b32.xlu0 %v1975, %s1980
        %v1982 = vpop.permute.xlu0 %1981
        %v1983 = vlaneseq
        %v1984 = vshrl.u32 %v1983, 7
        %v1985 = vsub.s32 1, %v1984
        %v1986 = vrot.slane %v1383, %v1985
        %1988 = vbcast.lane.b32.xlu0 %v1986, 256
        %v1989 = vpop.permute.xlu0 %1988
        %s1991 = sor.u32 256, 8
        %1992 = vbcast.lane.b32.xlu0 %v1986, %s1991
        %v1993 = vpop.permute.xlu0 %1992
        %v1994 = vlaneseq
        %v1995 = vshrl.u32 %v1994, 7
        %v1996 = vsub.s32 2, %v1995
        %v1997 = vrot.slane %v1383, %v1996
        %1999 = vbcast.lane.b32.xlu0 %v1997, 256
        %v2000 = vpop.permute.xlu0 %1999
        %s2002 = sor.u32 256, 8
        %2003 = vbcast.lane.b32.xlu0 %v1997, %s2002
        %v2004 = vpop.permute.xlu0 %2003
        %v2005 = vlaneseq
        %v2006 = vshrl.u32 %v2005, 7
        %v2007 = vsub.s32 3, %v2006
        %v2008 = vrot.slane %v1383, %v2007
        %2010 = vbcast.lane.b32.xlu0 %v2008, 256
        %v2011 = vpop.permute.xlu0 %2010
        %s2013 = sor.u32 256, 8
        %2014 = vbcast.lane.b32.xlu0 %v2008, %s2013
        %v2015 = vpop.permute.xlu0 %2014
        %v2016 = vlaneseq
        %v2017 = vshrl.u32 %v2016, 7
        %v2018 = vsub.s32 4, %v2017
        %v2019 = vrot.slane %v1383, %v2018
        %2021 = vbcast.lane.b32.xlu0 %v2019, 256
        %v2022 = vpop.permute.xlu0 %2021
        %s2024 = sor.u32 256, 8
        %2025 = vbcast.lane.b32.xlu0 %v2019, %s2024
        %v2026 = vpop.permute.xlu0 %2025
        %v2027 = vlaneseq
        %v2028 = vshrl.u32 %v2027, 7
        %v2029 = vsub.s32 5, %v2028
        %v2030 = vrot.slane %v1383, %v2029
        %2032 = vbcast.lane.b32.xlu0 %v2030, 256
        %v2033 = vpop.permute.xlu0 %2032
        %s2035 = sor.u32 256, 8
        %2036 = vbcast.lane.b32.xlu0 %v2030, %s2035
        %v2037 = vpop.permute.xlu0 %2036
        %v2038 = vlaneseq
        %v2039 = vshrl.u32 %v2038, 7
        %v2040 = vsub.s32 6, %v2039
        %v2041 = vrot.slane %v1383, %v2040
        %2043 = vbcast.lane.b32.xlu0 %v2041, 256
        %v2044 = vpop.permute.xlu0 %2043
        %s2046 = sor.u32 256, 8
        %2047 = vbcast.lane.b32.xlu0 %v2041, %s2046
        %v2048 = vpop.permute.xlu0 %2047
        %v2049 = vlaneseq
        %v2050 = vshrl.u32 %v2049, 7
        %v2051 = vsub.s32 7, %v2050
        %v2052 = vrot.slane %v1383, %v2051
        %2054 = vbcast.lane.b32.xlu0 %v2052, 256
        %v2055 = vpop.permute.xlu0 %2054
        %s2057 = sor.u32 256, 8
        %2058 = vbcast.lane.b32.xlu0 %v2052, %s2057
        %v2059 = vpop.permute.xlu0 %2058
        %v2060 = vlaneseq
        %v2061 = vshrl.u32 %v2060, 7
        %v2062 = vsub.s32 6, %v2061
        %v2063 = vrot.slane %v280, %v2062
        %v2064 = vmul.f32 %v1890, %v2063
        %v2065 = vmul.f32 %v1894, %v2063
        %v2066 = vmul.f32 %v1901, %v2063
        %v2067 = vmul.f32 %v1905, %v2063
        %v2068 = vmul.f32 %v1912, %v2063
        %v2069 = vmul.f32 %v1916, %v2063
        %v2070 = vmul.f32 %v1923, %v2063
        %v2071 = vmul.f32 %v1927, %v2063
        %v2072 = vmul.f32 %v1934, %v2063
        %v2073 = vmul.f32 %v1938, %v2063
        %v2074 = vmul.f32 %v1945, %v2063
        %v2075 = vmul.f32 %v1949, %v2063
        %v2076 = vmul.f32 %v1956, %v2063
        %v2077 = vmul.f32 %v1960, %v2063
        %v2078 = vmul.f32 %v1967, %v2063
        %v2079 = vmul.f32 %v1971, %v2063
        %v2080 = vmul.f32 %v1978, %v2063
        %v2081 = vmul.f32 %v1982, %v2063
        %v2082 = vmul.f32 %v1989, %v2063
        %v2083 = vmul.f32 %v1993, %v2063
        %v2084 = vmul.f32 %v2000, %v2063
        %v2085 = vmul.f32 %v2004, %v2063
        %v2086 = vmul.f32 %v2011, %v2063
        %v2087 = vmul.f32 %v2015, %v2063
        %v2088 = vmul.f32 %v2022, %v2063
        %v2089 = vmul.f32 %v2026, %v2063
        %v2090 = vmul.f32 %v2033, %v2063
        %v2091 = vmul.f32 %v2037, %v2063
        %v2092 = vmul.f32 %v2044, %v2063
        %v2093 = vmul.f32 %v2048, %v2063
        %v2094 = vmul.f32 %v2055, %v2063
        %v2095 = vmul.f32 %v2059, %v2063
        %v2096 = vadd.f32 %v1852, %v2064
        %v2097 = vadd.f32 %v1853, %v2065
        %v2098 = vadd.f32 %v1854, %v2066
        %v2099 = vadd.f32 %v1855, %v2067
        %v2100 = vadd.f32 %v1856, %v2068
        %v2101 = vadd.f32 %v1857, %v2069
        %v2102 = vadd.f32 %v1858, %v2070
        %v2103 = vadd.f32 %v1859, %v2071
        %v2104 = vadd.f32 %v1860, %v2072
        %v2105 = vadd.f32 %v1861, %v2073
        %v2106 = vadd.f32 %v1862, %v2074
        %v2107 = vadd.f32 %v1863, %v2075
        %v2108 = vadd.f32 %v1864, %v2076
        %v2109 = vadd.f32 %v1865, %v2077
        %v2110 = vadd.f32 %v1866, %v2078
        %v2111 = vadd.f32 %v1867, %v2079
        %v2112 = vadd.f32 %v1868, %v2080
        %v2113 = vadd.f32 %v1869, %v2081
        %v2114 = vadd.f32 %v1870, %v2082
        %v2115 = vadd.f32 %v1871, %v2083
        %v2116 = vadd.f32 %v1872, %v2084
        %v2117 = vadd.f32 %v1873, %v2085
        %v2118 = vadd.f32 %v1874, %v2086
        %v2119 = vadd.f32 %v1875, %v2087
        %v2120 = vadd.f32 %v1876, %v2088
        %v2121 = vadd.f32 %v1877, %v2089
        %v2122 = vadd.f32 %v1878, %v2090
        %v2123 = vadd.f32 %v1879, %v2091
        %v2124 = vadd.f32 %v1880, %v2092
        %v2125 = vadd.f32 %v1881, %v2093
        %v2126 = vadd.f32 %v1882, %v2094
        %v2127 = vadd.f32 %v1883, %v2095
        %v2128 = vlaneseq
        %v2129 = vshrl.u32 %v2128, 7
        %v2130 = vsub.s32 0, %v2129
        %v2131 = vrot.slane %v1388, %v2130
        %2133 = vbcast.lane.b32.xlu0 %v2131, 256
        %v2134 = vpop.permute.xlu0 %2133
        %s2136 = sor.u32 256, 8
        %2137 = vbcast.lane.b32.xlu0 %v2131, %s2136
        %v2138 = vpop.permute.xlu0 %2137
        %v2139 = vlaneseq
        %v2140 = vshrl.u32 %v2139, 7
        %v2141 = vsub.s32 1, %v2140
        %v2142 = vrot.slane %v1388, %v2141
        %2144 = vbcast.lane.b32.xlu0 %v2142, 256
        %v2145 = vpop.permute.xlu0 %2144
        %s2147 = sor.u32 256, 8
        %2148 = vbcast.lane.b32.xlu0 %v2142, %s2147
        %v2149 = vpop.permute.xlu0 %2148
        %v2150 = vlaneseq
        %v2151 = vshrl.u32 %v2150, 7
        %v2152 = vsub.s32 2, %v2151
        %v2153 = vrot.slane %v1388, %v2152
        %2155 = vbcast.lane.b32.xlu0 %v2153, 256
        %v2156 = vpop.permute.xlu0 %2155
        %s2158 = sor.u32 256, 8
        %2159 = vbcast.lane.b32.xlu0 %v2153, %s2158
        %v2160 = vpop.permute.xlu0 %2159
        %v2161 = vlaneseq
        %v2162 = vshrl.u32 %v2161, 7
        %v2163 = vsub.s32 3, %v2162
        %v2164 = vrot.slane %v1388, %v2163
        %2166 = vbcast.lane.b32.xlu0 %v2164, 256
        %v2167 = vpop.permute.xlu0 %2166
        %s2169 = sor.u32 256, 8
        %2170 = vbcast.lane.b32.xlu0 %v2164, %s2169
        %v2171 = vpop.permute.xlu0 %2170
        %v2172 = vlaneseq
        %v2173 = vshrl.u32 %v2172, 7
        %v2174 = vsub.s32 4, %v2173
        %v2175 = vrot.slane %v1388, %v2174
        %2177 = vbcast.lane.b32.xlu0 %v2175, 256
        %v2178 = vpop.permute.xlu0 %2177
        %s2180 = sor.u32 256, 8
        %2181 = vbcast.lane.b32.xlu0 %v2175, %s2180
        %v2182 = vpop.permute.xlu0 %2181
        %v2183 = vlaneseq
        %v2184 = vshrl.u32 %v2183, 7
        %v2185 = vsub.s32 5, %v2184
        %v2186 = vrot.slane %v1388, %v2185
        %2188 = vbcast.lane.b32.xlu0 %v2186, 256
        %v2189 = vpop.permute.xlu0 %2188
        %s2191 = sor.u32 256, 8
        %2192 = vbcast.lane.b32.xlu0 %v2186, %s2191
        %v2193 = vpop.permute.xlu0 %2192
        %v2194 = vlaneseq
        %v2195 = vshrl.u32 %v2194, 7
        %v2196 = vsub.s32 6, %v2195
        %v2197 = vrot.slane %v1388, %v2196
        %2199 = vbcast.lane.b32.xlu0 %v2197, 256
        %v2200 = vpop.permute.xlu0 %2199
        %s2202 = sor.u32 256, 8
        %2203 = vbcast.lane.b32.xlu0 %v2197, %s2202
        %v2204 = vpop.permute.xlu0 %2203
        %v2205 = vlaneseq
        %v2206 = vshrl.u32 %v2205, 7
        %v2207 = vsub.s32 7, %v2206
        %v2208 = vrot.slane %v1388, %v2207
        %2210 = vbcast.lane.b32.xlu0 %v2208, 256
        %v2211 = vpop.permute.xlu0 %2210
        %s2213 = sor.u32 256, 8
        %2214 = vbcast.lane.b32.xlu0 %v2208, %s2213
        %v2215 = vpop.permute.xlu0 %2214
        %v2216 = vlaneseq
        %v2217 = vshrl.u32 %v2216, 7
        %v2218 = vsub.s32 0, %v2217
        %v2219 = vrot.slane %v1393, %v2218
        %2221 = vbcast.lane.b32.xlu0 %v2219, 256
        %v2222 = vpop.permute.xlu0 %2221
        %s2224 = sor.u32 256, 8
        %2225 = vbcast.lane.b32.xlu0 %v2219, %s2224
        %v2226 = vpop.permute.xlu0 %2225
        %v2227 = vlaneseq
        %v2228 = vshrl.u32 %v2227, 7
        %v2229 = vsub.s32 1, %v2228
        %v2230 = vrot.slane %v1393, %v2229
        %2232 = vbcast.lane.b32.xlu0 %v2230, 256
        %v2233 = vpop.permute.xlu0 %2232
        %s2235 = sor.u32 256, 8
        %2236 = vbcast.lane.b32.xlu0 %v2230, %s2235
        %v2237 = vpop.permute.xlu0 %2236
        %v2238 = vlaneseq
        %v2239 = vshrl.u32 %v2238, 7
        %v2240 = vsub.s32 2, %v2239
        %v2241 = vrot.slane %v1393, %v2240
        %2243 = vbcast.lane.b32.xlu0 %v2241, 256
        %v2244 = vpop.permute.xlu0 %2243
        %s2246 = sor.u32 256, 8
        %2247 = vbcast.lane.b32.xlu0 %v2241, %s2246
        %v2248 = vpop.permute.xlu0 %2247
        %v2249 = vlaneseq
        %v2250 = vshrl.u32 %v2249, 7
        %v2251 = vsub.s32 3, %v2250
        %v2252 = vrot.slane %v1393, %v2251
        %2254 = vbcast.lane.b32.xlu0 %v2252, 256
        %v2255 = vpop.permute.xlu0 %2254
        %s2257 = sor.u32 256, 8
        %2258 = vbcast.lane.b32.xlu0 %v2252, %s2257
        %v2259 = vpop.permute.xlu0 %2258
        %v2260 = vlaneseq
        %v2261 = vshrl.u32 %v2260, 7
        %v2262 = vsub.s32 4, %v2261
        %v2263 = vrot.slane %v1393, %v2262
        %2265 = vbcast.lane.b32.xlu0 %v2263, 256
        %v2266 = vpop.permute.xlu0 %2265
        %s2268 = sor.u32 256, 8
        %2269 = vbcast.lane.b32.xlu0 %v2263, %s2268
        %v2270 = vpop.permute.xlu0 %2269
        %v2271 = vlaneseq
        %v2272 = vshrl.u32 %v2271, 7
        %v2273 = vsub.s32 5, %v2272
        %v2274 = vrot.slane %v1393, %v2273
        %2276 = vbcast.lane.b32.xlu0 %v2274, 256
        %v2277 = vpop.permute.xlu0 %2276
        %s2279 = sor.u32 256, 8
        %2280 = vbcast.lane.b32.xlu0 %v2274, %s2279
        %v2281 = vpop.permute.xlu0 %2280
        %v2282 = vlaneseq
        %v2283 = vshrl.u32 %v2282, 7
        %v2284 = vsub.s32 6, %v2283
        %v2285 = vrot.slane %v1393, %v2284
        %2287 = vbcast.lane.b32.xlu0 %v2285, 256
        %v2288 = vpop.permute.xlu0 %2287
        %s2290 = sor.u32 256, 8
        %2291 = vbcast.lane.b32.xlu0 %v2285, %s2290
        %v2292 = vpop.permute.xlu0 %2291
        %v2293 = vlaneseq
        %v2294 = vshrl.u32 %v2293, 7
        %v2295 = vsub.s32 7, %v2294
        %v2296 = vrot.slane %v1393, %v2295
        %2298 = vbcast.lane.b32.xlu0 %v2296, 256
        %v2299 = vpop.permute.xlu0 %2298
        %s2301 = sor.u32 256, 8
        %2302 = vbcast.lane.b32.xlu0 %v2296, %s2301
        %v2303 = vpop.permute.xlu0 %2302
        %v2304 = vlaneseq
        %v2305 = vshrl.u32 %v2304, 7
        %v2306 = vsub.s32 7, %v2305
        %v2307 = vrot.slane %v280, %v2306
        %v2308 = vmul.f32 %v2134, %v2307
        %v2309 = vmul.f32 %v2138, %v2307
        %v2310 = vmul.f32 %v2145, %v2307
        %v2311 = vmul.f32 %v2149, %v2307
        %v2312 = vmul.f32 %v2156, %v2307
        %v2313 = vmul.f32 %v2160, %v2307
        %v2314 = vmul.f32 %v2167, %v2307
        %v2315 = vmul.f32 %v2171, %v2307
        %v2316 = vmul.f32 %v2178, %v2307
        %v2317 = vmul.f32 %v2182, %v2307
        %v2318 = vmul.f32 %v2189, %v2307
        %v2319 = vmul.f32 %v2193, %v2307
        %v2320 = vmul.f32 %v2200, %v2307
        %v2321 = vmul.f32 %v2204, %v2307
        %v2322 = vmul.f32 %v2211, %v2307
        %v2323 = vmul.f32 %v2215, %v2307
        %v2324 = vmul.f32 %v2222, %v2307
        %v2325 = vmul.f32 %v2226, %v2307
        %v2326 = vmul.f32 %v2233, %v2307
        %v2327 = vmul.f32 %v2237, %v2307
        %v2328 = vmul.f32 %v2244, %v2307
        %v2329 = vmul.f32 %v2248, %v2307
        %v2330 = vmul.f32 %v2255, %v2307
        %v2331 = vmul.f32 %v2259, %v2307
        %v2332 = vmul.f32 %v2266, %v2307
        %v2333 = vmul.f32 %v2270, %v2307
        %v2334 = vmul.f32 %v2277, %v2307
        %v2335 = vmul.f32 %v2281, %v2307
        %v2336 = vmul.f32 %v2288, %v2307
        %v2337 = vmul.f32 %v2292, %v2307
        %v2338 = vmul.f32 %v2299, %v2307
        %v2339 = vmul.f32 %v2303, %v2307
        %v2340 = vadd.f32 %v2096, %v2308
        %v2341 = vadd.f32 %v2097, %v2309
        %v2342 = vadd.f32 %v2098, %v2310
        %v2343 = vadd.f32 %v2099, %v2311
        %v2344 = vadd.f32 %v2100, %v2312
        %v2345 = vadd.f32 %v2101, %v2313
        %v2346 = vadd.f32 %v2102, %v2314
        %v2347 = vadd.f32 %v2103, %v2315
        %v2348 = vadd.f32 %v2104, %v2316
        %v2349 = vadd.f32 %v2105, %v2317
        %v2350 = vadd.f32 %v2106, %v2318
        %v2351 = vadd.f32 %v2107, %v2319
        %v2352 = vadd.f32 %v2108, %v2320
        %v2353 = vadd.f32 %v2109, %v2321
        %v2354 = vadd.f32 %v2110, %v2322
        %v2355 = vadd.f32 %v2111, %v2323
        %v2356 = vadd.f32 %v2112, %v2324
        %v2357 = vadd.f32 %v2113, %v2325
        %v2358 = vadd.f32 %v2114, %v2326
        %v2359 = vadd.f32 %v2115, %v2327
        %v2360 = vadd.f32 %v2116, %v2328
        %v2361 = vadd.f32 %v2117, %v2329
        %v2362 = vadd.f32 %v2118, %v2330
        %v2363 = vadd.f32 %v2119, %v2331
        %v2364 = vadd.f32 %v2120, %v2332
        %v2365 = vadd.f32 %v2121, %v2333
        %v2366 = vadd.f32 %v2122, %v2334
        %v2367 = vadd.f32 %v2123, %v2335
        %v2368 = vadd.f32 %v2124, %v2336
        %v2369 = vadd.f32 %v2125, %v2337
        %v2370 = vadd.f32 %v2126, %v2338
        %v2371 = vadd.f32 %v2127, %v2339
        %v2373 = vsel %vm1266, %v1358, 0
        %v2376 = vsel %vm1266, %v1363, 0
        %v2379 = vsel %vm1266, %v1368, 0
        %v2382 = vsel %vm1266, %v1373, 0
        %v2385 = vsel %vm1266, %v1378, 0
        %v2388 = vsel %vm1266, %v1383, 0
        %v2391 = vsel %vm1266, %v1388, 0
        %v2394 = vsel %vm1266, %v1393, 0
        %2396 = vmatprep.subr.mxu0 0.0
        %2397 = vmatpush1.msra.mxu0 %v278
        %2398 = vmatprep.subr.mxu0 0.0
        %2399 = vmatpush1.msra.mxu0 %v279
        %2400 = vmatprep.subr.mxu0 0.0
        %2401 = vmatpush1.msra.mxu0 0.0
        %2402 = vmatprep.subr.mxu0 0.0
        %2403 = vmatpush1.msra.mxu0 0.0
        %2404 = vmatprep.subr.mxu0 0.0
        %2405 = vmatpush1.msra.mxu0 0.0
        %2406 = vmatprep.subr.mxu0 0.0
        %2407 = vmatpush1.msra.mxu0 0.0
        %2408 = vmatprep.subr.mxu0 0.0
        %2409 = vmatpush1.msra.mxu0 0.0
        %2410 = vmatprep.subr.mxu0 0.0
        %2411 = vmatpush1.msra.mxu0 0.0
        %2412 = vmatprep.subr.mxu0 0.0
        %2413 = vmatpush1.msra.mxu0 0.0
        %2414 = vmatprep.subr.mxu0 0.0
        %2415 = vmatpush1.msra.mxu0 0.0
        %2416 = vmatprep.subr.mxu0 0.0
        %2417 = vmatpush1.msra.mxu0 0.0
        %2418 = vmatprep.subr.mxu0 0.0
        %2419 = vmatpush1.msra.mxu0 0.0
        %2420 = vmatprep.subr.mxu0 0.0
        %2421 = vmatpush1.msra.mxu0 0.0
        %2422 = vmatprep.subr.mxu0 0.0
        %2423 = vmatpush1.msra.mxu0 0.0
        %2424 = vmatprep.subr.mxu0 0.0
        %2425 = vmatpush1.msra.mxu0 0.0
        %2426 = vmatprep.subr.mxu0 0.0
        %2427 = vmatpush1.msra.mxu0 0.0
        %2428 = vmatprep.subr.mxu0 0.0
        %2429 = vmatpush1.msra.mxu0 0.0
        %2430 = vmatprep.subr.mxu0 0.0
        %2431 = vmatpush1.msra.mxu0 0.0
        %2432 = vmatprep.subr.mxu0 0.0
        %2433 = vmatpush1.msra.mxu0 0.0
        %2434 = vmatprep.subr.mxu0 0.0
        %2435 = vmatpush1.msra.mxu0 0.0
        %2436 = vmatprep.subr.mxu0 0.0
        %2437 = vmatpush1.msra.mxu0 0.0
        %2438 = vmatprep.subr.mxu0 0.0
        %2439 = vmatpush1.msra.mxu0 0.0
        %2440 = vmatprep.subr.mxu0 0.0
        %2441 = vmatpush1.msra.mxu0 0.0
        %2442 = vmatprep.subr.mxu0 0.0
        %2443 = vmatpush1.msra.mxu0 0.0
        %2444 = vmatprep.subr.mxu0 0.0
        %2445 = vmatpush1.msra.mxu0 0.0
        %2446 = vmatprep.subr.mxu0 0.0
        %2447 = vmatpush1.msra.mxu0 0.0
        %2448 = vmatprep.subr.mxu0 0.0
        %2449 = vmatpush1.msra.mxu0 0.0
        %2450 = vmatprep.subr.mxu0 0.0
        %2451 = vmatpush1.msra.mxu0 0.0
        %2452 = vmatprep.subr.mxu0 0.0
        %2453 = vmatpush1.msra.mxu0 0.0
        %2454 = vmatprep.subr.mxu0 0.0
        %2455 = vmatpush1.msra.mxu0 0.0
        %2456 = vmatprep.subr.mxu0 0.0
        %2457 = vmatpush1.msra.mxu0 0.0
        %2458 = vmatprep.subr.mxu0 0.0
        %2459 = vmatpush1.msra.mxu0 0.0
        %2460 = vmatprep.mubr.f32.mxu0 0.0
        %2461 = vmatmul.mubr.f32.gmra.mrb[0].mxu0 %v2373
        %v2462 = vpop.f32.mrb[0].mxu0
        %v2463 = vadd.f32 0.0, %v2462
        %v2464 = vpop.f32.mrb[0].mxu0
        %2465 = vmatprep.mubr.f32.mxu0 0.0
        %2466 = vmatmul.mubr.f32.gmra.mrb[0].mxu0 %v2376
        %v2467 = vpop.f32.mrb[0].mxu0
        %v2468 = vadd.f32 0.0, %v2467
        %v2469 = vpop.f32.mrb[0].mxu0
        %2470 = vmatprep.mubr.f32.mxu0 0.0
        %2471 = vmatmul.mubr.f32.gmra.mrb[0].mxu0 %v2379
        %v2472 = vpop.f32.mrb[0].mxu0
        %v2473 = vadd.f32 0.0, %v2472
        %v2474 = vpop.f32.mrb[0].mxu0
        %2475 = vmatprep.mubr.f32.mxu0 0.0
        %2476 = vmatmul.mubr.f32.gmra.mrb[0].mxu0 %v2382
        %v2477 = vpop.f32.mrb[0].mxu0
        %v2478 = vadd.f32 0.0, %v2477
        %v2479 = vpop.f32.mrb[0].mxu0
        %2480 = vmatprep.mubr.f32.mxu0 0.0
        %2481 = vmatmul.mubr.f32.gmra.mrb[0].mxu0 %v2385
        %v2482 = vpop.f32.mrb[0].mxu0
        %v2483 = vadd.f32 0.0, %v2482
        %v2484 = vpop.f32.mrb[0].mxu0
        %2485 = vmatprep.mubr.f32.mxu0 0.0
        %2486 = vmatmul.mubr.f32.gmra.mrb[0].mxu0 %v2388
        %v2487 = vpop.f32.mrb[0].mxu0
        %v2488 = vadd.f32 0.0, %v2487
        %v2489 = vpop.f32.mrb[0].mxu0
        %2490 = vmatprep.mubr.f32.mxu0 0.0
        %2491 = vmatmul.mubr.f32.gmra.mrb[0].mxu0 %v2391
        %v2492 = vpop.f32.mrb[0].mxu0
        %v2493 = vadd.f32 0.0, %v2492
        %v2494 = vpop.f32.mrb[0].mxu0
        %2495 = vmatprep.mubr.f32.mxu0 0.0
        %2496 = vmatmul.mubr.f32.gmra.mrb[0].mxu0 %v2394
        %v2497 = vpop.f32.mrb[0].mxu0
        %v2498 = vadd.f32 0.0, %v2497
        %v2499 = vpop.f32.mrb[0].mxu0
        %2500 = vdwg.mxu0
        %v2501 = vmul.f32 %v2463, 2.0
        %v2502 = vmul.f32 %v2468, 2.0
        %v2503 = vmul.f32 %v2473, 2.0
        %v2504 = vmul.f32 %v2478, 2.0
        %v2505 = vmul.f32 %v2483, 2.0
        %v2506 = vmul.f32 %v2488, 2.0
        %v2507 = vmul.f32 %v2493, 2.0
        %v2508 = vmul.f32 %v2498, 2.0
        %v2509 = vsub.f32 %v2501, %v282
        %v2510 = vsub.f32 %v2502, %v283
        %v2511 = vsub.f32 %v2503, %v284
        %v2512 = vsub.f32 %v2504, %v285
        %v2513 = vsub.f32 %v2505, %v286
        %v2514 = vsub.f32 %v2506, %v287
        %v2515 = vsub.f32 %v2507, %v288
        %v2516 = vsub.f32 %v2508, %v289
        %v2517 = vlaneseq
        %v2518 = vshrl.u32 %v2517, 7
        %v2519 = vsub.s32 0, %v2518
        %v2520 = vrot.slane %v2509, %v2519
        %2522 = vbcast.lane.b32.xlu0 %v2520, 256
        %v2523 = vpop.permute.xlu0 %2522
        %s2525 = sor.u32 256, 8
        %2526 = vbcast.lane.b32.xlu0 %v2520, %s2525
        %v2527 = vpop.permute.xlu0 %2526
        %v2528 = vlaneseq
        %v2529 = vshrl.u32 %v2528, 7
        %v2530 = vsub.s32 1, %v2529
        %v2531 = vrot.slane %v2509, %v2530
        %2533 = vbcast.lane.b32.xlu0 %v2531, 256
        %v2534 = vpop.permute.xlu0 %2533
        %s2536 = sor.u32 256, 8
        %2537 = vbcast.lane.b32.xlu0 %v2531, %s2536
        %v2538 = vpop.permute.xlu0 %2537
        %v2539 = vlaneseq
        %v2540 = vshrl.u32 %v2539, 7
        %v2541 = vsub.s32 2, %v2540
        %v2542 = vrot.slane %v2509, %v2541
        %2544 = vbcast.lane.b32.xlu0 %v2542, 256
        %v2545 = vpop.permute.xlu0 %2544
        %s2547 = sor.u32 256, 8
        %2548 = vbcast.lane.b32.xlu0 %v2542, %s2547
        %v2549 = vpop.permute.xlu0 %2548
        %v2550 = vlaneseq
        %v2551 = vshrl.u32 %v2550, 7
        %v2552 = vsub.s32 3, %v2551
        %v2553 = vrot.slane %v2509, %v2552
        %2555 = vbcast.lane.b32.xlu0 %v2553, 256
        %v2556 = vpop.permute.xlu0 %2555
        %s2558 = sor.u32 256, 8
        %2559 = vbcast.lane.b32.xlu0 %v2553, %s2558
        %v2560 = vpop.permute.xlu0 %2559
        %v2561 = vlaneseq
        %v2562 = vshrl.u32 %v2561, 7
        %v2563 = vsub.s32 4, %v2562
        %v2564 = vrot.slane %v2509, %v2563
        %2566 = vbcast.lane.b32.xlu0 %v2564, 256
        %v2567 = vpop.permute.xlu0 %2566
        %s2569 = sor.u32 256, 8
        %2570 = vbcast.lane.b32.xlu0 %v2564, %s2569
        %v2571 = vpop.permute.xlu0 %2570
        %v2572 = vlaneseq
        %v2573 = vshrl.u32 %v2572, 7
        %v2574 = vsub.s32 5, %v2573
        %v2575 = vrot.slane %v2509, %v2574
        %2577 = vbcast.lane.b32.xlu0 %v2575, 256
        %v2578 = vpop.permute.xlu0 %2577
        %s2580 = sor.u32 256, 8
        %2581 = vbcast.lane.b32.xlu0 %v2575, %s2580
        %v2582 = vpop.permute.xlu0 %2581
        %v2583 = vlaneseq
        %v2584 = vshrl.u32 %v2583, 7
        %v2585 = vsub.s32 6, %v2584
        %v2586 = vrot.slane %v2509, %v2585
        %2588 = vbcast.lane.b32.xlu0 %v2586, 256
        %v2589 = vpop.permute.xlu0 %2588
        %s2591 = sor.u32 256, 8
        %2592 = vbcast.lane.b32.xlu0 %v2586, %s2591
        %v2593 = vpop.permute.xlu0 %2592
        %v2594 = vlaneseq
        %v2595 = vshrl.u32 %v2594, 7
        %v2596 = vsub.s32 7, %v2595
        %v2597 = vrot.slane %v2509, %v2596
        %2599 = vbcast.lane.b32.xlu0 %v2597, 256
        %v2600 = vpop.permute.xlu0 %2599
        %s2602 = sor.u32 256, 8
        %2603 = vbcast.lane.b32.xlu0 %v2597, %s2602
        %v2604 = vpop.permute.xlu0 %2603
        %v2605 = vlaneseq
        %v2606 = vshrl.u32 %v2605, 7
        %v2607 = vsub.s32 0, %v2606
        %v2608 = vrot.slane %v2510, %v2607
        %2610 = vbcast.lane.b32.xlu0 %v2608, 256
        %v2611 = vpop.permute.xlu0 %2610
        %s2613 = sor.u32 256, 8
        %2614 = vbcast.lane.b32.xlu0 %v2608, %s2613
        %v2615 = vpop.permute.xlu0 %2614
        %v2616 = vlaneseq
        %v2617 = vshrl.u32 %v2616, 7
        %v2618 = vsub.s32 1, %v2617
        %v2619 = vrot.slane %v2510, %v2618
        %2621 = vbcast.lane.b32.xlu0 %v2619, 256
        %v2622 = vpop.permute.xlu0 %2621
        %s2624 = sor.u32 256, 8
        %2625 = vbcast.lane.b32.xlu0 %v2619, %s2624
        %v2626 = vpop.permute.xlu0 %2625
        %v2627 = vlaneseq
        %v2628 = vshrl.u32 %v2627, 7
        %v2629 = vsub.s32 2, %v2628
        %v2630 = vrot.slane %v2510, %v2629
        %2632 = vbcast.lane.b32.xlu0 %v2630, 256
        %v2633 = vpop.permute.xlu0 %2632
        %s2635 = sor.u32 256, 8
        %2636 = vbcast.lane.b32.xlu0 %v2630, %s2635
        %v2637 = vpop.permute.xlu0 %2636
        %v2638 = vlaneseq
        %v2639 = vshrl.u32 %v2638, 7
        %v2640 = vsub.s32 3, %v2639
        %v2641 = vrot.slane %v2510, %v2640
        %2643 = vbcast.lane.b32.xlu0 %v2641, 256
        %v2644 = vpop.permute.xlu0 %2643
        %s2646 = sor.u32 256, 8
        %2647 = vbcast.lane.b32.xlu0 %v2641, %s2646
        %v2648 = vpop.permute.xlu0 %2647
        %v2649 = vlaneseq
        %v2650 = vshrl.u32 %v2649, 7
        %v2651 = vsub.s32 4, %v2650
        %v2652 = vrot.slane %v2510, %v2651
        %2654 = vbcast.lane.b32.xlu0 %v2652, 256
        %v2655 = vpop.permute.xlu0 %2654
        %s2657 = sor.u32 256, 8
        %2658 = vbcast.lane.b32.xlu0 %v2652, %s2657
        %v2659 = vpop.permute.xlu0 %2658
        %v2660 = vlaneseq
        %v2661 = vshrl.u32 %v2660, 7
        %v2662 = vsub.s32 5, %v2661
        %v2663 = vrot.slane %v2510, %v2662
        %2665 = vbcast.lane.b32.xlu0 %v2663, 256
        %v2666 = vpop.permute.xlu0 %2665
        %s2668 = sor.u32 256, 8
        %2669 = vbcast.lane.b32.xlu0 %v2663, %s2668
        %v2670 = vpop.permute.xlu0 %2669
        %v2671 = vlaneseq
        %v2672 = vshrl.u32 %v2671, 7
        %v2673 = vsub.s32 6, %v2672
        %v2674 = vrot.slane %v2510, %v2673
        %2676 = vbcast.lane.b32.xlu0 %v2674, 256
        %v2677 = vpop.permute.xlu0 %2676
        %s2679 = sor.u32 256, 8
        %2680 = vbcast.lane.b32.xlu0 %v2674, %s2679
        %v2681 = vpop.permute.xlu0 %2680
        %v2682 = vlaneseq
        %v2683 = vshrl.u32 %v2682, 7
        %v2684 = vsub.s32 7, %v2683
        %v2685 = vrot.slane %v2510, %v2684
        %2687 = vbcast.lane.b32.xlu0 %v2685, 256
        %v2688 = vpop.permute.xlu0 %2687
        %s2690 = sor.u32 256, 8
        %2691 = vbcast.lane.b32.xlu0 %v2685, %s2690
        %v2692 = vpop.permute.xlu0 %2691
        %v2693 = vlaneseq
        %v2694 = vshrl.u32 %v2693, 7
        %v2695 = vsub.s32 0, %v2694
        %v2696 = vrot.slane %v281, %v2695
        %v2697 = vmul.f32 %v2523, %v2696
        %v2698 = vmul.f32 %v2527, %v2696
        %v2699 = vmul.f32 %v2534, %v2696
        %v2700 = vmul.f32 %v2538, %v2696
        %v2701 = vmul.f32 %v2545, %v2696
        %v2702 = vmul.f32 %v2549, %v2696
        %v2703 = vmul.f32 %v2556, %v2696
        %v2704 = vmul.f32 %v2560, %v2696
        %v2705 = vmul.f32 %v2567, %v2696
        %v2706 = vmul.f32 %v2571, %v2696
        %v2707 = vmul.f32 %v2578, %v2696
        %v2708 = vmul.f32 %v2582, %v2696
        %v2709 = vmul.f32 %v2589, %v2696
        %v2710 = vmul.f32 %v2593, %v2696
        %v2711 = vmul.f32 %v2600, %v2696
        %v2712 = vmul.f32 %v2604, %v2696
        %v2713 = vmul.f32 %v2611, %v2696
        %v2714 = vmul.f32 %v2615, %v2696
        %v2715 = vmul.f32 %v2622, %v2696
        %v2716 = vmul.f32 %v2626, %v2696
        %v2717 = vmul.f32 %v2633, %v2696
        %v2718 = vmul.f32 %v2637, %v2696
        %v2719 = vmul.f32 %v2644, %v2696
        %v2720 = vmul.f32 %v2648, %v2696
        %v2721 = vmul.f32 %v2655, %v2696
        %v2722 = vmul.f32 %v2659, %v2696
        %v2723 = vmul.f32 %v2666, %v2696
        %v2724 = vmul.f32 %v2670, %v2696
        %v2725 = vmul.f32 %v2677, %v2696
        %v2726 = vmul.f32 %v2681, %v2696
        %v2727 = vmul.f32 %v2688, %v2696
        %v2728 = vmul.f32 %v2692, %v2696
        %v2729 = vadd.f32 %v2340, %v2697
        %v2730 = vadd.f32 %v2341, %v2698
        %v2731 = vadd.f32 %v2342, %v2699
        %v2732 = vadd.f32 %v2343, %v2700
        %v2733 = vadd.f32 %v2344, %v2701
        %v2734 = vadd.f32 %v2345, %v2702
        %v2735 = vadd.f32 %v2346, %v2703
        %v2736 = vadd.f32 %v2347, %v2704
        %v2737 = vadd.f32 %v2348, %v2705
        %v2738 = vadd.f32 %v2349, %v2706
        %v2739 = vadd.f32 %v2350, %v2707
        %v2740 = vadd.f32 %v2351, %v2708
        %v2741 = vadd.f32 %v2352, %v2709
        %v2742 = vadd.f32 %v2353, %v2710
        %v2743 = vadd.f32 %v2354, %v2711
        %v2744 = vadd.f32 %v2355, %v2712
        %v2745 = vadd.f32 %v2356, %v2713
        %v2746 = vadd.f32 %v2357, %v2714
        %v2747 = vadd.f32 %v2358, %v2715
        %v2748 = vadd.f32 %v2359, %v2716
        %v2749 = vadd.f32 %v2360, %v2717
        %v2750 = vadd.f32 %v2361, %v2718
        %v2751 = vadd.f32 %v2362, %v2719
        %v2752 = vadd.f32 %v2363, %v2720
        %v2753 = vadd.f32 %v2364, %v2721
        %v2754 = vadd.f32 %v2365, %v2722
        %v2755 = vadd.f32 %v2366, %v2723
        %v2756 = vadd.f32 %v2367, %v2724
        %v2757 = vadd.f32 %v2368, %v2725
        %v2758 = vadd.f32 %v2369, %v2726
        %v2759 = vadd.f32 %v2370, %v2727
        %v2760 = vadd.f32 %v2371, %v2728
        %v2761 = vlaneseq
        %v2762 = vshrl.u32 %v2761, 7
        %v2763 = vsub.s32 0, %v2762
        %v2764 = vrot.slane %v2511, %v2763
        %2766 = vbcast.lane.b32.xlu0 %v2764, 256
        %v2767 = vpop.permute.xlu0 %2766
        %s2769 = sor.u32 256, 8
        %2770 = vbcast.lane.b32.xlu0 %v2764, %s2769
        %v2771 = vpop.permute.xlu0 %2770
        %v2772 = vlaneseq
        %v2773 = vshrl.u32 %v2772, 7
        %v2774 = vsub.s32 1, %v2773
        %v2775 = vrot.slane %v2511, %v2774
        %2777 = vbcast.lane.b32.xlu0 %v2775, 256
        %v2778 = vpop.permute.xlu0 %2777
        %s2780 = sor.u32 256, 8
        %2781 = vbcast.lane.b32.xlu0 %v2775, %s2780
        %v2782 = vpop.permute.xlu0 %2781
        %v2783 = vlaneseq
        %v2784 = vshrl.u32 %v2783, 7
        %v2785 = vsub.s32 2, %v2784
        %v2786 = vrot.slane %v2511, %v2785
        %2788 = vbcast.lane.b32.xlu0 %v2786, 256
        %v2789 = vpop.permute.xlu0 %2788
        %s2791 = sor.u32 256, 8
        %2792 = vbcast.lane.b32.xlu0 %v2786, %s2791
        %v2793 = vpop.permute.xlu0 %2792
        %v2794 = vlaneseq
        %v2795 = vshrl.u32 %v2794, 7
        %v2796 = vsub.s32 3, %v2795
        %v2797 = vrot.slane %v2511, %v2796
        %2799 = vbcast.lane.b32.xlu0 %v2797, 256
        %v2800 = vpop.permute.xlu0 %2799
        %s2802 = sor.u32 256, 8
        %2803 = vbcast.lane.b32.xlu0 %v2797, %s2802
        %v2804 = vpop.permute.xlu0 %2803
        %v2805 = vlaneseq
        %v2806 = vshrl.u32 %v2805, 7
        %v2807 = vsub.s32 4, %v2806
        %v2808 = vrot.slane %v2511, %v2807
        %2810 = vbcast.lane.b32.xlu0 %v2808, 256
        %v2811 = vpop.permute.xlu0 %2810
        %s2813 = sor.u32 256, 8
        %2814 = vbcast.lane.b32.xlu0 %v2808, %s2813
        %v2815 = vpop.permute.xlu0 %2814
        %v2816 = vlaneseq
        %v2817 = vshrl.u32 %v2816, 7
        %v2818 = vsub.s32 5, %v2817
        %v2819 = vrot.slane %v2511, %v2818
        %2821 = vbcast.lane.b32.xlu0 %v2819, 256
        %v2822 = vpop.permute.xlu0 %2821
        %s2824 = sor.u32 256, 8
        %2825 = vbcast.lane.b32.xlu0 %v2819, %s2824
        %v2826 = vpop.permute.xlu0 %2825
        %v2827 = vlaneseq
        %v2828 = vshrl.u32 %v2827, 7
        %v2829 = vsub.s32 6, %v2828
        %v2830 = vrot.slane %v2511, %v2829
        %2832 = vbcast.lane.b32.xlu0 %v2830, 256
        %v2833 = vpop.permute.xlu0 %2832
        %s2835 = sor.u32 256, 8
        %2836 = vbcast.lane.b32.xlu0 %v2830, %s2835
        %v2837 = vpop.permute.xlu0 %2836
        %v2838 = vlaneseq
        %v2839 = vshrl.u32 %v2838, 7
        %v2840 = vsub.s32 7, %v2839
        %v2841 = vrot.slane %v2511, %v2840
        %2843 = vbcast.lane.b32.xlu0 %v2841, 256
        %v2844 = vpop.permute.xlu0 %2843
        %s2846 = sor.u32 256, 8
        %2847 = vbcast.lane.b32.xlu0 %v2841, %s2846
        %v2848 = vpop.permute.xlu0 %2847
        %v2849 = vlaneseq
        %v2850 = vshrl.u32 %v2849, 7
        %v2851 = vsub.s32 0, %v2850
        %v2852 = vrot.slane %v2512, %v2851
        %2854 = vbcast.lane.b32.xlu0 %v2852, 256
        %v2855 = vpop.permute.xlu0 %2854
        %s2857 = sor.u32 256, 8
        %2858 = vbcast.lane.b32.xlu0 %v2852, %s2857
        %v2859 = vpop.permute.xlu0 %2858
        %v2860 = vlaneseq
        %v2861 = vshrl.u32 %v2860, 7
        %v2862 = vsub.s32 1, %v2861
        %v2863 = vrot.slane %v2512, %v2862
        %2865 = vbcast.lane.b32.xlu0 %v2863, 256
        %v2866 = vpop.permute.xlu0 %2865
        %s2868 = sor.u32 256, 8
        %2869 = vbcast.lane.b32.xlu0 %v2863, %s2868
        %v2870 = vpop.permute.xlu0 %2869
        %v2871 = vlaneseq
        %v2872 = vshrl.u32 %v2871, 7
        %v2873 = vsub.s32 2, %v2872
        %v2874 = vrot.slane %v2512, %v2873
        %2876 = vbcast.lane.b32.xlu0 %v2874, 256
        %v2877 = vpop.permute.xlu0 %2876
        %s2879 = sor.u32 256, 8
        %2880 = vbcast.lane.b32.xlu0 %v2874, %s2879
        %v2881 = vpop.permute.xlu0 %2880
        %v2882 = vlaneseq
        %v2883 = vshrl.u32 %v2882, 7
        %v2884 = vsub.s32 3, %v2883
        %v2885 = vrot.slane %v2512, %v2884
        %2887 = vbcast.lane.b32.xlu0 %v2885, 256
        %v2888 = vpop.permute.xlu0 %2887
        %s2890 = sor.u32 256, 8
        %2891 = vbcast.lane.b32.xlu0 %v2885, %s2890
        %v2892 = vpop.permute.xlu0 %2891
        %v2893 = vlaneseq
        %v2894 = vshrl.u32 %v2893, 7
        %v2895 = vsub.s32 4, %v2894
        %v2896 = vrot.slane %v2512, %v2895
        %2898 = vbcast.lane.b32.xlu0 %v2896, 256
        %v2899 = vpop.permute.xlu0 %2898
        %s2901 = sor.u32 256, 8
        %2902 = vbcast.lane.b32.xlu0 %v2896, %s2901
        %v2903 = vpop.permute.xlu0 %2902
        %v2904 = vlaneseq
        %v2905 = vshrl.u32 %v2904, 7
        %v2906 = vsub.s32 5, %v2905
        %v2907 = vrot.slane %v2512, %v2906
        %2909 = vbcast.lane.b32.xlu0 %v2907, 256
        %v2910 = vpop.permute.xlu0 %2909
        %s2912 = sor.u32 256, 8
        %2913 = vbcast.lane.b32.xlu0 %v2907, %s2912
        %v2914 = vpop.permute.xlu0 %2913
        %v2915 = vlaneseq
        %v2916 = vshrl.u32 %v2915, 7
        %v2917 = vsub.s32 6, %v2916
        %v2918 = vrot.slane %v2512, %v2917
        %2920 = vbcast.lane.b32.xlu0 %v2918, 256
        %v2921 = vpop.permute.xlu0 %2920
        %s2923 = sor.u32 256, 8
        %2924 = vbcast.lane.b32.xlu0 %v2918, %s2923
        %v2925 = vpop.permute.xlu0 %2924
        %v2926 = vlaneseq
        %v2927 = vshrl.u32 %v2926, 7
        %v2928 = vsub.s32 7, %v2927
        %v2929 = vrot.slane %v2512, %v2928
        %2931 = vbcast.lane.b32.xlu0 %v2929, 256
        %v2932 = vpop.permute.xlu0 %2931
        %s2934 = sor.u32 256, 8
        %2935 = vbcast.lane.b32.xlu0 %v2929, %s2934
        %v2936 = vpop.permute.xlu0 %2935
        %v2937 = vlaneseq
        %v2938 = vshrl.u32 %v2937, 7
        %v2939 = vsub.s32 1, %v2938
        %v2940 = vrot.slane %v281, %v2939
        %v2941 = vmul.f32 %v2767, %v2940
        %v2942 = vmul.f32 %v2771, %v2940
        %v2943 = vmul.f32 %v2778, %v2940
        %v2944 = vmul.f32 %v2782, %v2940
        %v2945 = vmul.f32 %v2789, %v2940
        %v2946 = vmul.f32 %v2793, %v2940
        %v2947 = vmul.f32 %v2800, %v2940
        %v2948 = vmul.f32 %v2804, %v2940
        %v2949 = vmul.f32 %v2811, %v2940
        %v2950 = vmul.f32 %v2815, %v2940
        %v2951 = vmul.f32 %v2822, %v2940
        %v2952 = vmul.f32 %v2826, %v2940
        %v2953 = vmul.f32 %v2833, %v2940
        %v2954 = vmul.f32 %v2837, %v2940
        %v2955 = vmul.f32 %v2844, %v2940
        %v2956 = vmul.f32 %v2848, %v2940
        %v2957 = vmul.f32 %v2855, %v2940
        %v2958 = vmul.f32 %v2859, %v2940
        %v2959 = vmul.f32 %v2866, %v2940
        %v2960 = vmul.f32 %v2870, %v2940
        %v2961 = vmul.f32 %v2877, %v2940
        %v2962 = vmul.f32 %v2881, %v2940
        %v2963 = vmul.f32 %v2888, %v2940
        %v2964 = vmul.f32 %v2892, %v2940
        %v2965 = vmul.f32 %v2899, %v2940
        %v2966 = vmul.f32 %v2903, %v2940
        %v2967 = vmul.f32 %v2910, %v2940
        %v2968 = vmul.f32 %v2914, %v2940
        %v2969 = vmul.f32 %v2921, %v2940
        %v2970 = vmul.f32 %v2925, %v2940
        %v2971 = vmul.f32 %v2932, %v2940
        %v2972 = vmul.f32 %v2936, %v2940
        %v2973 = vadd.f32 %v2729, %v2941
        %v2974 = vadd.f32 %v2730, %v2942
        %v2975 = vadd.f32 %v2731, %v2943
        %v2976 = vadd.f32 %v2732, %v2944
        %v2977 = vadd.f32 %v2733, %v2945
        %v2978 = vadd.f32 %v2734, %v2946
        %v2979 = vadd.f32 %v2735, %v2947
        %v2980 = vadd.f32 %v2736, %v2948
        %v2981 = vadd.f32 %v2737, %v2949
        %v2982 = vadd.f32 %v2738, %v2950
        %v2983 = vadd.f32 %v2739, %v2951
        %v2984 = vadd.f32 %v2740, %v2952
        %v2985 = vadd.f32 %v2741, %v2953
        %v2986 = vadd.f32 %v2742, %v2954
        %v2987 = vadd.f32 %v2743, %v2955
        %v2988 = vadd.f32 %v2744, %v2956
        %v2989 = vadd.f32 %v2745, %v2957
        %v2990 = vadd.f32 %v2746, %v2958
        %v2991 = vadd.f32 %v2747, %v2959
        %v2992 = vadd.f32 %v2748, %v2960
        %v2993 = vadd.f32 %v2749, %v2961
        %v2994 = vadd.f32 %v2750, %v2962
        %v2995 = vadd.f32 %v2751, %v2963
        %v2996 = vadd.f32 %v2752, %v2964
        %v2997 = vadd.f32 %v2753, %v2965
        %v2998 = vadd.f32 %v2754, %v2966
        %v2999 = vadd.f32 %v2755, %v2967
        %v3000 = vadd.f32 %v2756, %v2968
        %v3001 = vadd.f32 %v2757, %v2969
        %v3002 = vadd.f32 %v2758, %v2970
        %v3003 = vadd.f32 %v2759, %v2971
        %v3004 = vadd.f32 %v2760, %v2972
        %v3005 = vlaneseq
        %v3006 = vshrl.u32 %v3005, 7
        %v3007 = vsub.s32 0, %v3006
        %v3008 = vrot.slane %v2513, %v3007
        %3010 = vbcast.lane.b32.xlu0 %v3008, 256
        %v3011 = vpop.permute.xlu0 %3010
        %s3013 = sor.u32 256, 8
        %3014 = vbcast.lane.b32.xlu0 %v3008, %s3013
        %v3015 = vpop.permute.xlu0 %3014
        %v3016 = vlaneseq
        %v3017 = vshrl.u32 %v3016, 7
        %v3018 = vsub.s32 1, %v3017
        %v3019 = vrot.slane %v2513, %v3018
        %3021 = vbcast.lane.b32.xlu0 %v3019, 256
        %v3022 = vpop.permute.xlu0 %3021
        %s3024 = sor.u32 256, 8
        %3025 = vbcast.lane.b32.xlu0 %v3019, %s3024
        %v3026 = vpop.permute.xlu0 %3025
        %v3027 = vlaneseq
        %v3028 = vshrl.u32 %v3027, 7
        %v3029 = vsub.s32 2, %v3028
        %v3030 = vrot.slane %v2513, %v3029
        %3032 = vbcast.lane.b32.xlu0 %v3030, 256
        %v3033 = vpop.permute.xlu0 %3032
        %s3035 = sor.u32 256, 8
        %3036 = vbcast.lane.b32.xlu0 %v3030, %s3035
        %v3037 = vpop.permute.xlu0 %3036
        %v3038 = vlaneseq
        %v3039 = vshrl.u32 %v3038, 7
        %v3040 = vsub.s32 3, %v3039
        %v3041 = vrot.slane %v2513, %v3040
        %3043 = vbcast.lane.b32.xlu0 %v3041, 256
        %v3044 = vpop.permute.xlu0 %3043
        %s3046 = sor.u32 256, 8
        %3047 = vbcast.lane.b32.xlu0 %v3041, %s3046
        %v3048 = vpop.permute.xlu0 %3047
        %v3049 = vlaneseq
        %v3050 = vshrl.u32 %v3049, 7
        %v3051 = vsub.s32 4, %v3050
        %v3052 = vrot.slane %v2513, %v3051
        %3054 = vbcast.lane.b32.xlu0 %v3052, 256
        %v3055 = vpop.permute.xlu0 %3054
        %s3057 = sor.u32 256, 8
        %3058 = vbcast.lane.b32.xlu0 %v3052, %s3057
        %v3059 = vpop.permute.xlu0 %3058
        %v3060 = vlaneseq
        %v3061 = vshrl.u32 %v3060, 7
        %v3062 = vsub.s32 5, %v3061
        %v3063 = vrot.slane %v2513, %v3062
        %3065 = vbcast.lane.b32.xlu0 %v3063, 256
        %v3066 = vpop.permute.xlu0 %3065
        %s3068 = sor.u32 256, 8
        %3069 = vbcast.lane.b32.xlu0 %v3063, %s3068
        %v3070 = vpop.permute.xlu0 %3069
        %v3071 = vlaneseq
        %v3072 = vshrl.u32 %v3071, 7
        %v3073 = vsub.s32 6, %v3072
        %v3074 = vrot.slane %v2513, %v3073
        %3076 = vbcast.lane.b32.xlu0 %v3074, 256
        %v3077 = vpop.permute.xlu0 %3076
        %s3079 = sor.u32 256, 8
        %3080 = vbcast.lane.b32.xlu0 %v3074, %s3079
        %v3081 = vpop.permute.xlu0 %3080
        %v3082 = vlaneseq
        %v3083 = vshrl.u32 %v3082, 7
        %v3084 = vsub.s32 7, %v3083
        %v3085 = vrot.slane %v2513, %v3084
        %3087 = vbcast.lane.b32.xlu0 %v3085, 256
        %v3088 = vpop.permute.xlu0 %3087
        %s3090 = sor.u32 256, 8
        %3091 = vbcast.lane.b32.xlu0 %v3085, %s3090
        %v3092 = vpop.permute.xlu0 %3091
        %v3093 = vlaneseq
        %v3094 = vshrl.u32 %v3093, 7
        %v3095 = vsub.s32 0, %v3094
        %v3096 = vrot.slane %v2514, %v3095
        %3098 = vbcast.lane.b32.xlu0 %v3096, 256
        %v3099 = vpop.permute.xlu0 %3098
        %s3101 = sor.u32 256, 8
        %3102 = vbcast.lane.b32.xlu0 %v3096, %s3101
        %v3103 = vpop.permute.xlu0 %3102
        %v3104 = vlaneseq
        %v3105 = vshrl.u32 %v3104, 7
        %v3106 = vsub.s32 1, %v3105
        %v3107 = vrot.slane %v2514, %v3106
        %3109 = vbcast.lane.b32.xlu0 %v3107, 256
        %v3110 = vpop.permute.xlu0 %3109
        %s3112 = sor.u32 256, 8
        %3113 = vbcast.lane.b32.xlu0 %v3107, %s3112
        %v3114 = vpop.permute.xlu0 %3113
        %v3115 = vlaneseq
        %v3116 = vshrl.u32 %v3115, 7
        %v3117 = vsub.s32 2, %v3116
        %v3118 = vrot.slane %v2514, %v3117
        %3120 = vbcast.lane.b32.xlu0 %v3118, 256
        %v3121 = vpop.permute.xlu0 %3120
        %s3123 = sor.u32 256, 8
        %3124 = vbcast.lane.b32.xlu0 %v3118, %s3123
        %v3125 = vpop.permute.xlu0 %3124
        %v3126 = vlaneseq
        %v3127 = vshrl.u32 %v3126, 7
        %v3128 = vsub.s32 3, %v3127
        %v3129 = vrot.slane %v2514, %v3128
        %3131 = vbcast.lane.b32.xlu0 %v3129, 256
        %v3132 = vpop.permute.xlu0 %3131
        %s3134 = sor.u32 256, 8
        %3135 = vbcast.lane.b32.xlu0 %v3129, %s3134
        %v3136 = vpop.permute.xlu0 %3135
        %v3137 = vlaneseq
        %v3138 = vshrl.u32 %v3137, 7
        %v3139 = vsub.s32 4, %v3138
        %v3140 = vrot.slane %v2514, %v3139
        %3142 = vbcast.lane.b32.xlu0 %v3140, 256
        %v3143 = vpop.permute.xlu0 %3142
        %s3145 = sor.u32 256, 8
        %3146 = vbcast.lane.b32.xlu0 %v3140, %s3145
        %v3147 = vpop.permute.xlu0 %3146
        %v3148 = vlaneseq
        %v3149 = vshrl.u32 %v3148, 7
        %v3150 = vsub.s32 5, %v3149
        %v3151 = vrot.slane %v2514, %v3150
        %3153 = vbcast.lane.b32.xlu0 %v3151, 256
        %v3154 = vpop.permute.xlu0 %3153
        %s3156 = sor.u32 256, 8
        %3157 = vbcast.lane.b32.xlu0 %v3151, %s3156
        %v3158 = vpop.permute.xlu0 %3157
        %v3159 = vlaneseq
        %v3160 = vshrl.u32 %v3159, 7
        %v3161 = vsub.s32 6, %v3160
        %v3162 = vrot.slane %v2514, %v3161
        %3164 = vbcast.lane.b32.xlu0 %v3162, 256
        %v3165 = vpop.permute.xlu0 %3164
        %s3167 = sor.u32 256, 8
        %3168 = vbcast.lane.b32.xlu0 %v3162, %s3167
        %v3169 = vpop.permute.xlu0 %3168
        %v3170 = vlaneseq
        %v3171 = vshrl.u32 %v3170, 7
        %v3172 = vsub.s32 7, %v3171
        %v3173 = vrot.slane %v2514, %v3172
        %3175 = vbcast.lane.b32.xlu0 %v3173, 256
        %v3176 = vpop.permute.xlu0 %3175
        %s3178 = sor.u32 256, 8
        %3179 = vbcast.lane.b32.xlu0 %v3173, %s3178
        %v3180 = vpop.permute.xlu0 %3179
        %v3181 = vlaneseq
        %v3182 = vshrl.u32 %v3181, 7
        %v3183 = vsub.s32 2, %v3182
        %v3184 = vrot.slane %v281, %v3183
        %v3185 = vmul.f32 %v3011, %v3184
        %v3186 = vmul.f32 %v3015, %v3184
        %v3187 = vmul.f32 %v3022, %v3184
        %v3188 = vmul.f32 %v3026, %v3184
        %v3189 = vmul.f32 %v3033, %v3184
        %v3190 = vmul.f32 %v3037, %v3184
        %v3191 = vmul.f32 %v3044, %v3184
        %v3192 = vmul.f32 %v3048, %v3184
        %v3193 = vmul.f32 %v3055, %v3184
        %v3194 = vmul.f32 %v3059, %v3184
        %v3195 = vmul.f32 %v3066, %v3184
        %v3196 = vmul.f32 %v3070, %v3184
        %v3197 = vmul.f32 %v3077, %v3184
        %v3198 = vmul.f32 %v3081, %v3184
        %v3199 = vmul.f32 %v3088, %v3184
        %v3200 = vmul.f32 %v3092, %v3184
        %v3201 = vmul.f32 %v3099, %v3184
        %v3202 = vmul.f32 %v3103, %v3184
        %v3203 = vmul.f32 %v3110, %v3184
        %v3204 = vmul.f32 %v3114, %v3184
        %v3205 = vmul.f32 %v3121, %v3184
        %v3206 = vmul.f32 %v3125, %v3184
        %v3207 = vmul.f32 %v3132, %v3184
        %v3208 = vmul.f32 %v3136, %v3184
        %v3209 = vmul.f32 %v3143, %v3184
        %v3210 = vmul.f32 %v3147, %v3184
        %v3211 = vmul.f32 %v3154, %v3184
        %v3212 = vmul.f32 %v3158, %v3184
        %v3213 = vmul.f32 %v3165, %v3184
        %v3214 = vmul.f32 %v3169, %v3184
        %v3215 = vmul.f32 %v3176, %v3184
        %v3216 = vmul.f32 %v3180, %v3184
        %v3217 = vadd.f32 %v2973, %v3185
        %v3218 = vadd.f32 %v2974, %v3186
        %v3219 = vadd.f32 %v2975, %v3187
        %v3220 = vadd.f32 %v2976, %v3188
        %v3221 = vadd.f32 %v2977, %v3189
        %v3222 = vadd.f32 %v2978, %v3190
        %v3223 = vadd.f32 %v2979, %v3191
        %v3224 = vadd.f32 %v2980, %v3192
        %v3225 = vadd.f32 %v2981, %v3193
        %v3226 = vadd.f32 %v2982, %v3194
        %v3227 = vadd.f32 %v2983, %v3195
        %v3228 = vadd.f32 %v2984, %v3196
        %v3229 = vadd.f32 %v2985, %v3197
        %v3230 = vadd.f32 %v2986, %v3198
        %v3231 = vadd.f32 %v2987, %v3199
        %v3232 = vadd.f32 %v2988, %v3200
        %v3233 = vadd.f32 %v2989, %v3201
        %v3234 = vadd.f32 %v2990, %v3202
        %v3235 = vadd.f32 %v2991, %v3203
        %v3236 = vadd.f32 %v2992, %v3204
        %v3237 = vadd.f32 %v2993, %v3205
        %v3238 = vadd.f32 %v2994, %v3206
        %v3239 = vadd.f32 %v2995, %v3207
        %v3240 = vadd.f32 %v2996, %v3208
        %v3241 = vadd.f32 %v2997, %v3209
        %v3242 = vadd.f32 %v2998, %v3210
        %v3243 = vadd.f32 %v2999, %v3211
        %v3244 = vadd.f32 %v3000, %v3212
        %v3245 = vadd.f32 %v3001, %v3213
        %v3246 = vadd.f32 %v3002, %v3214
        %v3247 = vadd.f32 %v3003, %v3215
        %v3248 = vadd.f32 %v3004, %v3216
        %v3249 = vlaneseq
        %v3250 = vshrl.u32 %v3249, 7
        %v3251 = vsub.s32 0, %v3250
        %v3252 = vrot.slane %v2515, %v3251
        %3254 = vbcast.lane.b32.xlu0 %v3252, 256
        %v3255 = vpop.permute.xlu0 %3254
        %s3257 = sor.u32 256, 8
        %3258 = vbcast.lane.b32.xlu0 %v3252, %s3257
        %v3259 = vpop.permute.xlu0 %3258
        %v3260 = vlaneseq
        %v3261 = vshrl.u32 %v3260, 7
        %v3262 = vsub.s32 1, %v3261
        %v3263 = vrot.slane %v2515, %v3262
        %3265 = vbcast.lane.b32.xlu0 %v3263, 256
        %v3266 = vpop.permute.xlu0 %3265
        %s3268 = sor.u32 256, 8
        %3269 = vbcast.lane.b32.xlu0 %v3263, %s3268
        %v3270 = vpop.permute.xlu0 %3269
        %v3271 = vlaneseq
        %v3272 = vshrl.u32 %v3271, 7
        %v3273 = vsub.s32 2, %v3272
        %v3274 = vrot.slane %v2515, %v3273
        %3276 = vbcast.lane.b32.xlu0 %v3274, 256
        %v3277 = vpop.permute.xlu0 %3276
        %s3279 = sor.u32 256, 8
        %3280 = vbcast.lane.b32.xlu0 %v3274, %s3279
        %v3281 = vpop.permute.xlu0 %3280
        %v3282 = vlaneseq
        %v3283 = vshrl.u32 %v3282, 7
        %v3284 = vsub.s32 3, %v3283
        %v3285 = vrot.slane %v2515, %v3284
        %3287 = vbcast.lane.b32.xlu0 %v3285, 256
        %v3288 = vpop.permute.xlu0 %3287
        %s3290 = sor.u32 256, 8
        %3291 = vbcast.lane.b32.xlu0 %v3285, %s3290
        %v3292 = vpop.permute.xlu0 %3291
        %v3293 = vlaneseq
        %v3294 = vshrl.u32 %v3293, 7
        %v3295 = vsub.s32 4, %v3294
        %v3296 = vrot.slane %v2515, %v3295
        %3298 = vbcast.lane.b32.xlu0 %v3296, 256
        %v3299 = vpop.permute.xlu0 %3298
        %s3301 = sor.u32 256, 8
        %3302 = vbcast.lane.b32.xlu0 %v3296, %s3301
        %v3303 = vpop.permute.xlu0 %3302
        %v3304 = vlaneseq
        %v3305 = vshrl.u32 %v3304, 7
        %v3306 = vsub.s32 5, %v3305
        %v3307 = vrot.slane %v2515, %v3306
        %3309 = vbcast.lane.b32.xlu0 %v3307, 256
        %v3310 = vpop.permute.xlu0 %3309
        %s3312 = sor.u32 256, 8
        %3313 = vbcast.lane.b32.xlu0 %v3307, %s3312
        %v3314 = vpop.permute.xlu0 %3313
        %v3315 = vlaneseq
        %v3316 = vshrl.u32 %v3315, 7
        %v3317 = vsub.s32 6, %v3316
        %v3318 = vrot.slane %v2515, %v3317
        %3320 = vbcast.lane.b32.xlu0 %v3318, 256
        %v3321 = vpop.permute.xlu0 %3320
        %s3323 = sor.u32 256, 8
        %3324 = vbcast.lane.b32.xlu0 %v3318, %s3323
        %v3325 = vpop.permute.xlu0 %3324
        %v3326 = vlaneseq
        %v3327 = vshrl.u32 %v3326, 7
        %v3328 = vsub.s32 7, %v3327
        %v3329 = vrot.slane %v2515, %v3328
        %3331 = vbcast.lane.b32.xlu0 %v3329, 256
        %v3332 = vpop.permute.xlu0 %3331
        %s3334 = sor.u32 256, 8
        %3335 = vbcast.lane.b32.xlu0 %v3329, %s3334
        %v3336 = vpop.permute.xlu0 %3335
        %v3337 = vlaneseq
        %v3338 = vshrl.u32 %v3337, 7
        %v3339 = vsub.s32 0, %v3338
        %v3340 = vrot.slane %v2516, %v3339
        %3342 = vbcast.lane.b32.xlu0 %v3340, 256
        %v3343 = vpop.permute.xlu0 %3342
        %s3345 = sor.u32 256, 8
        %3346 = vbcast.lane.b32.xlu0 %v3340, %s3345
        %v3347 = vpop.permute.xlu0 %3346
        %v3348 = vlaneseq
        %v3349 = vshrl.u32 %v3348, 7
        %v3350 = vsub.s32 1, %v3349
        %v3351 = vrot.slane %v2516, %v3350
        %3353 = vbcast.lane.b32.xlu0 %v3351, 256
        %v3354 = vpop.permute.xlu0 %3353
        %s3356 = sor.u32 256, 8
        %3357 = vbcast.lane.b32.xlu0 %v3351, %s3356
        %v3358 = vpop.permute.xlu0 %3357
        %v3359 = vlaneseq
        %v3360 = vshrl.u32 %v3359, 7
        %v3361 = vsub.s32 2, %v3360
        %v3362 = vrot.slane %v2516, %v3361
        %3364 = vbcast.lane.b32.xlu0 %v3362, 256
        %v3365 = vpop.permute.xlu0 %3364
        %s3367 = sor.u32 256, 8
        %3368 = vbcast.lane.b32.xlu0 %v3362, %s3367
        %v3369 = vpop.permute.xlu0 %3368
        %v3370 = vlaneseq
        %v3371 = vshrl.u32 %v3370, 7
        %v3372 = vsub.s32 3, %v3371
        %v3373 = vrot.slane %v2516, %v3372
        %3375 = vbcast.lane.b32.xlu0 %v3373, 256
        %v3376 = vpop.permute.xlu0 %3375
        %s3378 = sor.u32 256, 8
        %3379 = vbcast.lane.b32.xlu0 %v3373, %s3378
        %v3380 = vpop.permute.xlu0 %3379
        %v3381 = vlaneseq
        %v3382 = vshrl.u32 %v3381, 7
        %v3383 = vsub.s32 4, %v3382
        %v3384 = vrot.slane %v2516, %v3383
        %3386 = vbcast.lane.b32.xlu0 %v3384, 256
        %v3387 = vpop.permute.xlu0 %3386
        %s3389 = sor.u32 256, 8
        %3390 = vbcast.lane.b32.xlu0 %v3384, %s3389
        %v3391 = vpop.permute.xlu0 %3390
        %v3392 = vlaneseq
        %v3393 = vshrl.u32 %v3392, 7
        %v3394 = vsub.s32 5, %v3393
        %v3395 = vrot.slane %v2516, %v3394
        %3397 = vbcast.lane.b32.xlu0 %v3395, 256
        %v3398 = vpop.permute.xlu0 %3397
        %s3400 = sor.u32 256, 8
        %3401 = vbcast.lane.b32.xlu0 %v3395, %s3400
        %v3402 = vpop.permute.xlu0 %3401
        %v3403 = vlaneseq
        %v3404 = vshrl.u32 %v3403, 7
        %v3405 = vsub.s32 6, %v3404
        %v3406 = vrot.slane %v2516, %v3405
        %3408 = vbcast.lane.b32.xlu0 %v3406, 256
        %v3409 = vpop.permute.xlu0 %3408
        %s3411 = sor.u32 256, 8
        %3412 = vbcast.lane.b32.xlu0 %v3406, %s3411
        %v3413 = vpop.permute.xlu0 %3412
        %v3414 = vlaneseq
        %v3415 = vshrl.u32 %v3414, 7
        %v3416 = vsub.s32 7, %v3415
        %v3417 = vrot.slane %v2516, %v3416
        %3419 = vbcast.lane.b32.xlu0 %v3417, 256
        %v3420 = vpop.permute.xlu0 %3419
        %s3422 = sor.u32 256, 8
        %3423 = vbcast.lane.b32.xlu0 %v3417, %s3422
        %v3424 = vpop.permute.xlu0 %3423
        %v3425 = vlaneseq
        %v3426 = vshrl.u32 %v3425, 7
        %v3427 = vsub.s32 3, %v3426
        %v3428 = vrot.slane %v281, %v3427
        %v3429 = vmul.f32 %v3255, %v3428
        %v3430 = vmul.f32 %v3259, %v3428
        %v3431 = vmul.f32 %v3266, %v3428
        %v3432 = vmul.f32 %v3270, %v3428
        %v3433 = vmul.f32 %v3277, %v3428
        %v3434 = vmul.f32 %v3281, %v3428
        %v3435 = vmul.f32 %v3288, %v3428
        %v3436 = vmul.f32 %v3292, %v3428
        %v3437 = vmul.f32 %v3299, %v3428
        %v3438 = vmul.f32 %v3303, %v3428
        %v3439 = vmul.f32 %v3310, %v3428
        %v3440 = vmul.f32 %v3314, %v3428
        %v3441 = vmul.f32 %v3321, %v3428
        %v3442 = vmul.f32 %v3325, %v3428
        %v3443 = vmul.f32 %v3332, %v3428
        %v3444 = vmul.f32 %v3336, %v3428
        %v3445 = vmul.f32 %v3343, %v3428
        %v3446 = vmul.f32 %v3347, %v3428
        %v3447 = vmul.f32 %v3354, %v3428
        %v3448 = vmul.f32 %v3358, %v3428
        %v3449 = vmul.f32 %v3365, %v3428
        %v3450 = vmul.f32 %v3369, %v3428
        %v3451 = vmul.f32 %v3376, %v3428
        %v3452 = vmul.f32 %v3380, %v3428
        %v3453 = vmul.f32 %v3387, %v3428
        %v3454 = vmul.f32 %v3391, %v3428
        %v3455 = vmul.f32 %v3398, %v3428
        %v3456 = vmul.f32 %v3402, %v3428
        %v3457 = vmul.f32 %v3409, %v3428
        %v3458 = vmul.f32 %v3413, %v3428
        %v3459 = vmul.f32 %v3420, %v3428
        %v3460 = vmul.f32 %v3424, %v3428
        %v3461 = vadd.f32 %v3217, %v3429
        %v3462 = vadd.f32 %v3218, %v3430
        %v3463 = vadd.f32 %v3219, %v3431
        %v3464 = vadd.f32 %v3220, %v3432
        %v3465 = vadd.f32 %v3221, %v3433
        %v3466 = vadd.f32 %v3222, %v3434
        %v3467 = vadd.f32 %v3223, %v3435
        %v3468 = vadd.f32 %v3224, %v3436
        %v3469 = vadd.f32 %v3225, %v3437
        %v3470 = vadd.f32 %v3226, %v3438
        %v3471 = vadd.f32 %v3227, %v3439
        %v3472 = vadd.f32 %v3228, %v3440
        %v3473 = vadd.f32 %v3229, %v3441
        %v3474 = vadd.f32 %v3230, %v3442
        %v3475 = vadd.f32 %v3231, %v3443
        %v3476 = vadd.f32 %v3232, %v3444
        %v3477 = vadd.f32 %v3233, %v3445
        %v3478 = vadd.f32 %v3234, %v3446
        %v3479 = vadd.f32 %v3235, %v3447
        %v3480 = vadd.f32 %v3236, %v3448
        %v3481 = vadd.f32 %v3237, %v3449
        %v3482 = vadd.f32 %v3238, %v3450
        %v3483 = vadd.f32 %v3239, %v3451
        %v3484 = vadd.f32 %v3240, %v3452
        %v3485 = vadd.f32 %v3241, %v3453
        %v3486 = vadd.f32 %v3242, %v3454
        %v3487 = vadd.f32 %v3243, %v3455
        %v3488 = vadd.f32 %v3244, %v3456
        %v3489 = vadd.f32 %v3245, %v3457
        %v3490 = vadd.f32 %v3246, %v3458
        %v3491 = vadd.f32 %v3247, %v3459
        %v3492 = vadd.f32 %v3248, %v3460
        %v3493 = vld [vmem:[#allocation7] sm:$0x1]
        %v3495 = vlaneseq
        %v3496 = vshrl.u32 %v3495, 7
        %v3497 = vsub.s32 0, %v3496
        %v3498 = vrot.slane %v3493, %v3497
        %v3500 = vadd.f32 %v3461, %v3498
        %v3501 = vadd.f32 %v3462, %v3498
        %v3502 = vadd.f32 %v3463, %v3498
        %v3503 = vadd.f32 %v3464, %v3498
        %v3504 = vadd.f32 %v3465, %v3498
        %v3505 = vadd.f32 %v3466, %v3498
        %v3506 = vadd.f32 %v3467, %v3498
        %v3507 = vadd.f32 %v3468, %v3498
        %v3508 = vadd.f32 %v3469, %v3498
        %v3509 = vadd.f32 %v3470, %v3498
        %v3510 = vadd.f32 %v3471, %v3498
        %v3511 = vadd.f32 %v3472, %v3498
        %v3512 = vadd.f32 %v3473, %v3498
        %v3513 = vadd.f32 %v3474, %v3498
        %v3514 = vadd.f32 %v3475, %v3498
        %v3515 = vadd.f32 %v3476, %v3498
        %v3516 = vadd.f32 %v3477, %v3498
        %v3517 = vadd.f32 %v3478, %v3498
        %v3518 = vadd.f32 %v3479, %v3498
        %v3519 = vadd.f32 %v3480, %v3498
        %v3520 = vadd.f32 %v3481, %v3498
        %v3521 = vadd.f32 %v3482, %v3498
        %v3522 = vadd.f32 %v3483, %v3498
        %v3523 = vadd.f32 %v3484, %v3498
        %v3524 = vadd.f32 %v3485, %v3498
        %v3525 = vadd.f32 %v3486, %v3498
        %v3526 = vadd.f32 %v3487, %v3498
        %v3527 = vadd.f32 %v3488, %v3498
        %v3528 = vadd.f32 %v3489, %v3498
        %v3529 = vadd.f32 %v3490, %v3498
        %v3530 = vadd.f32 %v3491, %v3498
        %v3531 = vadd.f32 %v3492, %v3498
        %vm3532 = vcmask 261120
        %3533 = vst.msk [vmem:[%s275] sm:$0xff] %vm3532, %v3500
        %3534 = vst.msk [vmem:[%s275 + $0x8] sm:$0xff] %vm3532, %v3501
        %3535 = vst.msk [vmem:[%s275 + $0x10] sm:$0xff] %vm3532, %v3502
        %3536 = vst.msk [vmem:[%s275 + $0x18] sm:$0xff] %vm3532, %v3503
        %3537 = vst.msk [vmem:[%s275 + $0x20] sm:$0xff] %vm3532, %v3504
        %3538 = vst.msk [vmem:[%s275 + $0x28] sm:$0xff] %vm3532, %v3505
        %3539 = vst.msk [vmem:[%s275 + $0x30] sm:$0xff] %vm3532, %v3506
        %3540 = vst.msk [vmem:[%s275 + $0x38] sm:$0xff] %vm3532, %v3507
        %3541 = vst.msk [vmem:[%s275 + $0x40] sm:$0xff] %vm3532, %v3508
        %3542 = vst.msk [vmem:[%s275 + $0x48] sm:$0xff] %vm3532, %v3509
        %3543 = vst.msk [vmem:[%s275 + $0x50] sm:$0xff] %vm3532, %v3510
        %3544 = vst.msk [vmem:[%s275 + $0x58] sm:$0xff] %vm3532, %v3511
        %3545 = vst.msk [vmem:[%s275 + $0x60] sm:$0xff] %vm3532, %v3512
        %3546 = vst.msk [vmem:[%s275 + $0x68] sm:$0xff] %vm3532, %v3513
        %3547 = vst.msk [vmem:[%s275 + $0x70] sm:$0xff] %vm3532, %v3514
        %3548 = vst.msk [vmem:[%s275 + $0x78] sm:$0xff] %vm3532, %v3515
        %3549 = vst.msk [vmem:[%s275 + $0x80] sm:$0xff] %vm3532, %v3516
        %3550 = vst.msk [vmem:[%s275 + $0x88] sm:$0xff] %vm3532, %v3517
        %3551 = vst.msk [vmem:[%s275 + $0x90] sm:$0xff] %vm3532, %v3518
        %3552 = vst.msk [vmem:[%s275 + $0x98] sm:$0xff] %vm3532, %v3519
        %3553 = vst.msk [vmem:[%s275 + $0xa0] sm:$0xff] %vm3532, %v3520
        %3554 = vst.msk [vmem:[%s275 + $0xa8] sm:$0xff] %vm3532, %v3521
        %3555 = vst.msk [vmem:[%s275 + $0xb0] sm:$0xff] %vm3532, %v3522
        %3556 = vst.msk [vmem:[%s275 + $0xb8] sm:$0xff] %vm3532, %v3523
        %3557 = vst.msk [vmem:[%s275 + $0xc0] sm:$0xff] %vm3532, %v3524
        %3558 = vst.msk [vmem:[%s275 + $0xc8] sm:$0xff] %vm3532, %v3525
        %3559 = vst.msk [vmem:[%s275 + $0xd0] sm:$0xff] %vm3532, %v3526
        %3560 = vst.msk [vmem:[%s275 + $0xd8] sm:$0xff] %vm3532, %v3527
        %3561 = vst.msk [vmem:[%s275 + $0xe0] sm:$0xff] %vm3532, %v3528
        %3562 = vst.msk [vmem:[%s275 + $0xe8] sm:$0xff] %vm3532, %v3529
        %3563 = vst.msk [vmem:[%s275 + $0xf0] sm:$0xff] %vm3532, %v3530
        %3564 = vst.msk [vmem:[%s275 + $0xf8] sm:$0xff] %vm3532, %v3531
        %s3565 = sand.u32 %s136, 1
        %s3566 = scalar_lea.sflag [#allocation4], %s3565
        %s3567 = sand.u32 %s136, 1
        %s3568 = smul.addr %s3567, 256
        %s3569 = scalar_lea.vmem [#allocation10], %s3568
        // Predicated region
        $region53: #{tpu_custom_call.1} parent=35 // pred_check
          %p3570 = pneg %p146
        $region54: #{tpu_custom_call.1} parent=35 // pred_check_branch
          %3572 = sbr.rel (%p3570) target = $region56
        $region55: #{tpu_custom_call.1} parent=35 // pred_region
          %s3573 = smul.u32 16, %s28
          %s3575 = ssub.s32 4096, 4096
          %3576 = vsyncadd %s3566, %s3575
          %s3577 = smul.addr %s3573, 2
          %s3578 = smul.addr %s27, 32
          %s3579 = sadd.s32 %s3577, %s3578
          %s3580 = smul.addr %s3579, 128
          %s3581 = scalar_lea.hbm %s4, %s3580
          %s3582 = sshll.u32 %s3569, 4
          %s3583 = int_to_ptr.vmem [resolvable:$true] %s3582
          %3588 = dma.vmem_to_hbm [thread:$0]  %s3583, 4096, %s3581, %s3566, 128, 128, 8
        $region56: #{tpu_custom_call.1} parent=35 // pred_fallthru
          _
      $region36: #{tpu_custom_call.1} parent=5 // pred_fallthru
        _
      %p3589 = scmp.le.s32.totalorder 2, %s18
      // Predicated region
      $region57: #{tpu_custom_call.1} parent=5 // pred_check
        %p3590 = pneg %p3589
      $region58: #{tpu_custom_call.1} parent=5 // pred_check_branch
        %3592 = sbr.rel (%p3590) target = $region60
      $region59: #{tpu_custom_call.1} parent=5 // pred_region
        %s3593 = ssub.s32 %s18, 2
        // Predicated region
        $region61: #{tpu_custom_call.1} parent=59 // pred_check
          %p3594 = pneg %p152
        $region62: #{tpu_custom_call.1} parent=59 // pred_check_branch
          %3596 = sbr.rel (%p3594) target = $region64
        $region63: #{tpu_custom_call.1} parent=59 // pred_region
          %s3597 = sand.u32 %s137, 1
          %s3598 = scalar_lea.sflag [#allocation4], %s3597
          %s3599 = sand.u32 %s137, 1
          %s3600 = smul.addr %s3599, 256
          %s3601 = scalar_lea.vmem [#allocation10], %s3600
          %3602 = dma.done %s3598, 4096
        $region64: #{tpu_custom_call.1} parent=59 // pred_fallthru
          _
      $region60: #{tpu_custom_call.1} parent=5 // pred_fallthru
        _
    $region6: #{tpu_custom_call.1} parent=1 // loop_footer
      %s22 = sadd.s32 1, %s18
    $region7: #{tpu_custom_call.1} parent=1 // loop_footer_branch
      %17 = sbr.rel target = $region3
    $region8: #{tpu_custom_call.1} parent=1 // loop_exit
      _
    %3603 = vsyncpa [#allocation3], 1
    %s3604 = scalar_lea.sflag [#allocation3], 1
    %3605 = vsyncpa %s3604, 1
    %3606 = vsyncpa [#allocation6], 1
    %3607 = vsyncpa [#allocation9], 1
    %s3608 = scalar_lea.sflag [#allocation9], 1
    %3609 = vsyncpa %s3608, 1
    %3610 = vsyncpa [#allocation4], 1
    %s3611 = scalar_lea.sflag [#allocation4], 1
    %3612 = vsyncpa %s3611, 1

</llo_original>
